<compile_context>
chip_gen: v5e
topology: v5e:2x2
jax: 0.10.0
libtpu: 0.0.40
codegen_flags: <defaults>
</compile_context>

<pallas_src>
import numpy as np
import jax
import jax.numpy as jnp
from jax.experimental import pallas as pl
from jax.experimental.pallas import tpu as pltpu


_EPS = 0.8  # nn.BatchNorm2d(out_filters, 0.8): positional eps=0.8 (kept for parity)

_COMPILER_PARAMS = pltpu.CompilerParams(
    dimension_semantics=("parallel",),      # batch axis -> both TCs on v7x
    vmem_limit_bytes=16 * 1024 * 1024,      # ~1-3 MiB actually used; v7x headroom
)


# -----------------------------------------------------------------------------
# Fused Pallas kernel: conv stack + head, one sample per grid step
# -----------------------------------------------------------------------------
def _disc_kernel(p1_ref, w1_ref, b1_ref,
                 s2_ref, w2_ref, bn2_ref,
                 s3_ref, w3_ref, bn3_ref,
                 s4_ref, w4_ref, bn4_ref,
                 wh_ref, bh_ref, o_ref):
    f32 = jnp.float32

    def leaky(v):  # LeakyReLU(0.2)
        return jnp.maximum(v, 0.2 * v)

    # ---- Block 1: pre-extracted patches (HW1, 32) @ W1 (32, 16) + bias, LeakyReLU.
    # TODO(synk): nn.Dropout2d(0.25) is identity in inference mode (no RNG here).
    y = jnp.dot(p1_ref[0], w1_ref[...], preferred_element_type=f32)
    y = leaky(y + b1_ref[...])                       # no BatchNorm in block 1

    # ---- Blocks 2-4: implicit im2col via 0/1 selection-matrix matmuls.
    # S[t] gathers the (dy,dx) tap of every output pixel (zero rows = padding),
    # so the stride-2 conv is 9 pairs of tiny MXU matmuls, all VMEM-resident.
    def conv_block(y_in, s_ref, w_ref, bn_ref):
        rows_out = s_ref.shape[1]
        cout = w_ref.shape[2]
        acc = jnp.zeros((rows_out, cout), f32)
        for t in range(9):
            patch = jnp.dot(s_ref[t], y_in, preferred_element_type=f32)
            acc = acc + jnp.dot(patch, w_ref[t], preferred_element_type=f32)
        acc = leaky(acc + bn_ref[0:1, :])             # conv bias + LeakyReLU(0.2)
        return acc * bn_ref[1:2, :] + bn_ref[2:3, :]  # eval-mode BatchNorm2d affine

    y = conv_block(y, s2_ref, w2_ref, bn2_ref)        # (64, 32)
    y = conv_block(y, s3_ref, w3_ref, bn3_ref)        # (16, 64)
    y = conv_block(y, s4_ref, w4_ref, bn4_ref)        # (4, 128)

    # ---- Head: CHW flatten folded into wh -> Linear(512, 1) -> Sigmoid.
    logit = jnp.sum(y * wh_ref[...], axis=1, keepdims=True)       # (HW4, 1)
    logit = jnp.sum(logit, axis=0, keepdims=True) + bh_ref[...]   # (1, 1)
    o_ref[0] = (1.0 / (1.0 + jnp.exp(-logit))).astype(o_ref.dtype)


# -----------------------------------------------------------------------------
# Layout / parameter preparation (host side, runs once)
# -----------------------------------------------------------------------------
def _make_selection(hi, wi, ho, wo):
    """(9, ho*wo, hi*wi) 0/1 tap-gather matrices for a 3x3 / stride-2 / pad-1 conv."""
    s = np.zeros((9, ho * wo, hi * wi), np.float32)
    for dy in range(3):
        for dx in range(3):
            t = dy * 3 + dx
            for a in range(ho):
                r = 2 * a + dy - 1
                if r < 0 or r >= hi:
                    continue
                for b in range(wo):
                    c = 2 * b + dx - 1
                    if c < 0 or c >= wi:
                        continue
                    s[t, a * wo + b, r * wi + c] = 1.0
    return jnp.asarray(s)


def _im2col_nhwc(x, k=3, stride=2, pad=1):
    """NHWC image -> (N, Ho*Wo, k*k*C) patches, feature order (dy, dx, cin)."""
    n, h, w, c = x.shape
    ho = (h + 2 * pad - k) // stride + 1
    wo = (w + 2 * pad - k) // stride + 1
    xp = jnp.pad(x, ((0, 0), (pad, pad), (pad, pad), (0, 0)))
    cols = []
    for dy in range(k):
        for dx in range(k):
            cols.append(jax.lax.slice(
                xp,
                (0, dy, dx, 0),
                (n, dy + (ho - 1) * stride + 1, dx + (wo - 1) * stride + 1, c),
                (1, stride, stride, 1)))
    patches = jnp.stack(cols, axis=3)                 # (n, ho, wo, 9, c)
    return patches.reshape(n, ho * wo, k * k * c), ho * wo


def init_torch_params(key, nc=3, img_size=32):
    """Random parameters in PyTorch's native layouts (OIHW conv, (out,in) linear)."""
    cfg = [(nc, 16, False), (16, 32, True), (32, 64, True), (64, 128, True)]
    blocks = []
    for cin, cout, bn in cfg:
        key, k1, k2, k3, k4, k5, k6 = jax.random.split(key, 7)
        blk = dict(
            w=0.1 * jax.random.normal(k1, (cout, cin, 3, 3), jnp.float32),
            b=0.1 * jax.random.normal(k2, (cout,), jnp.float32),
            bn=bn)
        if bn:
            blk.update(
                gamma=1.0 + 0.1 * jax.random.normal(k3, (cout,), jnp.float32),
                beta=0.1 * jax.random.normal(k4, (cout,), jnp.float32),
                mean=0.05 * jax.random.normal(k5, (cout,), jnp.float32),
                var=1.0 + 0.1 * jnp.abs(jax.random.normal(k6, (cout,), jnp.float32)))
        blocks.append(blk)
    ds = img_size // 2 ** 4
    key, k1, k2 = jax.random.split(key, 3)
    lin_w = 0.1 * jax.random.normal(k1, (1, 128 * ds * ds), jnp.float32)
    lin_b = 0.1 * jax.random.normal(k2, (1,), jnp.float32)
    return dict(blocks=blocks, lin_w=lin_w, lin_b=lin_b, ds=ds)


def convert_params(tp):
    """Torch layouts -> fused-kernel layouts (flat HWIO weights, selection mats, HWC head)."""
    blocks = tp["blocks"]
    ds = tp["ds"]
    sizes = [8 * ds, 4 * ds, 2 * ds, ds]              # spatial size after blocks 1..4

    # Block 1 (no BN): (9*nc, 16) weight, contraction padded to a multiple of 8.
    cin0 = blocks[0]["w"].shape[1]
    k_raw = 9 * cin0
    k_pad = ((k_raw + 7) // 8) * 8
    w1 = jnp.transpose(blocks[0]["w"], (2, 3, 1, 0)).reshape(k_raw, -1)
    w1 = jnp.pad(w1, ((0, k_pad - k_raw), (0, 0)))
    b1 = blocks[0]["b"].reshape(1, -1)

    # Blocks 2-4: per-tap weights (9, Cin, Cout), selection matrices, fused BN affine.
    layers = []
    for i, blk in enumerate(blocks[1:], start=1):
        cin, cout = blk["w"].shape[1], blk["w"].shape[0]
        hi, ho = sizes[i - 1], sizes[i]
        s = _make_selection(hi, hi, ho, ho)
        w = jnp.transpose(blk["w"], (2, 3, 1, 0)).reshape(9, cin, cout)
        scale = blk["gamma"] / jnp.sqrt(blk["var"] + _EPS)
        shift = blk["beta"] - blk["mean"] * scale
        bn = jnp.stack([blk["b"], scale, shift], axis=0)          # (3, Cout)
        layers.append((s, w, bn))

    # Head: fold torch's CHW flatten into the tiny weight (no activation transpose).
    wh = tp["lin_w"].reshape(128, ds * ds).T                       # (ds*ds, 128)
    bh = tp["lin_b"].reshape(1, 1)
    return dict(w1=w1, b1=b1, layers=layers, wh=wh, bh=bh)


# -----------------------------------------------------------------------------
# Forward pass: one pallas_call for the whole network
# -----------------------------------------------------------------------------
@jax.jit
def discriminator_forward(img, params):
    n = img.shape[0]
    x = jnp.transpose(img, (0, 2, 3, 1))              # NHWC: channels on lanes
    patches, hw1 = _im2col_nhwc(x)                    # tiny XLA prep on the input only
    k_pad = params["w1"].shape[0]
    k_raw = patches.shape[-1]
    if k_pad > k_raw:                                 # K = 27 -> 32 (8-aligned)
        patches = jnp.pad(patches, ((0, 0), (0, 0), (0, k_pad - k_raw)))

    (s2, w2, bn2), (s3, w3, bn3), (s4, w4, bn4) = params["layers"]
    consts = [params["w1"], params["b1"], s2, w2, bn2, s3, w3, bn3,
              s4, w4, bn4, params["wh"], params["bh"]]

    def resident(a):                                  # full array, VMEM-resident
        zeros = (0,) * a.ndim
        return pl.BlockSpec(a.shape, lambda i, z=zeros: z)

    out = pl.pallas_call(
        _disc_kernel,
        out_shape=jax.ShapeDtypeStruct((n, 1, 1), jnp.float32),
        grid=(n,),
        in_specs=[pl.BlockSpec((1, hw1, k_pad), lambda i: (i, 0, 0))]
                 + [resident(a) for a in consts],
        out_specs=pl.BlockSpec((1, 1, 1), lambda i: (i, 0, 0)),
        compiler_params=_COMPILER_PARAMS,
    )(patches, *consts)
    return out.reshape(n, 1)


# -----------------------------------------------------------------------------
# Pure-JAX reference in torch's own layouts (NCHW / OIHW / CHW-flatten)
# -----------------------------------------------------------------------------
def reference_forward(img, tp):
    x = img
    hi = jax.lax.Precision.HIGHEST
    for blk in tp["blocks"]:
        x = jax.lax.conv_general_dilated(
            x, blk["w"], window_strides=(2, 2), padding=((1, 1), (1, 1)),
            dimension_numbers=("NCHW", "OIHW", "NCHW"), precision=hi)
        x = x + blk["b"].reshape(1, -1, 1, 1)
        x = jnp.maximum(x, 0.2 * x)                       # LeakyReLU(0.2)
        if blk["bn"]:                                     # eval-mode BatchNorm2d
            scale = blk["gamma"] / jnp.sqrt(blk["var"] + _EPS)
            shift = blk["beta"] - blk["mean"] * scale
            x = x * scale.reshape(1, -1, 1, 1) + shift.reshape(1, -1, 1, 1)
    feat = x.reshape(x.shape[0], -1)                      # CHW flatten order
    logits = jnp.dot(feat, tp["lin_w"].T, precision=hi) + tp["lin_b"]
    return 1.0 / (1.0 + jnp.exp(-logits))


if __name__ == "__main__":
    key = jax.random.PRNGKey(0)
    key, kimg, kpar = jax.random.split(key, 3)

    # Module defaults: nc=3, img_size=32; small batch of 2 (NCHW).
    img = jax.random.normal(kimg, (2, 3, 32, 32), dtype=jnp.float32)
    torch_params = init_torch_params(kpar, nc=3, img_size=32)
    params = convert_params(torch_params)

    out = discriminator_forward(img, params)
    out = jax.block_until_ready(out)

    ref = reference_forward(img, torch_params)

    assert out.shape == (2, 1), out.shape
    assert out.dtype == jnp.float32
    assert bool(jnp.allclose(out, ref, atol=1e-3, rtol=1e-3)), (out, ref)

    print("KERNEL_OK")
</pallas_src>

<mosaic_0001>
module attributes {stable_mosaic.version = 11 : i64} {
  func.func @_disc_kernel(%arg0: i32, %arg1: memref<1x256x32xf32, #tpu.memory_space<vmem>>, %arg2: memref<32x16xf32, #tpu.memory_space<vmem>>, %arg3: memref<1x16xf32, #tpu.memory_space<vmem>>, %arg4: memref<9x64x256xf32, #tpu.memory_space<vmem>>, %arg5: memref<9x16x32xf32, #tpu.memory_space<vmem>>, %arg6: memref<3x32xf32, #tpu.memory_space<vmem>>, %arg7: memref<9x16x64xf32, #tpu.memory_space<vmem>>, %arg8: memref<9x32x64xf32, #tpu.memory_space<vmem>>, %arg9: memref<3x64xf32, #tpu.memory_space<vmem>>, %arg10: memref<9x4x16xf32, #tpu.memory_space<vmem>>, %arg11: memref<9x64x128xf32, #tpu.memory_space<vmem>>, %arg12: memref<3x128xf32, #tpu.memory_space<vmem>>, %arg13: memref<4x128xf32, #tpu.memory_space<vmem>>, %arg14: memref<1x1xf32, #tpu.memory_space<vmem>>, %arg15: memref<1x1x1xf32, #tpu.memory_space<vmem>>) attributes {dimension_semantics = [#tpu.dimension_semantics<parallel>], iteration_bounds = array<i64: 2>, scalar_prefetch = 0 : i64, scratch_operands = 0 : i64, tpu.core_type = #tpu.core_type<tc>, window_params = [{transform_indices = @transform_0, window_bounds = array<i64: 1, 256, 32>}, {pipeline_mode = #tpu.pipeline_mode<synchronous>, transform_indices = @transform_1, window_bounds = array<i64: 32, 16>}, {pipeline_mode = #tpu.pipeline_mode<synchronous>, transform_indices = @transform_2, window_bounds = array<i64: 1, 16>}, {pipeline_mode = #tpu.pipeline_mode<synchronous>, transform_indices = @transform_3, window_bounds = array<i64: 9, 64, 256>}, {pipeline_mode = #tpu.pipeline_mode<synchronous>, transform_indices = @transform_4, window_bounds = array<i64: 9, 16, 32>}, {pipeline_mode = #tpu.pipeline_mode<synchronous>, transform_indices = @transform_5, window_bounds = array<i64: 3, 32>}, {pipeline_mode = #tpu.pipeline_mode<synchronous>, transform_indices = @transform_6, window_bounds = array<i64: 9, 16, 64>}, {pipeline_mode = #tpu.pipeline_mode<synchronous>, transform_indices = @transform_7, window_bounds = array<i64: 9, 32, 64>}, {pipeline_mode = #tpu.pipeline_mode<synchronous>, transform_indices = @transform_8, window_bounds = array<i64: 3, 64>}, {pipeline_mode = #tpu.pipeline_mode<synchronous>, transform_indices = @transform_9, window_bounds = array<i64: 9, 4, 16>}, {pipeline_mode = #tpu.pipeline_mode<synchronous>, transform_indices = @transform_10, window_bounds = array<i64: 9, 64, 128>}, {pipeline_mode = #tpu.pipeline_mode<synchronous>, transform_indices = @transform_11, window_bounds = array<i64: 3, 128>}, {pipeline_mode = #tpu.pipeline_mode<synchronous>, transform_indices = @transform_12, window_bounds = array<i64: 4, 128>}, {pipeline_mode = #tpu.pipeline_mode<synchronous>, transform_indices = @transform_13, window_bounds = array<i64: 1, 1>}, {transform_indices = @transform_14, window_bounds = array<i64: 1, 1, 1>}]} {
    %c0 = arith.constant 0 : index
    %c0_0 = arith.constant 0 : index
    %c0_1 = arith.constant 0 : index
    %0 = vector.load %arg1[%c0, %c0_0, %c0_1] : memref<1x256x32xf32, #tpu.memory_space<vmem>>, vector<1x256x32xf32>
    %1 = vector.shape_cast %0 : vector<1x256x32xf32> to vector<256x32xf32>
    %c0_2 = arith.constant 0 : index
    %c0_3 = arith.constant 0 : index
    %2 = vector.load %arg2[%c0_2, %c0_3] : memref<32x16xf32, #tpu.memory_space<vmem>>, vector<32x16xf32>
    %cst = arith.constant dense<0.000000e+00> : vector<256x16xf32>
    %3 = tpu.matmul %1, %2, %cst {dimension_numbers = #tpu.dot_dimension_numbers<[1], [0], [0], [1], [0, 0, 1, 1], [], []>} : vector<256x32xf32>, vector<32x16xf32>, vector<256x16xf32> -> vector<256x16xf32>
    %c0_4 = arith.constant 0 : index
    %c0_5 = arith.constant 0 : index
    %4 = vector.load %arg3[%c0_4, %c0_5] : memref<1x16xf32, #tpu.memory_space<vmem>>, vector<1x16xf32>
    %5 = vector.broadcast %4 : vector<1x16xf32> to vector<256x16xf32>
    %6 = arith.addf %3, %5 : vector<256x16xf32>
    %cst_6 = arith.constant 2.000000e-01 : f32
    %7 = vector.broadcast %cst_6 : f32 to vector<256x16xf32>
    %8 = arith.mulf %7, %6 : vector<256x16xf32>
    %9 = arith.maximumf %6, %8 : vector<256x16xf32>
    %cst_7 = arith.constant 0.000000e+00 : f32
    %10 = vector.broadcast %cst_7 : f32 to vector<64x32xf32>
    %c0_8 = arith.constant 0 : index
    %c0_9 = arith.constant 0 : index
    %c0_10 = arith.constant 0 : index
    %11 = vector.load %arg4[%c0_8, %c0_9, %c0_10] : memref<9x64x256xf32, #tpu.memory_space<vmem>>, vector<1x64x256xf32>
    %12 = vector.shape_cast %11 : vector<1x64x256xf32> to vector<64x256xf32>
    %cst_11 = arith.constant dense<0.000000e+00> : vector<64x16xf32>
    %13 = tpu.matmul %12, %9, %cst_11 {dimension_numbers = #tpu.dot_dimension_numbers<[1], [0], [0], [1], [0, 0, 1, 1], [], []>} : vector<64x256xf32>, vector<256x16xf32>, vector<64x16xf32> -> vector<64x16xf32>
    %c0_12 = arith.constant 0 : index
    %c0_13 = arith.constant 0 : index
    %c0_14 = arith.constant 0 : index
    %14 = vector.load %arg5[%c0_12, %c0_13, %c0_14] : memref<9x16x32xf32, #tpu.memory_space<vmem>>, vector<1x16x32xf32>
    %15 = vector.shape_cast %14 : vector<1x16x32xf32> to vector<16x32xf32>
    %cst_15 = arith.constant dense<0.000000e+00> : vector<64x32xf32>
    %16 = tpu.matmul %13, %15, %cst_15 {dimension_numbers = #tpu.dot_dimension_numbers<[1], [0], [0], [1], [0, 0, 1, 1], [], []>} : vector<64x16xf32>, vector<16x32xf32>, vector<64x32xf32> -> vector<64x32xf32>
    %17 = arith.addf %10, %16 : vector<64x32xf32>
    %c1 = arith.constant 1 : index
    %c0_16 = arith.constant 0 : index
    %c0_17 = arith.constant 0 : index
    %18 = vector.load %arg4[%c1, %c0_16, %c0_17] : memref<9x64x256xf32, #tpu.memory_space<vmem>>, vector<1x64x256xf32>
    %19 = vector.shape_cast %18 : vector<1x64x256xf32> to vector<64x256xf32>
    %cst_18 = arith.constant dense<0.000000e+00> : vector<64x16xf32>
    %20 = tpu.matmul %19, %9, %cst_18 {dimension_numbers = #tpu.dot_dimension_numbers<[1], [0], [0], [1], [0, 0, 1, 1], [], []>} : vector<64x256xf32>, vector<256x16xf32>, vector<64x16xf32> -> vector<64x16xf32>
    %c1_19 = arith.constant 1 : index
    %c0_20 = arith.constant 0 : index
    %c0_21 = arith.constant 0 : index
    %21 = vector.load %arg5[%c1_19, %c0_20, %c0_21] : memref<9x16x32xf32, #tpu.memory_space<vmem>>, vector<1x16x32xf32>
    %22 = vector.shape_cast %21 : vector<1x16x32xf32> to vector<16x32xf32>
    %cst_22 = arith.constant dense<0.000000e+00> : vector<64x32xf32>
    %23 = tpu.matmul %20, %22, %cst_22 {dimension_numbers = #tpu.dot_dimension_numbers<[1], [0], [0], [1], [0, 0, 1, 1], [], []>} : vector<64x16xf32>, vector<16x32xf32>, vector<64x32xf32> -> vector<64x32xf32>
    %24 = arith.addf %17, %23 : vector<64x32xf32>
    %c2 = arith.constant 2 : index
    %c0_23 = arith.constant 0 : index
    %c0_24 = arith.constant 0 : index
    %25 = vector.load %arg4[%c2, %c0_23, %c0_24] : memref<9x64x256xf32, #tpu.memory_space<vmem>>, vector<1x64x256xf32>
    %26 = vector.shape_cast %25 : vector<1x64x256xf32> to vector<64x256xf32>
    %cst_25 = arith.constant dense<0.000000e+00> : vector<64x16xf32>
    %27 = tpu.matmul %26, %9, %cst_25 {dimension_numbers = #tpu.dot_dimension_numbers<[1], [0], [0], [1], [0, 0, 1, 1], [], []>} : vector<64x256xf32>, vector<256x16xf32>, vector<64x16xf32> -> vector<64x16xf32>
    %c2_26 = arith.constant 2 : index
    %c0_27 = arith.constant 0 : index
    %c0_28 = arith.constant 0 : index
    %28 = vector.load %arg5[%c2_26, %c0_27, %c0_28] : memref<9x16x32xf32, #tpu.memory_space<vmem>>, vector<1x16x32xf32>
    %29 = vector.shape_cast %28 : vector<1x16x32xf32> to vector<16x32xf32>
    %cst_29 = arith.constant dense<0.000000e+00> : vector<64x32xf32>
    %30 = tpu.matmul %27, %29, %cst_29 {dimension_numbers = #tpu.dot_dimension_numbers<[1], [0], [0], [1], [0, 0, 1, 1], [], []>} : vector<64x16xf32>, vector<16x32xf32>, vector<64x32xf32> -> vector<64x32xf32>
    %31 = arith.addf %24, %30 : vector<64x32xf32>
    %c3 = arith.constant 3 : index
    %c0_30 = arith.constant 0 : index
    %c0_31 = arith.constant 0 : index
    %32 = vector.load %arg4[%c3, %c0_30, %c0_31] : memref<9x64x256xf32, #tpu.memory_space<vmem>>, vector<1x64x256xf32>
    %33 = vector.shape_cast %32 : vector<1x64x256xf32> to vector<64x256xf32>
    %cst_32 = arith.constant dense<0.000000e+00> : vector<64x16xf32>
    %34 = tpu.matmul %33, %9, %cst_32 {dimension_numbers = #tpu.dot_dimension_numbers<[1], [0], [0], [1], [0, 0, 1, 1], [], []>} : vector<64x256xf32>, vector<256x16xf32>, vector<64x16xf32> -> vector<64x16xf32>
    %c3_33 = arith.constant 3 : index
    %c0_34 = arith.constant 0 : index
    %c0_35 = arith.constant 0 : index
    %35 = vector.load %arg5[%c3_33, %c0_34, %c0_35] : memref<9x16x32xf32, #tpu.memory_space<vmem>>, vector<1x16x32xf32>
    %36 = vector.shape_cast %35 : vector<1x16x32xf32> to vector<16x32xf32>
    %cst_36 = arith.constant dense<0.000000e+00> : vector<64x32xf32>
    %37 = tpu.matmul %34, %36, %cst_36 {dimension_numbers = #tpu.dot_dimension_numbers<[1], [0], [0], [1], [0, 0, 1, 1], [], []>} : vector<64x16xf32>, vector<16x32xf32>, vector<64x32xf32> -> vector<64x32xf32>
    %38 = arith.addf %31, %37 : vector<64x32xf32>
    %c4 = arith.constant 4 : index
    %c0_37 = arith.constant 0 : index
    %c0_38 = arith.constant 0 : index
    %39 = vector.load %arg4[%c4, %c0_37, %c0_38] : memref<9x64x256xf32, #tpu.memory_space<vmem>>, vector<1x64x256xf32>
    %40 = vector.shape_cast %39 : vector<1x64x256xf32> to vector<64x256xf32>
    %cst_39 = arith.constant dense<0.000000e+00> : vector<64x16xf32>
    %41 = tpu.matmul %40, %9, %cst_39 {dimension_numbers = #tpu.dot_dimension_numbers<[1], [0], [0], [1], [0, 0, 1, 1], [], []>} : vector<64x256xf32>, vector<256x16xf32>, vector<64x16xf32> -> vector<64x16xf32>
    %c4_40 = arith.constant 4 : index
    %c0_41 = arith.constant 0 : index
    %c0_42 = arith.constant 0 : index
    %42 = vector.load %arg5[%c4_40, %c0_41, %c0_42] : memref<9x16x32xf32, #tpu.memory_space<vmem>>, vector<1x16x32xf32>
    %43 = vector.shape_cast %42 : vector<1x16x32xf32> to vector<16x32xf32>
    %cst_43 = arith.constant dense<0.000000e+00> : vector<64x32xf32>
    %44 = tpu.matmul %41, %43, %cst_43 {dimension_numbers = #tpu.dot_dimension_numbers<[1], [0], [0], [1], [0, 0, 1, 1], [], []>} : vector<64x16xf32>, vector<16x32xf32>, vector<64x32xf32> -> vector<64x32xf32>
    %45 = arith.addf %38, %44 : vector<64x32xf32>
    %c5 = arith.constant 5 : index
    %c0_44 = arith.constant 0 : index
    %c0_45 = arith.constant 0 : index
    %46 = vector.load %arg4[%c5, %c0_44, %c0_45] : memref<9x64x256xf32, #tpu.memory_space<vmem>>, vector<1x64x256xf32>
    %47 = vector.shape_cast %46 : vector<1x64x256xf32> to vector<64x256xf32>
    %cst_46 = arith.constant dense<0.000000e+00> : vector<64x16xf32>
    %48 = tpu.matmul %47, %9, %cst_46 {dimension_numbers = #tpu.dot_dimension_numbers<[1], [0], [0], [1], [0, 0, 1, 1], [], []>} : vector<64x256xf32>, vector<256x16xf32>, vector<64x16xf32> -> vector<64x16xf32>
    %c5_47 = arith.constant 5 : index
    %c0_48 = arith.constant 0 : index
    %c0_49 = arith.constant 0 : index
    %49 = vector.load %arg5[%c5_47, %c0_48, %c0_49] : memref<9x16x32xf32, #tpu.memory_space<vmem>>, vector<1x16x32xf32>
    %50 = vector.shape_cast %49 : vector<1x16x32xf32> to vector<16x32xf32>
    %cst_50 = arith.constant dense<0.000000e+00> : vector<64x32xf32>
    %51 = tpu.matmul %48, %50, %cst_50 {dimension_numbers = #tpu.dot_dimension_numbers<[1], [0], [0], [1], [0, 0, 1, 1], [], []>} : vector<64x16xf32>, vector<16x32xf32>, vector<64x32xf32> -> vector<64x32xf32>
    %52 = arith.addf %45, %51 : vector<64x32xf32>
    %c6 = arith.constant 6 : index
    %c0_51 = arith.constant 0 : index
    %c0_52 = arith.constant 0 : index
    %53 = vector.load %arg4[%c6, %c0_51, %c0_52] : memref<9x64x256xf32, #tpu.memory_space<vmem>>, vector<1x64x256xf32>
    %54 = vector.shape_cast %53 : vector<1x64x256xf32> to vector<64x256xf32>
    %cst_53 = arith.constant dense<0.000000e+00> : vector<64x16xf32>
    %55 = tpu.matmul %54, %9, %cst_53 {dimension_numbers = #tpu.dot_dimension_numbers<[1], [0], [0], [1], [0, 0, 1, 1], [], []>} : vector<64x256xf32>, vector<256x16xf32>, vector<64x16xf32> -> vector<64x16xf32>
    %c6_54 = arith.constant 6 : index
    %c0_55 = arith.constant 0 : index
    %c0_56 = arith.constant 0 : index
    %56 = vector.load %arg5[%c6_54, %c0_55, %c0_56] : memref<9x16x32xf32, #tpu.memory_space<vmem>>, vector<1x16x32xf32>
    %57 = vector.shape_cast %56 : vector<1x16x32xf32> to vector<16x32xf32>
    %cst_57 = arith.constant dense<0.000000e+00> : vector<64x32xf32>
    %58 = tpu.matmul %55, %57, %cst_57 {dimension_numbers = #tpu.dot_dimension_numbers<[1], [0], [0], [1], [0, 0, 1, 1], [], []>} : vector<64x16xf32>, vector<16x32xf32>, vector<64x32xf32> -> vector<64x32xf32>
    %59 = arith.addf %52, %58 : vector<64x32xf32>
    %c7 = arith.constant 7 : index
    %c0_58 = arith.constant 0 : index
    %c0_59 = arith.constant 0 : index
    %60 = vector.load %arg4[%c7, %c0_58, %c0_59] : memref<9x64x256xf32, #tpu.memory_space<vmem>>, vector<1x64x256xf32>
    %61 = vector.shape_cast %60 : vector<1x64x256xf32> to vector<64x256xf32>
    %cst_60 = arith.constant dense<0.000000e+00> : vector<64x16xf32>
    %62 = tpu.matmul %61, %9, %cst_60 {dimension_numbers = #tpu.dot_dimension_numbers<[1], [0], [0], [1], [0, 0, 1, 1], [], []>} : vector<64x256xf32>, vector<256x16xf32>, vector<64x16xf32> -> vector<64x16xf32>
    %c7_61 = arith.constant 7 : index
    %c0_62 = arith.constant 0 : index
    %c0_63 = arith.constant 0 : index
    %63 = vector.load %arg5[%c7_61, %c0_62, %c0_63] : memref<9x16x32xf32, #tpu.memory_space<vmem>>, vector<1x16x32xf32>
    %64 = vector.shape_cast %63 : vector<1x16x32xf32> to vector<16x32xf32>
    %cst_64 = arith.constant dense<0.000000e+00> : vector<64x32xf32>
    %65 = tpu.matmul %62, %64, %cst_64 {dimension_numbers = #tpu.dot_dimension_numbers<[1], [0], [0], [1], [0, 0, 1, 1], [], []>} : vector<64x16xf32>, vector<16x32xf32>, vector<64x32xf32> -> vector<64x32xf32>
    %66 = arith.addf %59, %65 : vector<64x32xf32>
    %c8 = arith.constant 8 : index
    %c0_65 = arith.constant 0 : index
    %c0_66 = arith.constant 0 : index
    %67 = vector.load %arg4[%c8, %c0_65, %c0_66] : memref<9x64x256xf32, #tpu.memory_space<vmem>>, vector<1x64x256xf32>
    %68 = vector.shape_cast %67 : vector<1x64x256xf32> to vector<64x256xf32>
    %cst_67 = arith.constant dense<0.000000e+00> : vector<64x16xf32>
    %69 = tpu.matmul %68, %9, %cst_67 {dimension_numbers = #tpu.dot_dimension_numbers<[1], [0], [0], [1], [0, 0, 1, 1], [], []>} : vector<64x256xf32>, vector<256x16xf32>, vector<64x16xf32> -> vector<64x16xf32>
    %c8_68 = arith.constant 8 : index
    %c0_69 = arith.constant 0 : index
    %c0_70 = arith.constant 0 : index
    %70 = vector.load %arg5[%c8_68, %c0_69, %c0_70] : memref<9x16x32xf32, #tpu.memory_space<vmem>>, vector<1x16x32xf32>
    %71 = vector.shape_cast %70 : vector<1x16x32xf32> to vector<16x32xf32>
    %cst_71 = arith.constant dense<0.000000e+00> : vector<64x32xf32>
    %72 = tpu.matmul %69, %71, %cst_71 {dimension_numbers = #tpu.dot_dimension_numbers<[1], [0], [0], [1], [0, 0, 1, 1], [], []>} : vector<64x16xf32>, vector<16x32xf32>, vector<64x32xf32> -> vector<64x32xf32>
    %73 = arith.addf %66, %72 : vector<64x32xf32>
    %c0_72 = arith.constant 0 : index
    %c0_73 = arith.constant 0 : index
    %74 = vector.load %arg6[%c0_72, %c0_73] : memref<3x32xf32, #tpu.memory_space<vmem>>, vector<1x32xf32>
    %75 = vector.broadcast %74 : vector<1x32xf32> to vector<64x32xf32>
    %76 = arith.addf %73, %75 : vector<64x32xf32>
    %cst_74 = arith.constant 2.000000e-01 : f32
    %77 = vector.broadcast %cst_74 : f32 to vector<64x32xf32>
    %78 = arith.mulf %77, %76 : vector<64x32xf32>
    %79 = arith.maximumf %76, %78 : vector<64x32xf32>
    %c1_75 = arith.constant 1 : index
    %c0_76 = arith.constant 0 : index
    %80 = vector.load %arg6[%c1_75, %c0_76] : memref<3x32xf32, #tpu.memory_space<vmem>>, vector<1x32xf32>
    %81 = vector.broadcast %80 : vector<1x32xf32> to vector<64x32xf32>
    %82 = arith.mulf %79, %81 : vector<64x32xf32>
    %c2_77 = arith.constant 2 : index
    %c0_78 = arith.constant 0 : index
    %83 = vector.load %arg6[%c2_77, %c0_78] : memref<3x32xf32, #tpu.memory_space<vmem>>, vector<1x32xf32>
    %84 = vector.broadcast %83 : vector<1x32xf32> to vector<64x32xf32>
    %85 = arith.addf %82, %84 : vector<64x32xf32>
    %cst_79 = arith.constant 0.000000e+00 : f32
    %86 = vector.broadcast %cst_79 : f32 to vector<16x64xf32>
    %c0_80 = arith.constant 0 : index
    %c0_81 = arith.constant 0 : index
    %c0_82 = arith.constant 0 : index
    %87 = vector.load %arg7[%c0_80, %c0_81, %c0_82] : memref<9x16x64xf32, #tpu.memory_space<vmem>>, vector<1x16x64xf32>
    %88 = vector.shape_cast %87 : vector<1x16x64xf32> to vector<16x64xf32>
    %cst_83 = arith.constant dense<0.000000e+00> : vector<16x32xf32>
    %89 = tpu.matmul %88, %85, %cst_83 {dimension_numbers = #tpu.dot_dimension_numbers<[1], [0], [0], [1], [0, 0, 1, 1], [], []>} : vector<16x64xf32>, vector<64x32xf32>, vector<16x32xf32> -> vector<16x32xf32>
    %c0_84 = arith.constant 0 : index
    %c0_85 = arith.constant 0 : index
    %c0_86 = arith.constant 0 : index
    %90 = vector.load %arg8[%c0_84, %c0_85, %c0_86] : memref<9x32x64xf32, #tpu.memory_space<vmem>>, vector<1x32x64xf32>
    %91 = vector.shape_cast %90 : vector<1x32x64xf32> to vector<32x64xf32>
    %cst_87 = arith.constant dense<0.000000e+00> : vector<16x64xf32>
    %92 = tpu.matmul %89, %91, %cst_87 {dimension_numbers = #tpu.dot_dimension_numbers<[1], [0], [0], [1], [0, 0, 1, 1], [], []>} : vector<16x32xf32>, vector<32x64xf32>, vector<16x64xf32> -> vector<16x64xf32>
    %93 = arith.addf %86, %92 : vector<16x64xf32>
    %c1_88 = arith.constant 1 : index
    %c0_89 = arith.constant 0 : index
    %c0_90 = arith.constant 0 : index
    %94 = vector.load %arg7[%c1_88, %c0_89, %c0_90] : memref<9x16x64xf32, #tpu.memory_space<vmem>>, vector<1x16x64xf32>
    %95 = vector.shape_cast %94 : vector<1x16x64xf32> to vector<16x64xf32>
    %cst_91 = arith.constant dense<0.000000e+00> : vector<16x32xf32>
    %96 = tpu.matmul %95, %85, %cst_91 {dimension_numbers = #tpu.dot_dimension_numbers<[1], [0], [0], [1], [0, 0, 1, 1], [], []>} : vector<16x64xf32>, vector<64x32xf32>, vector<16x32xf32> -> vector<16x32xf32>
    %c1_92 = arith.constant 1 : index
    %c0_93 = arith.constant 0 : index
    %c0_94 = arith.constant 0 : index
    %97 = vector.load %arg8[%c1_92, %c0_93, %c0_94] : memref<9x32x64xf32, #tpu.memory_space<vmem>>, vector<1x32x64xf32>
    %98 = vector.shape_cast %97 : vector<1x32x64xf32> to vector<32x64xf32>
    %cst_95 = arith.constant dense<0.000000e+00> : vector<16x64xf32>
    %99 = tpu.matmul %96, %98, %cst_95 {dimension_numbers = #tpu.dot_dimension_numbers<[1], [0], [0], [1], [0, 0, 1, 1], [], []>} : vector<16x32xf32>, vector<32x64xf32>, vector<16x64xf32> -> vector<16x64xf32>
    %100 = arith.addf %93, %99 : vector<16x64xf32>
    %c2_96 = arith.constant 2 : index
    %c0_97 = arith.constant 0 : index
    %c0_98 = arith.constant 0 : index
    %101 = vector.load %arg7[%c2_96, %c0_97, %c0_98] : memref<9x16x64xf32, #tpu.memory_space<vmem>>, vector<1x16x64xf32>
    %102 = vector.shape_cast %101 : vector<1x16x64xf32> to vector<16x64xf32>
    %cst_99 = arith.constant dense<0.000000e+00> : vector<16x32xf32>
    %103 = tpu.matmul %102, %85, %cst_99 {dimension_numbers = #tpu.dot_dimension_numbers<[1], [0], [0], [1], [0, 0, 1, 1], [], []>} : vector<16x64xf32>, vector<64x32xf32>, vector<16x32xf32> -> vector<16x32xf32>
    %c2_100 = arith.constant 2 : index
    %c0_101 = arith.constant 0 : index
    %c0_102 = arith.constant 0 : index
    %104 = vector.load %arg8[%c2_100, %c0_101, %c0_102] : memref<9x32x64xf32, #tpu.memory_space<vmem>>, vector<1x32x64xf32>
    %105 = vector.shape_cast %104 : vector<1x32x64xf32> to vector<32x64xf32>
    %cst_103 = arith.constant dense<0.000000e+00> : vector<16x64xf32>
    %106 = tpu.matmul %103, %105, %cst_103 {dimension_numbers = #tpu.dot_dimension_numbers<[1], [0], [0], [1], [0, 0, 1, 1], [], []>} : vector<16x32xf32>, vector<32x64xf32>, vector<16x64xf32> -> vector<16x64xf32>
    %107 = arith.addf %100, %106 : vector<16x64xf32>
    %c3_104 = arith.constant 3 : index
    %c0_105 = arith.constant 0 : index
    %c0_106 = arith.constant 0 : index
    %108 = vector.load %arg7[%c3_104, %c0_105, %c0_106] : memref<9x16x64xf32, #tpu.memory_space<vmem>>, vector<1x16x64xf32>
    %109 = vector.shape_cast %108 : vector<1x16x64xf32> to vector<16x64xf32>
    %cst_107 = arith.constant dense<0.000000e+00> : vector<16x32xf32>
    %110 = tpu.matmul %109, %85, %cst_107 {dimension_numbers = #tpu.dot_dimension_numbers<[1], [0], [0], [1], [0, 0, 1, 1], [], []>} : vector<16x64xf32>, vector<64x32xf32>, vector<16x32xf32> -> vector<16x32xf32>
    %c3_108 = arith.constant 3 : index
    %c0_109 = arith.constant 0 : index
    %c0_110 = arith.constant 0 : index
    %111 = vector.load %arg8[%c3_108, %c0_109, %c0_110] : memref<9x32x64xf32, #tpu.memory_space<vmem>>, vector<1x32x64xf32>
    %112 = vector.shape_cast %111 : vector<1x32x64xf32> to vector<32x64xf32>
    %cst_111 = arith.constant dense<0.000000e+00> : vector<16x64xf32>
    %113 = tpu.matmul %110, %112, %cst_111 {dimension_numbers = #tpu.dot_dimension_numbers<[1], [0], [0], [1], [0, 0, 1, 1], [], []>} : vector<16x32xf32>, vector<32x64xf32>, vector<16x64xf32> -> vector<16x64xf32>
    %114 = arith.addf %107, %113 : vector<16x64xf32>
    %c4_112 = arith.constant 4 : index
    %c0_113 = arith.constant 0 : index
    %c0_114 = arith.constant 0 : index
    %115 = vector.load %arg7[%c4_112, %c0_113, %c0_114] : memref<9x16x64xf32, #tpu.memory_space<vmem>>, vector<1x16x64xf32>
    %116 = vector.shape_cast %115 : vector<1x16x64xf32> to vector<16x64xf32>
    %cst_115 = arith.constant dense<0.000000e+00> : vector<16x32xf32>
    %117 = tpu.matmul %116, %85, %cst_115 {dimension_numbers = #tpu.dot_dimension_numbers<[1], [0], [0], [1], [0, 0, 1, 1], [], []>} : vector<16x64xf32>, vector<64x32xf32>, vector<16x32xf32> -> vector<16x32xf32>
    %c4_116 = arith.constant 4 : index
    %c0_117 = arith.constant 0 : index
    %c0_118 = arith.constant 0 : index
    %118 = vector.load %arg8[%c4_116, %c0_117, %c0_118] : memref<9x32x64xf32, #tpu.memory_space<vmem>>, vector<1x32x64xf32>
    %119 = vector.shape_cast %118 : vector<1x32x64xf32> to vector<32x64xf32>
    %cst_119 = arith.constant dense<0.000000e+00> : vector<16x64xf32>
    %120 = tpu.matmul %117, %119, %cst_119 {dimension_numbers = #tpu.dot_dimension_numbers<[1], [0], [0], [1], [0, 0, 1, 1], [], []>} : vector<16x32xf32>, vector<32x64xf32>, vector<16x64xf32> -> vector<16x64xf32>
    %121 = arith.addf %114, %120 : vector<16x64xf32>
    %c5_120 = arith.constant 5 : index
    %c0_121 = arith.constant 0 : index
    %c0_122 = arith.constant 0 : index
    %122 = vector.load %arg7[%c5_120, %c0_121, %c0_122] : memref<9x16x64xf32, #tpu.memory_space<vmem>>, vector<1x16x64xf32>
    %123 = vector.shape_cast %122 : vector<1x16x64xf32> to vector<16x64xf32>
    %cst_123 = arith.constant dense<0.000000e+00> : vector<16x32xf32>
    %124 = tpu.matmul %123, %85, %cst_123 {dimension_numbers = #tpu.dot_dimension_numbers<[1], [0], [0], [1], [0, 0, 1, 1], [], []>} : vector<16x64xf32>, vector<64x32xf32>, vector<16x32xf32> -> vector<16x32xf32>
    %c5_124 = arith.constant 5 : index
    %c0_125 = arith.constant 0 : index
    %c0_126 = arith.constant 0 : index
    %125 = vector.load %arg8[%c5_124, %c0_125, %c0_126] : memref<9x32x64xf32, #tpu.memory_space<vmem>>, vector<1x32x64xf32>
    %126 = vector.shape_cast %125 : vector<1x32x64xf32> to vector<32x64xf32>
    %cst_127 = arith.constant dense<0.000000e+00> : vector<16x64xf32>
    %127 = tpu.matmul %124, %126, %cst_127 {dimension_numbers = #tpu.dot_dimension_numbers<[1], [0], [0], [1], [0, 0, 1, 1], [], []>} : vector<16x32xf32>, vector<32x64xf32>, vector<16x64xf32> -> vector<16x64xf32>
    %128 = arith.addf %121, %127 : vector<16x64xf32>
    %c6_128 = arith.constant 6 : index
    %c0_129 = arith.constant 0 : index
    %c0_130 = arith.constant 0 : index
    %129 = vector.load %arg7[%c6_128, %c0_129, %c0_130] : memref<9x16x64xf32, #tpu.memory_space<vmem>>, vector<1x16x64xf32>
    %130 = vector.shape_cast %129 : vector<1x16x64xf32> to vector<16x64xf32>
    %cst_131 = arith.constant dense<0.000000e+00> : vector<16x32xf32>
    %131 = tpu.matmul %130, %85, %cst_131 {dimension_numbers = #tpu.dot_dimension_numbers<[1], [0], [0], [1], [0, 0, 1, 1], [], []>} : vector<16x64xf32>, vector<64x32xf32>, vector<16x32xf32> -> vector<16x32xf32>
    %c6_132 = arith.constant 6 : index
    %c0_133 = arith.constant 0 : index
    %c0_134 = arith.constant 0 : index
    %132 = vector.load %arg8[%c6_132, %c0_133, %c0_134] : memref<9x32x64xf32, #tpu.memory_space<vmem>>, vector<1x32x64xf32>
    %133 = vector.shape_cast %132 : vector<1x32x64xf32> to vector<32x64xf32>
    %cst_135 = arith.constant dense<0.000000e+00> : vector<16x64xf32>
    %134 = tpu.matmul %131, %133, %cst_135 {dimension_numbers = #tpu.dot_dimension_numbers<[1], [0], [0], [1], [0, 0, 1, 1], [], []>} : vector<16x32xf32>, vector<32x64xf32>, vector<16x64xf32> -> vector<16x64xf32>
    %135 = arith.addf %128, %134 : vector<16x64xf32>
    %c7_136 = arith.constant 7 : index
    %c0_137 = arith.constant 0 : index
    %c0_138 = arith.constant 0 : index
    %136 = vector.load %arg7[%c7_136, %c0_137, %c0_138] : memref<9x16x64xf32, #tpu.memory_space<vmem>>, vector<1x16x64xf32>
    %137 = vector.shape_cast %136 : vector<1x16x64xf32> to vector<16x64xf32>
    %cst_139 = arith.constant dense<0.000000e+00> : vector<16x32xf32>
    %138 = tpu.matmul %137, %85, %cst_139 {dimension_numbers = #tpu.dot_dimension_numbers<[1], [0], [0], [1], [0, 0, 1, 1], [], []>} : vector<16x64xf32>, vector<64x32xf32>, vector<16x32xf32> -> vector<16x32xf32>
    %c7_140 = arith.constant 7 : index
    %c0_141 = arith.constant 0 : index
    %c0_142 = arith.constant 0 : index
    %139 = vector.load %arg8[%c7_140, %c0_141, %c0_142] : memref<9x32x64xf32, #tpu.memory_space<vmem>>, vector<1x32x64xf32>
    %140 = vector.shape_cast %139 : vector<1x32x64xf32> to vector<32x64xf32>
    %cst_143 = arith.constant dense<0.000000e+00> : vector<16x64xf32>
    %141 = tpu.matmul %138, %140, %cst_143 {dimension_numbers = #tpu.dot_dimension_numbers<[1], [0], [0], [1], [0, 0, 1, 1], [], []>} : vector<16x32xf32>, vector<32x64xf32>, vector<16x64xf32> -> vector<16x64xf32>
    %142 = arith.addf %135, %141 : vector<16x64xf32>
    %c8_144 = arith.constant 8 : index
    %c0_145 = arith.constant 0 : index
    %c0_146 = arith.constant 0 : index
    %143 = vector.load %arg7[%c8_144, %c0_145, %c0_146] : memref<9x16x64xf32, #tpu.memory_space<vmem>>, vector<1x16x64xf32>
    %144 = vector.shape_cast %143 : vector<1x16x64xf32> to vector<16x64xf32>
    %cst_147 = arith.constant dense<0.000000e+00> : vector<16x32xf32>
    %145 = tpu.matmul %144, %85, %cst_147 {dimension_numbers = #tpu.dot_dimension_numbers<[1], [0], [0], [1], [0, 0, 1, 1], [], []>} : vector<16x64xf32>, vector<64x32xf32>, vector<16x32xf32> -> vector<16x32xf32>
    %c8_148 = arith.constant 8 : index
    %c0_149 = arith.constant 0 : index
    %c0_150 = arith.constant 0 : index
    %146 = vector.load %arg8[%c8_148, %c0_149, %c0_150] : memref<9x32x64xf32, #tpu.memory_space<vmem>>, vector<1x32x64xf32>
    %147 = vector.shape_cast %146 : vector<1x32x64xf32> to vector<32x64xf32>
    %cst_151 = arith.constant dense<0.000000e+00> : vector<16x64xf32>
    %148 = tpu.matmul %145, %147, %cst_151 {dimension_numbers = #tpu.dot_dimension_numbers<[1], [0], [0], [1], [0, 0, 1, 1], [], []>} : vector<16x32xf32>, vector<32x64xf32>, vector<16x64xf32> -> vector<16x64xf32>
    %149 = arith.addf %142, %148 : vector<16x64xf32>
    %c0_152 = arith.constant 0 : index
    %c0_153 = arith.constant 0 : index
    %150 = vector.load %arg9[%c0_152, %c0_153] : memref<3x64xf32, #tpu.memory_space<vmem>>, vector<1x64xf32>
    %151 = vector.broadcast %150 : vector<1x64xf32> to vector<16x64xf32>
    %152 = arith.addf %149, %151 : vector<16x64xf32>
    %cst_154 = arith.constant 2.000000e-01 : f32
    %153 = vector.broadcast %cst_154 : f32 to vector<16x64xf32>
    %154 = arith.mulf %153, %152 : vector<16x64xf32>
    %155 = arith.maximumf %152, %154 : vector<16x64xf32>
    %c1_155 = arith.constant 1 : index
    %c0_156 = arith.constant 0 : index
    %156 = vector.load %arg9[%c1_155, %c0_156] : memref<3x64xf32, #tpu.memory_space<vmem>>, vector<1x64xf32>
    %157 = vector.broadcast %156 : vector<1x64xf32> to vector<16x64xf32>
    %158 = arith.mulf %155, %157 : vector<16x64xf32>
    %c2_157 = arith.constant 2 : index
    %c0_158 = arith.constant 0 : index
    %159 = vector.load %arg9[%c2_157, %c0_158] : memref<3x64xf32, #tpu.memory_space<vmem>>, vector<1x64xf32>
    %160 = vector.broadcast %159 : vector<1x64xf32> to vector<16x64xf32>
    %161 = arith.addf %158, %160 : vector<16x64xf32>
    %cst_159 = arith.constant 0.000000e+00 : f32
    %162 = vector.broadcast %cst_159 : f32 to vector<4x128xf32>
    %c0_160 = arith.constant 0 : index
    %c0_161 = arith.constant 0 : index
    %c0_162 = arith.constant 0 : index
    %163 = vector.load %arg10[%c0_160, %c0_161, %c0_162] : memref<9x4x16xf32, #tpu.memory_space<vmem>>, vector<1x4x16xf32>
    %164 = vector.shape_cast %163 : vector<1x4x16xf32> to vector<4x16xf32>
    %cst_163 = arith.constant dense<0.000000e+00> : vector<4x64xf32>
    %165 = tpu.matmul %164, %161, %cst_163 {dimension_numbers = #tpu.dot_dimension_numbers<[1], [0], [0], [1], [0, 0, 1, 1], [], []>} : vector<4x16xf32>, vector<16x64xf32>, vector<4x64xf32> -> vector<4x64xf32>
    %c0_164 = arith.constant 0 : index
    %c0_165 = arith.constant 0 : index
    %c0_166 = arith.constant 0 : index
    %166 = vector.load %arg11[%c0_164, %c0_165, %c0_166] : memref<9x64x128xf32, #tpu.memory_space<vmem>>, vector<1x64x128xf32>
    %167 = vector.shape_cast %166 : vector<1x64x128xf32> to vector<64x128xf32>
    %cst_167 = arith.constant dense<0.000000e+00> : vector<4x128xf32>
    %168 = tpu.matmul %165, %167, %cst_167 {dimension_numbers = #tpu.dot_dimension_numbers<[1], [0], [0], [1], [0, 0, 1, 1], [], []>} : vector<4x64xf32>, vector<64x128xf32>, vector<4x128xf32> -> vector<4x128xf32>
    %169 = arith.addf %162, %168 : vector<4x128xf32>
    %c1_168 = arith.constant 1 : index
    %c0_169 = arith.constant 0 : index
    %c0_170 = arith.constant 0 : index
    %170 = vector.load %arg10[%c1_168, %c0_169, %c0_170] : memref<9x4x16xf32, #tpu.memory_space<vmem>>, vector<1x4x16xf32>
    %171 = vector.shape_cast %170 : vector<1x4x16xf32> to vector<4x16xf32>
    %cst_171 = arith.constant dense<0.000000e+00> : vector<4x64xf32>
    %172 = tpu.matmul %171, %161, %cst_171 {dimension_numbers = #tpu.dot_dimension_numbers<[1], [0], [0], [1], [0, 0, 1, 1], [], []>} : vector<4x16xf32>, vector<16x64xf32>, vector<4x64xf32> -> vector<4x64xf32>
    %c1_172 = arith.constant 1 : index
    %c0_173 = arith.constant 0 : index
    %c0_174 = arith.constant 0 : index
    %173 = vector.load %arg11[%c1_172, %c0_173, %c0_174] : memref<9x64x128xf32, #tpu.memory_space<vmem>>, vector<1x64x128xf32>
    %174 = vector.shape_cast %173 : vector<1x64x128xf32> to vector<64x128xf32>
    %cst_175 = arith.constant dense<0.000000e+00> : vector<4x128xf32>
    %175 = tpu.matmul %172, %174, %cst_175 {dimension_numbers = #tpu.dot_dimension_numbers<[1], [0], [0], [1], [0, 0, 1, 1], [], []>} : vector<4x64xf32>, vector<64x128xf32>, vector<4x128xf32> -> vector<4x128xf32>
    %176 = arith.addf %169, %175 : vector<4x128xf32>
    %c2_176 = arith.constant 2 : index
    %c0_177 = arith.constant 0 : index
    %c0_178 = arith.constant 0 : index
    %177 = vector.load %arg10[%c2_176, %c0_177, %c0_178] : memref<9x4x16xf32, #tpu.memory_space<vmem>>, vector<1x4x16xf32>
    %178 = vector.shape_cast %177 : vector<1x4x16xf32> to vector<4x16xf32>
    %cst_179 = arith.constant dense<0.000000e+00> : vector<4x64xf32>
    %179 = tpu.matmul %178, %161, %cst_179 {dimension_numbers = #tpu.dot_dimension_numbers<[1], [0], [0], [1], [0, 0, 1, 1], [], []>} : vector<4x16xf32>, vector<16x64xf32>, vector<4x64xf32> -> vector<4x64xf32>
    %c2_180 = arith.constant 2 : index
    %c0_181 = arith.constant 0 : index
    %c0_182 = arith.constant 0 : index
    %180 = vector.load %arg11[%c2_180, %c0_181, %c0_182] : memref<9x64x128xf32, #tpu.memory_space<vmem>>, vector<1x64x128xf32>
    %181 = vector.shape_cast %180 : vector<1x64x128xf32> to vector<64x128xf32>
    %cst_183 = arith.constant dense<0.000000e+00> : vector<4x128xf32>
    %182 = tpu.matmul %179, %181, %cst_183 {dimension_numbers = #tpu.dot_dimension_numbers<[1], [0], [0], [1], [0, 0, 1, 1], [], []>} : vector<4x64xf32>, vector<64x128xf32>, vector<4x128xf32> -> vector<4x128xf32>
    %183 = arith.addf %176, %182 : vector<4x128xf32>
    %c3_184 = arith.constant 3 : index
    %c0_185 = arith.constant 0 : index
    %c0_186 = arith.constant 0 : index
    %184 = vector.load %arg10[%c3_184, %c0_185, %c0_186] : memref<9x4x16xf32, #tpu.memory_space<vmem>>, vector<1x4x16xf32>
    %185 = vector.shape_cast %184 : vector<1x4x16xf32> to vector<4x16xf32>
    %cst_187 = arith.constant dense<0.000000e+00> : vector<4x64xf32>
    %186 = tpu.matmul %185, %161, %cst_187 {dimension_numbers = #tpu.dot_dimension_numbers<[1], [0], [0], [1], [0, 0, 1, 1], [], []>} : vector<4x16xf32>, vector<16x64xf32>, vector<4x64xf32> -> vector<4x64xf32>
    %c3_188 = arith.constant 3 : index
    %c0_189 = arith.constant 0 : index
    %c0_190 = arith.constant 0 : index
    %187 = vector.load %arg11[%c3_188, %c0_189, %c0_190] : memref<9x64x128xf32, #tpu.memory_space<vmem>>, vector<1x64x128xf32>
    %188 = vector.shape_cast %187 : vector<1x64x128xf32> to vector<64x128xf32>
    %cst_191 = arith.constant dense<0.000000e+00> : vector<4x128xf32>
    %189 = tpu.matmul %186, %188, %cst_191 {dimension_numbers = #tpu.dot_dimension_numbers<[1], [0], [0], [1], [0, 0, 1, 1], [], []>} : vector<4x64xf32>, vector<64x128xf32>, vector<4x128xf32> -> vector<4x128xf32>
    %190 = arith.addf %183, %189 : vector<4x128xf32>
    %c4_192 = arith.constant 4 : index
    %c0_193 = arith.constant 0 : index
    %c0_194 = arith.constant 0 : index
    %191 = vector.load %arg10[%c4_192, %c0_193, %c0_194] : memref<9x4x16xf32, #tpu.memory_space<vmem>>, vector<1x4x16xf32>
    %192 = vector.shape_cast %191 : vector<1x4x16xf32> to vector<4x16xf32>
    %cst_195 = arith.constant dense<0.000000e+00> : vector<4x64xf32>
    %193 = tpu.matmul %192, %161, %cst_195 {dimension_numbers = #tpu.dot_dimension_numbers<[1], [0], [0], [1], [0, 0, 1, 1], [], []>} : vector<4x16xf32>, vector<16x64xf32>, vector<4x64xf32> -> vector<4x64xf32>
    %c4_196 = arith.constant 4 : index
    %c0_197 = arith.constant 0 : index
    %c0_198 = arith.constant 0 : index
    %194 = vector.load %arg11[%c4_196, %c0_197, %c0_198] : memref<9x64x128xf32, #tpu.memory_space<vmem>>, vector<1x64x128xf32>
    %195 = vector.shape_cast %194 : vector<1x64x128xf32> to vector<64x128xf32>
    %cst_199 = arith.constant dense<0.000000e+00> : vector<4x128xf32>
    %196 = tpu.matmul %193, %195, %cst_199 {dimension_numbers = #tpu.dot_dimension_numbers<[1], [0], [0], [1], [0, 0, 1, 1], [], []>} : vector<4x64xf32>, vector<64x128xf32>, vector<4x128xf32> -> vector<4x128xf32>
    %197 = arith.addf %190, %196 : vector<4x128xf32>
    %c5_200 = arith.constant 5 : index
    %c0_201 = arith.constant 0 : index
    %c0_202 = arith.constant 0 : index
    %198 = vector.load %arg10[%c5_200, %c0_201, %c0_202] : memref<9x4x16xf32, #tpu.memory_space<vmem>>, vector<1x4x16xf32>
    %199 = vector.shape_cast %198 : vector<1x4x16xf32> to vector<4x16xf32>
    %cst_203 = arith.constant dense<0.000000e+00> : vector<4x64xf32>
    %200 = tpu.matmul %199, %161, %cst_203 {dimension_numbers = #tpu.dot_dimension_numbers<[1], [0], [0], [1], [0, 0, 1, 1], [], []>} : vector<4x16xf32>, vector<16x64xf32>, vector<4x64xf32> -> vector<4x64xf32>
    %c5_204 = arith.constant 5 : index
    %c0_205 = arith.constant 0 : index
    %c0_206 = arith.constant 0 : index
    %201 = vector.load %arg11[%c5_204, %c0_205, %c0_206] : memref<9x64x128xf32, #tpu.memory_space<vmem>>, vector<1x64x128xf32>
    %202 = vector.shape_cast %201 : vector<1x64x128xf32> to vector<64x128xf32>
    %cst_207 = arith.constant dense<0.000000e+00> : vector<4x128xf32>
    %203 = tpu.matmul %200, %202, %cst_207 {dimension_numbers = #tpu.dot_dimension_numbers<[1], [0], [0], [1], [0, 0, 1, 1], [], []>} : vector<4x64xf32>, vector<64x128xf32>, vector<4x128xf32> -> vector<4x128xf32>
    %204 = arith.addf %197, %203 : vector<4x128xf32>
    %c6_208 = arith.constant 6 : index
    %c0_209 = arith.constant 0 : index
    %c0_210 = arith.constant 0 : index
    %205 = vector.load %arg10[%c6_208, %c0_209, %c0_210] : memref<9x4x16xf32, #tpu.memory_space<vmem>>, vector<1x4x16xf32>
    %206 = vector.shape_cast %205 : vector<1x4x16xf32> to vector<4x16xf32>
    %cst_211 = arith.constant dense<0.000000e+00> : vector<4x64xf32>
    %207 = tpu.matmul %206, %161, %cst_211 {dimension_numbers = #tpu.dot_dimension_numbers<[1], [0], [0], [1], [0, 0, 1, 1], [], []>} : vector<4x16xf32>, vector<16x64xf32>, vector<4x64xf32> -> vector<4x64xf32>
    %c6_212 = arith.constant 6 : index
    %c0_213 = arith.constant 0 : index
    %c0_214 = arith.constant 0 : index
    %208 = vector.load %arg11[%c6_212, %c0_213, %c0_214] : memref<9x64x128xf32, #tpu.memory_space<vmem>>, vector<1x64x128xf32>
    %209 = vector.shape_cast %208 : vector<1x64x128xf32> to vector<64x128xf32>
    %cst_215 = arith.constant dense<0.000000e+00> : vector<4x128xf32>
    %210 = tpu.matmul %207, %209, %cst_215 {dimension_numbers = #tpu.dot_dimension_numbers<[1], [0], [0], [1], [0, 0, 1, 1], [], []>} : vector<4x64xf32>, vector<64x128xf32>, vector<4x128xf32> -> vector<4x128xf32>
    %211 = arith.addf %204, %210 : vector<4x128xf32>
    %c7_216 = arith.constant 7 : index
    %c0_217 = arith.constant 0 : index
    %c0_218 = arith.constant 0 : index
    %212 = vector.load %arg10[%c7_216, %c0_217, %c0_218] : memref<9x4x16xf32, #tpu.memory_space<vmem>>, vector<1x4x16xf32>
    %213 = vector.shape_cast %212 : vector<1x4x16xf32> to vector<4x16xf32>
    %cst_219 = arith.constant dense<0.000000e+00> : vector<4x64xf32>
    %214 = tpu.matmul %213, %161, %cst_219 {dimension_numbers = #tpu.dot_dimension_numbers<[1], [0], [0], [1], [0, 0, 1, 1], [], []>} : vector<4x16xf32>, vector<16x64xf32>, vector<4x64xf32> -> vector<4x64xf32>
    %c7_220 = arith.constant 7 : index
    %c0_221 = arith.constant 0 : index
    %c0_222 = arith.constant 0 : index
    %215 = vector.load %arg11[%c7_220, %c0_221, %c0_222] : memref<9x64x128xf32, #tpu.memory_space<vmem>>, vector<1x64x128xf32>
    %216 = vector.shape_cast %215 : vector<1x64x128xf32> to vector<64x128xf32>
    %cst_223 = arith.constant dense<0.000000e+00> : vector<4x128xf32>
    %217 = tpu.matmul %214, %216, %cst_223 {dimension_numbers = #tpu.dot_dimension_numbers<[1], [0], [0], [1], [0, 0, 1, 1], [], []>} : vector<4x64xf32>, vector<64x128xf32>, vector<4x128xf32> -> vector<4x128xf32>
    %218 = arith.addf %211, %217 : vector<4x128xf32>
    %c8_224 = arith.constant 8 : index
    %c0_225 = arith.constant 0 : index
    %c0_226 = arith.constant 0 : index
    %219 = vector.load %arg10[%c8_224, %c0_225, %c0_226] : memref<9x4x16xf32, #tpu.memory_space<vmem>>, vector<1x4x16xf32>
    %220 = vector.shape_cast %219 : vector<1x4x16xf32> to vector<4x16xf32>
    %cst_227 = arith.constant dense<0.000000e+00> : vector<4x64xf32>
    %221 = tpu.matmul %220, %161, %cst_227 {dimension_numbers = #tpu.dot_dimension_numbers<[1], [0], [0], [1], [0, 0, 1, 1], [], []>} : vector<4x16xf32>, vector<16x64xf32>, vector<4x64xf32> -> vector<4x64xf32>
    %c8_228 = arith.constant 8 : index
    %c0_229 = arith.constant 0 : index
    %c0_230 = arith.constant 0 : index
    %222 = vector.load %arg11[%c8_228, %c0_229, %c0_230] : memref<9x64x128xf32, #tpu.memory_space<vmem>>, vector<1x64x128xf32>
    %223 = vector.shape_cast %222 : vector<1x64x128xf32> to vector<64x128xf32>
    %cst_231 = arith.constant dense<0.000000e+00> : vector<4x128xf32>
    %224 = tpu.matmul %221, %223, %cst_231 {dimension_numbers = #tpu.dot_dimension_numbers<[1], [0], [0], [1], [0, 0, 1, 1], [], []>} : vector<4x64xf32>, vector<64x128xf32>, vector<4x128xf32> -> vector<4x128xf32>
    %225 = arith.addf %218, %224 : vector<4x128xf32>
    %c0_232 = arith.constant 0 : index
    %c0_233 = arith.constant 0 : index
    %226 = vector.load %arg12[%c0_232, %c0_233] : memref<3x128xf32, #tpu.memory_space<vmem>>, vector<1x128xf32>
    %227 = vector.broadcast %226 : vector<1x128xf32> to vector<4x128xf32>
    %228 = arith.addf %225, %227 : vector<4x128xf32>
    %cst_234 = arith.constant 2.000000e-01 : f32
    %229 = vector.broadcast %cst_234 : f32 to vector<4x128xf32>
    %230 = arith.mulf %229, %228 : vector<4x128xf32>
    %231 = arith.maximumf %228, %230 : vector<4x128xf32>
    %c1_235 = arith.constant 1 : index
    %c0_236 = arith.constant 0 : index
    %232 = vector.load %arg12[%c1_235, %c0_236] : memref<3x128xf32, #tpu.memory_space<vmem>>, vector<1x128xf32>
    %233 = vector.broadcast %232 : vector<1x128xf32> to vector<4x128xf32>
    %234 = arith.mulf %231, %233 : vector<4x128xf32>
    %c2_237 = arith.constant 2 : index
    %c0_238 = arith.constant 0 : index
    %235 = vector.load %arg12[%c2_237, %c0_238] : memref<3x128xf32, #tpu.memory_space<vmem>>, vector<1x128xf32>
    %236 = vector.broadcast %235 : vector<1x128xf32> to vector<4x128xf32>
    %237 = arith.addf %234, %236 : vector<4x128xf32>
    %c0_239 = arith.constant 0 : index
    %c0_240 = arith.constant 0 : index
    %238 = vector.load %arg13[%c0_239, %c0_240] : memref<4x128xf32, #tpu.memory_space<vmem>>, vector<4x128xf32>
    %239 = arith.mulf %237, %238 : vector<4x128xf32>
    %cst_241 = arith.constant dense<0.000000e+00> : vector<4xf32>
    %240 = vector.multi_reduction <add>, %239, %cst_241 [1] : vector<4x128xf32> to vector<4xf32>
    %241 = vector.shape_cast %240 : vector<4xf32> to vector<4x1xf32>
    %cst_242 = arith.constant dense<0.000000e+00> : vector<1xf32>
    %242 = vector.multi_reduction <add>, %241, %cst_242 [0] : vector<4x1xf32> to vector<1xf32>
    %243 = vector.shape_cast %242 : vector<1xf32> to vector<1x1xf32>
    %c0_243 = arith.constant 0 : index
    %c0_244 = arith.constant 0 : index
    %244 = vector.load %arg14[%c0_243, %c0_244] : memref<1x1xf32, #tpu.memory_space<vmem>>, vector<1x1xf32>
    %245 = arith.addf %243, %244 : vector<1x1xf32>
    %cst_245 = arith.constant 0.000000e+00 : f32
    %246 = vector.broadcast %cst_245 : f32 to vector<1x1xf32>
    %247 = arith.subf %246, %245 : vector<1x1xf32>
    %248 = math.exp %247 : vector<1x1xf32>
    %cst_246 = arith.constant 1.000000e+00 : f32
    %249 = vector.broadcast %cst_246 : f32 to vector<1x1xf32>
    %250 = arith.addf %249, %248 : vector<1x1xf32>
    %cst_247 = arith.constant 1.000000e+00 : f32
    %251 = vector.broadcast %cst_247 : f32 to vector<1x1xf32>
    %252 = arith.divf %251, %250 : vector<1x1xf32>
    %c0_248 = arith.constant 0 : index
    %c0_249 = arith.constant 0 : index
    %c0_250 = arith.constant 0 : index
    %253 = vector.load %arg15[%c0_248, %c0_249, %c0_250] : memref<1x1x1xf32, #tpu.memory_space<vmem>>, vector<1x1x1xf32>
    %254 = vector.shape_cast %253 : vector<1x1x1xf32> to vector<1x1xf32>
    %255 = vector.shape_cast %252 : vector<1x1xf32> to vector<1x1x1xf32>
    tpu.vector_store %arg15[%c0_248, %c0_249, %c0_250], %255 {strides = array<i32>} : memref<1x1x1xf32, #tpu.memory_space<vmem>>, vector<1x1x1xf32>,
    return
  }
  func.func @transform_0(%arg0: i32) -> (i32, i32, i32) {
    %c0_i32 = arith.constant 0 : i32
    %c0_i32_0 = arith.constant 0 : i32
    %c0_i32_1 = arith.constant 0 : i32
    return %arg0, %c0_i32, %c0_i32_0 : i32, i32, i32
  }
  func.func @transform_1(%arg0: i32) -> (i32, i32) {
    %c0_i32 = arith.constant 0 : i32
    %c0_i32_0 = arith.constant 0 : i32
    %c0_i32_1 = arith.constant 0 : i32
    return %c0_i32, %c0_i32_0 : i32, i32
  }
  func.func @transform_2(%arg0: i32) -> (i32, i32) {
    %c0_i32 = arith.constant 0 : i32
    %c0_i32_0 = arith.constant 0 : i32
    %c0_i32_1 = arith.constant 0 : i32
    return %c0_i32, %c0_i32_0 : i32, i32
  }
  func.func @transform_3(%arg0: i32) -> (i32, i32, i32) {
    %c0_i32 = arith.constant 0 : i32
    %c0_i32_0 = arith.constant 0 : i32
    %c0_i32_1 = arith.constant 0 : i32
    %c0_i32_2 = arith.constant 0 : i32
    return %c0_i32, %c0_i32_0, %c0_i32_1 : i32, i32, i32
  }
  func.func @transform_4(%arg0: i32) -> (i32, i32, i32) {
    %c0_i32 = arith.constant 0 : i32
    %c0_i32_0 = arith.constant 0 : i32
    %c0_i32_1 = arith.constant 0 : i32
    %c0_i32_2 = arith.constant 0 : i32
    return %c0_i32, %c0_i32_0, %c0_i32_1 : i32, i32, i32
  }
  func.func @transform_5(%arg0: i32) -> (i32, i32) {
    %c0_i32 = arith.constant 0 : i32
    %c0_i32_0 = arith.constant 0 : i32
    %c0_i32_1 = arith.constant 0 : i32
    return %c0_i32, %c0_i32_0 : i32, i32
  }
  func.func @transform_6(%arg0: i32) -> (i32, i32, i32) {
    %c0_i32 = arith.constant 0 : i32
    %c0_i32_0 = arith.constant 0 : i32
    %c0_i32_1 = arith.constant 0 : i32
    %c0_i32_2 = arith.constant 0 : i32
    return %c0_i32, %c0_i32_0, %c0_i32_1 : i32, i32, i32
  }
  func.func @transform_7(%arg0: i32) -> (i32, i32, i32) {
    %c0_i32 = arith.constant 0 : i32
    %c0_i32_0 = arith.constant 0 : i32
    %c0_i32_1 = arith.constant 0 : i32
    %c0_i32_2 = arith.constant 0 : i32
    return %c0_i32, %c0_i32_0, %c0_i32_1 : i32, i32, i32
  }
  func.func @transform_8(%arg0: i32) -> (i32, i32) {
    %c0_i32 = arith.constant 0 : i32
    %c0_i32_0 = arith.constant 0 : i32
    %c0_i32_1 = arith.constant 0 : i32
    return %c0_i32, %c0_i32_0 : i32, i32
  }
  func.func @transform_9(%arg0: i32) -> (i32, i32, i32) {
    %c0_i32 = arith.constant 0 : i32
    %c0_i32_0 = arith.constant 0 : i32
    %c0_i32_1 = arith.constant 0 : i32
    %c0_i32_2 = arith.constant 0 : i32
    return %c0_i32, %c0_i32_0, %c0_i32_1 : i32, i32, i32
  }
  func.func @transform_10(%arg0: i32) -> (i32, i32, i32) {
    %c0_i32 = arith.constant 0 : i32
    %c0_i32_0 = arith.constant 0 : i32
    %c0_i32_1 = arith.constant 0 : i32
    %c0_i32_2 = arith.constant 0 : i32
    return %c0_i32, %c0_i32_0, %c0_i32_1 : i32, i32, i32
  }
  func.func @transform_11(%arg0: i32) -> (i32, i32) {
    %c0_i32 = arith.constant 0 : i32
    %c0_i32_0 = arith.constant 0 : i32
    %c0_i32_1 = arith.constant 0 : i32
    return %c0_i32, %c0_i32_0 : i32, i32
  }
  func.func @transform_12(%arg0: i32) -> (i32, i32) {
    %c0_i32 = arith.constant 0 : i32
    %c0_i32_0 = arith.constant 0 : i32
    %c0_i32_1 = arith.constant 0 : i32
    return %c0_i32, %c0_i32_0 : i32, i32
  }
  func.func @transform_13(%arg0: i32) -> (i32, i32) {
    %c0_i32 = arith.constant 0 : i32
    %c0_i32_0 = arith.constant 0 : i32
    %c0_i32_1 = arith.constant 0 : i32
    return %c0_i32, %c0_i32_0 : i32, i32
  }
  func.func @transform_14(%arg0: i32) -> (i32, i32, i32) {
    %c0_i32 = arith.constant 0 : i32
    %c0_i32_0 = arith.constant 0 : i32
    %c0_i32_1 = arith.constant 0 : i32
    return %arg0, %c0_i32, %c0_i32_0 : i32, i32, i32
  }
}

</mosaic_0001>

<llo_original>
// kernel: discriminator_forward.1
$region0: #{discriminator_forward.1}
  #allocation0 [shape = 'u32[]', space=smem, size = 0x4, offset = 0x4, fixed_abs, tag = 'smem constant byte address 0x4 - core index']
  #allocation1 [shape = 'u32[72,128]{1,0:T(1,128)}', space=vmem, size = 0x9000, scoped, tag = 'internal scratch']
  #allocation2 [shape = 'f32[1,1]{1,0:T(1,128)S(1)}', space=vmem, size = 0x200, scoped, tag = 'scoped memory for discriminator_forward.1']
  %s0 = inlined_call_operand.vmem [shape: f32[2,256,32], index: 0, kind: input, shape index: {}]
  %s1 = inlined_call_operand.vmem [shape: f32[32,16], index: 1, kind: input, shape index: {}]
  %s2 = inlined_call_operand.vmem [shape: f32[1,16], index: 2, kind: input, shape index: {}]
  %s3 = inlined_call_operand.vmem [shape: f32[9,64,256], index: 3, kind: input, shape index: {}]
  %s4 = inlined_call_operand.vmem [shape: f32[9,16,32], index: 4, kind: input, shape index: {}]
  %s5 = inlined_call_operand.vmem [shape: f32[3,32], index: 5, kind: input, shape index: {}]
  %s6 = inlined_call_operand.vmem [shape: f32[9,16,64], index: 6, kind: input, shape index: {}]
  %s7 = inlined_call_operand.vmem [shape: f32[9,32,64], index: 7, kind: input, shape index: {}]
  %s8 = inlined_call_operand.vmem [shape: f32[3,64], index: 8, kind: input, shape index: {}]
  %s9 = inlined_call_operand.vmem [shape: f32[9,4,16], index: 9, kind: input, shape index: {}]
  %s10 = inlined_call_operand.vmem [shape: f32[9,64,128], index: 10, kind: input, shape index: {}]
  %s11 = inlined_call_operand.vmem [shape: f32[3,128], index: 11, kind: input, shape index: {}]
  %s12 = inlined_call_operand.vmem [shape: f32[4,128], index: 12, kind: input, shape index: {}]
  %s13 = inlined_call_operand.<no memory space> [shape: f32[1,1], index: 13, kind: input, shape index: {}]
  %s14 = inlined_call_operand.vmem [shape: f32[2,1,1], index: 14, kind: output, shape index: {}]
  %s15 = sld [smem:[#allocation0]]
  $region89: #{discriminator_forward.1} parent=0
    _
  %s17 = ssub.s32 1, %s15
  %s18 = scalar_select 0, %s17, %s15
  %v19 = vstv %s13
  %20 = vst [vmem:[#allocation2] sm:$0x1] %v19
  loop: start=0, step=1, limit=4
  $region2: #{discriminator_forward.1} parent=0 // loop_pre_header
    _
  $region3: #{discriminator_forward.1} parent=0 // loop_header
    %s22 = sphi 0, %s26
    %p23 = scmp.ge.s32.totalorder %s22, 4
    %s32 = sphi 0, %s34
    %s35 = sphi 0, %s32
    %s36 = sphi 0, %s35
    %s52 = sphi 0, %s36
    %s56 = sphi 0, %s56
    %s58 = sphi 0, %s56
    %s59 = sphi 0, %s58
    %s73 = sphi 0, %s59
    %s77 = sphi 0, %s77
    %s79 = sphi 0, %s77
    %s80 = sphi 0, %s79
    %s94 = sphi 0, %s80
    %s98 = sphi 0, %s98
    %s100 = sphi 0, %s98
    %s101 = sphi 0, %s100
    %s115 = sphi 0, %s101
    %s119 = sphi 0, %s119
    %s121 = sphi 0, %s119
    %s122 = sphi 0, %s121
    %s136 = sphi 0, %s122
    %s140 = sphi 0, %s140
    %s142 = sphi 0, %s140
    %s143 = sphi 0, %s142
    %s157 = sphi 0, %s143
    %s161 = sphi 0, %s161
    %s163 = sphi 0, %s161
    %s164 = sphi 0, %s163
    %s178 = sphi 0, %s164
    %s182 = sphi 0, %s182
    %s184 = sphi 0, %s182
    %s185 = sphi 0, %s184
    %s199 = sphi 0, %s185
    %s203 = sphi 0, %s203
    %s205 = sphi 0, %s203
    %s206 = sphi 0, %s205
    %s220 = sphi 0, %s206
    %s224 = sphi 0, %s224
    %s226 = sphi 0, %s224
    %s227 = sphi 0, %s226
    %s241 = sphi 0, %s227
    %s245 = sphi 0, %s245
    %s247 = sphi 0, %s245
    %s248 = sphi 0, %s247
    %s262 = sphi 0, %s248
    %s266 = sphi 0, %s266
    %s268 = sphi 0, %s266
    %s269 = sphi 0, %s268
    %s283 = sphi 0, %s269
    %s287 = sphi 0, %s287
    %s289 = sphi 0, %s287
    %s290 = sphi 0, %s289
    %s304 = sphi 0, %s290
    %s308 = sphi 0, %s308
    %s310 = sphi 0, %s308
    %s311 = sphi 0, %s310
    %s325 = sphi 0, %s311
    %s331 = sphi 0, %s333
    %s334 = sphi 0, %s331
    %s335 = sphi 0, %s334
    %s351 = sphi 0, %s335
  $region4: #{discriminator_forward.1} parent=0 // loop_header_branch
    %25 = sbr.rel (%p23) target = $region8
  $region5: #{discriminator_forward.1} parent=0 // loop_body
    %s27 = ssub.s32 %s22, 1
    %s28 = ssub.s32 %s22, 2
    %s29 = sadd.s32 %s22, 1
    %s30 = ssub.s32 %s22, %s29
    %p31 = scmp.eq.s32.totalorder %s30, 0
    %s33 = sadd.s32 %s32, 1
    %s34 = scalar_select %p31, %s32, %s33
    %p37 = pneg %p31
    %p38 = scmp.eq.s32.totalorder %s22, 1
    %p39 = por %p37, %p38
    %p40 = scmp.ne.s32.totalorder %s32, %s35
    %p41 = scmp.eq.s32.totalorder %s22, 0
    %p42 = por %p40, %p41
    %p43 = scmp.ne.s32.totalorder %s32, %s35
    %p44 = scmp.eq.s32.totalorder %s27, 1
    %p45 = por %p43, %p44
    %p46 = scmp.ne.s32.totalorder %s35, %s36
    %p47 = scmp.eq.s32.totalorder %s27, 0
    %p48 = por %p46, %p47
    %p49 = scmp.ne.s32.totalorder %s35, %s36
    %p50 = scmp.eq.s32.totalorder %s28, 1
    %p51 = por %p49, %p50
    %p53 = scmp.ne.s32.totalorder %s36, %s52
    %p54 = scmp.eq.s32.totalorder %s28, 0
    %p55 = por %p53, %p54
    %s57 = sadd.s32 %s56, 1
    %p60 = scmp.eq.s32.totalorder %s22, 1
    %p61 = scmp.ne.s32.totalorder %s56, %s58
    %p62 = scmp.eq.s32.totalorder %s22, 0
    %p63 = por %p61, %p62
    %p64 = scmp.ne.s32.totalorder %s56, %s58
    %p65 = scmp.eq.s32.totalorder %s27, 1
    %p66 = por %p64, %p65
    %p67 = scmp.ne.s32.totalorder %s58, %s59
    %p68 = scmp.eq.s32.totalorder %s27, 0
    %p69 = por %p67, %p68
    %p70 = scmp.ne.s32.totalorder %s58, %s59
    %p71 = scmp.eq.s32.totalorder %s28, 1
    %p72 = por %p70, %p71
    %p74 = scmp.ne.s32.totalorder %s59, %s73
    %p75 = scmp.eq.s32.totalorder %s28, 0
    %p76 = por %p74, %p75
    %s78 = sadd.s32 %s77, 1
    %p81 = scmp.eq.s32.totalorder %s22, 1
    %p82 = scmp.ne.s32.totalorder %s77, %s79
    %p83 = scmp.eq.s32.totalorder %s22, 0
    %p84 = por %p82, %p83
    %p85 = scmp.ne.s32.totalorder %s77, %s79
    %p86 = scmp.eq.s32.totalorder %s27, 1
    %p87 = por %p85, %p86
    %p88 = scmp.ne.s32.totalorder %s79, %s80
    %p89 = scmp.eq.s32.totalorder %s27, 0
    %p90 = por %p88, %p89
    %p91 = scmp.ne.s32.totalorder %s79, %s80
    %p92 = scmp.eq.s32.totalorder %s28, 1
    %p93 = por %p91, %p92
    %p95 = scmp.ne.s32.totalorder %s80, %s94
    %p96 = scmp.eq.s32.totalorder %s28, 0
    %p97 = por %p95, %p96
    %s99 = sadd.s32 %s98, 1
    %p102 = scmp.eq.s32.totalorder %s22, 1
    %p103 = scmp.ne.s32.totalorder %s98, %s100
    %p104 = scmp.eq.s32.totalorder %s22, 0
    %p105 = por %p103, %p104
    %p106 = scmp.ne.s32.totalorder %s98, %s100
    %p107 = scmp.eq.s32.totalorder %s27, 1
    %p108 = por %p106, %p107
    %p109 = scmp.ne.s32.totalorder %s100, %s101
    %p110 = scmp.eq.s32.totalorder %s27, 0
    %p111 = por %p109, %p110
    %p112 = scmp.ne.s32.totalorder %s100, %s101
    %p113 = scmp.eq.s32.totalorder %s28, 1
    %p114 = por %p112, %p113
    %p116 = scmp.ne.s32.totalorder %s101, %s115
    %p117 = scmp.eq.s32.totalorder %s28, 0
    %p118 = por %p116, %p117
    %s120 = sadd.s32 %s119, 1
    %p123 = scmp.eq.s32.totalorder %s22, 1
    %p124 = scmp.ne.s32.totalorder %s119, %s121
    %p125 = scmp.eq.s32.totalorder %s22, 0
    %p126 = por %p124, %p125
    %p127 = scmp.ne.s32.totalorder %s119, %s121
    %p128 = scmp.eq.s32.totalorder %s27, 1
    %p129 = por %p127, %p128
    %p130 = scmp.ne.s32.totalorder %s121, %s122
    %p131 = scmp.eq.s32.totalorder %s27, 0
    %p132 = por %p130, %p131
    %p133 = scmp.ne.s32.totalorder %s121, %s122
    %p134 = scmp.eq.s32.totalorder %s28, 1
    %p135 = por %p133, %p134
    %p137 = scmp.ne.s32.totalorder %s122, %s136
    %p138 = scmp.eq.s32.totalorder %s28, 0
    %p139 = por %p137, %p138
    %s141 = sadd.s32 %s140, 1
    %p144 = scmp.eq.s32.totalorder %s22, 1
    %p145 = scmp.ne.s32.totalorder %s140, %s142
    %p146 = scmp.eq.s32.totalorder %s22, 0
    %p147 = por %p145, %p146
    %p148 = scmp.ne.s32.totalorder %s140, %s142
    %p149 = scmp.eq.s32.totalorder %s27, 1
    %p150 = por %p148, %p149
    %p151 = scmp.ne.s32.totalorder %s142, %s143
    %p152 = scmp.eq.s32.totalorder %s27, 0
    %p153 = por %p151, %p152
    %p154 = scmp.ne.s32.totalorder %s142, %s143
    %p155 = scmp.eq.s32.totalorder %s28, 1
    %p156 = por %p154, %p155
    %p158 = scmp.ne.s32.totalorder %s143, %s157
    %p159 = scmp.eq.s32.totalorder %s28, 0
    %p160 = por %p158, %p159
    %s162 = sadd.s32 %s161, 1
    %p165 = scmp.eq.s32.totalorder %s22, 1
    %p166 = scmp.ne.s32.totalorder %s161, %s163
    %p167 = scmp.eq.s32.totalorder %s22, 0
    %p168 = por %p166, %p167
    %p169 = scmp.ne.s32.totalorder %s161, %s163
    %p170 = scmp.eq.s32.totalorder %s27, 1
    %p171 = por %p169, %p170
    %p172 = scmp.ne.s32.totalorder %s163, %s164
    %p173 = scmp.eq.s32.totalorder %s27, 0
    %p174 = por %p172, %p173
    %p175 = scmp.ne.s32.totalorder %s163, %s164
    %p176 = scmp.eq.s32.totalorder %s28, 1
    %p177 = por %p175, %p176
    %p179 = scmp.ne.s32.totalorder %s164, %s178
    %p180 = scmp.eq.s32.totalorder %s28, 0
    %p181 = por %p179, %p180
    %s183 = sadd.s32 %s182, 1
    %p186 = scmp.eq.s32.totalorder %s22, 1
    %p187 = scmp.ne.s32.totalorder %s182, %s184
    %p188 = scmp.eq.s32.totalorder %s22, 0
    %p189 = por %p187, %p188
    %p190 = scmp.ne.s32.totalorder %s182, %s184
    %p191 = scmp.eq.s32.totalorder %s27, 1
    %p192 = por %p190, %p191
    %p193 = scmp.ne.s32.totalorder %s184, %s185
    %p194 = scmp.eq.s32.totalorder %s27, 0
    %p195 = por %p193, %p194
    %p196 = scmp.ne.s32.totalorder %s184, %s185
    %p197 = scmp.eq.s32.totalorder %s28, 1
    %p198 = por %p196, %p197
    %p200 = scmp.ne.s32.totalorder %s185, %s199
    %p201 = scmp.eq.s32.totalorder %s28, 0
    %p202 = por %p200, %p201
    %s204 = sadd.s32 %s203, 1
    %p207 = scmp.eq.s32.totalorder %s22, 1
    %p208 = scmp.ne.s32.totalorder %s203, %s205
    %p209 = scmp.eq.s32.totalorder %s22, 0
    %p210 = por %p208, %p209
    %p211 = scmp.ne.s32.totalorder %s203, %s205
    %p212 = scmp.eq.s32.totalorder %s27, 1
    %p213 = por %p211, %p212
    %p214 = scmp.ne.s32.totalorder %s205, %s206
    %p215 = scmp.eq.s32.totalorder %s27, 0
    %p216 = por %p214, %p215
    %p217 = scmp.ne.s32.totalorder %s205, %s206
    %p218 = scmp.eq.s32.totalorder %s28, 1
    %p219 = por %p217, %p218
    %p221 = scmp.ne.s32.totalorder %s206, %s220
    %p222 = scmp.eq.s32.totalorder %s28, 0
    %p223 = por %p221, %p222
    %s225 = sadd.s32 %s224, 1
    %p228 = scmp.eq.s32.totalorder %s22, 1
    %p229 = scmp.ne.s32.totalorder %s224, %s226
    %p230 = scmp.eq.s32.totalorder %s22, 0
    %p231 = por %p229, %p230
    %p232 = scmp.ne.s32.totalorder %s224, %s226
    %p233 = scmp.eq.s32.totalorder %s27, 1
    %p234 = por %p232, %p233
    %p235 = scmp.ne.s32.totalorder %s226, %s227
    %p236 = scmp.eq.s32.totalorder %s27, 0
    %p237 = por %p235, %p236
    %p238 = scmp.ne.s32.totalorder %s226, %s227
    %p239 = scmp.eq.s32.totalorder %s28, 1
    %p240 = por %p238, %p239
    %p242 = scmp.ne.s32.totalorder %s227, %s241
    %p243 = scmp.eq.s32.totalorder %s28, 0
    %p244 = por %p242, %p243
    %s246 = sadd.s32 %s245, 1
    %p249 = scmp.eq.s32.totalorder %s22, 1
    %p250 = scmp.ne.s32.totalorder %s245, %s247
    %p251 = scmp.eq.s32.totalorder %s22, 0
    %p252 = por %p250, %p251
    %p253 = scmp.ne.s32.totalorder %s245, %s247
    %p254 = scmp.eq.s32.totalorder %s27, 1
    %p255 = por %p253, %p254
    %p256 = scmp.ne.s32.totalorder %s247, %s248
    %p257 = scmp.eq.s32.totalorder %s27, 0
    %p258 = por %p256, %p257
    %p259 = scmp.ne.s32.totalorder %s247, %s248
    %p260 = scmp.eq.s32.totalorder %s28, 1
    %p261 = por %p259, %p260
    %p263 = scmp.ne.s32.totalorder %s248, %s262
    %p264 = scmp.eq.s32.totalorder %s28, 0
    %p265 = por %p263, %p264
    %s267 = sadd.s32 %s266, 1
    %p270 = scmp.eq.s32.totalorder %s22, 1
    %p271 = scmp.ne.s32.totalorder %s266, %s268
    %p272 = scmp.eq.s32.totalorder %s22, 0
    %p273 = por %p271, %p272
    %p274 = scmp.ne.s32.totalorder %s266, %s268
    %p275 = scmp.eq.s32.totalorder %s27, 1
    %p276 = por %p274, %p275
    %p277 = scmp.ne.s32.totalorder %s268, %s269
    %p278 = scmp.eq.s32.totalorder %s27, 0
    %p279 = por %p277, %p278
    %p280 = scmp.ne.s32.totalorder %s268, %s269
    %p281 = scmp.eq.s32.totalorder %s28, 1
    %p282 = por %p280, %p281
    %p284 = scmp.ne.s32.totalorder %s269, %s283
    %p285 = scmp.eq.s32.totalorder %s28, 0
    %p286 = por %p284, %p285
    %s288 = sadd.s32 %s287, 1
    %p291 = scmp.eq.s32.totalorder %s22, 1
    %p292 = scmp.ne.s32.totalorder %s287, %s289
    %p293 = scmp.eq.s32.totalorder %s22, 0
    %p294 = por %p292, %p293
    %p295 = scmp.ne.s32.totalorder %s287, %s289
    %p296 = scmp.eq.s32.totalorder %s27, 1
    %p297 = por %p295, %p296
    %p298 = scmp.ne.s32.totalorder %s289, %s290
    %p299 = scmp.eq.s32.totalorder %s27, 0
    %p300 = por %p298, %p299
    %p301 = scmp.ne.s32.totalorder %s289, %s290
    %p302 = scmp.eq.s32.totalorder %s28, 1
    %p303 = por %p301, %p302
    %p305 = scmp.ne.s32.totalorder %s290, %s304
    %p306 = scmp.eq.s32.totalorder %s28, 0
    %p307 = por %p305, %p306
    %s309 = sadd.s32 %s308, 1
    %p312 = scmp.eq.s32.totalorder %s22, 1
    %p313 = scmp.ne.s32.totalorder %s308, %s310
    %p314 = scmp.eq.s32.totalorder %s22, 0
    %p315 = por %p313, %p314
    %p316 = scmp.ne.s32.totalorder %s308, %s310
    %p317 = scmp.eq.s32.totalorder %s27, 1
    %p318 = por %p316, %p317
    %p319 = scmp.ne.s32.totalorder %s310, %s311
    %p320 = scmp.eq.s32.totalorder %s27, 0
    %p321 = por %p319, %p320
    %p322 = scmp.ne.s32.totalorder %s310, %s311
    %p323 = scmp.eq.s32.totalorder %s28, 1
    %p324 = por %p322, %p323
    %p326 = scmp.ne.s32.totalorder %s311, %s325
    %p327 = scmp.eq.s32.totalorder %s28, 0
    %p328 = por %p326, %p327
    %s329 = ssub.s32 %s22, %s29
    %p330 = scmp.eq.s32.totalorder %s329, 0
    %s332 = sadd.s32 %s331, 1
    %s333 = scalar_select %p330, %s331, %s332
    %p336 = pneg %p330
    %p337 = scmp.eq.s32.totalorder %s22, 1
    %p338 = por %p336, %p337
    %p339 = scmp.ne.s32.totalorder %s331, %s334
    %p340 = scmp.eq.s32.totalorder %s22, 0
    %p341 = por %p339, %p340
    %p342 = scmp.ne.s32.totalorder %s331, %s334
    %p343 = scmp.eq.s32.totalorder %s27, 1
    %p344 = por %p342, %p343
    %p345 = scmp.ne.s32.totalorder %s334, %s335
    %p346 = scmp.eq.s32.totalorder %s27, 0
    %p347 = por %p345, %p346
    %p348 = scmp.ne.s32.totalorder %s334, %s335
    %p349 = scmp.eq.s32.totalorder %s28, 1
    %p350 = por %p348, %p349
    %p352 = scmp.ne.s32.totalorder %s335, %s351
    %p353 = scmp.eq.s32.totalorder %s28, 0
    %p354 = por %p352, %p353
    %p355 = scmp.le.s32.totalorder 1, %s22
    %p356 = scmp.lt.s32.totalorder %s22, 3
    %p357 = pnand %p355, %p356
    %p358 = pneg %p357
    // Predicated region
    $region9: #{discriminator_forward.1} parent=5 // pred_check
      _
    $region10: #{discriminator_forward.1} parent=5 // pred_check_branch
      %360 = sbr.rel (%p357) target = $region12
    $region11: #{discriminator_forward.1} parent=5 // pred_region
      %s361 = ssub.s32 %s22, 1
      // Predicated region
      $region13: #{discriminator_forward.1} parent=11 // pred_check
        %p362 = pneg %p69
      $region14: #{discriminator_forward.1} parent=11 // pred_check_branch
        %364 = sbr.rel (%p362) target = $region16
      $region15: #{discriminator_forward.1} parent=11 // pred_region
        _
      $region16: #{discriminator_forward.1} parent=11 // pred_fallthru
        _
      // Predicated region
      $region17: #{discriminator_forward.1} parent=11 // pred_check
        %p365 = pneg %p90
      $region18: #{discriminator_forward.1} parent=11 // pred_check_branch
        %367 = sbr.rel (%p365) target = $region20
      $region19: #{discriminator_forward.1} parent=11 // pred_region
        _
      $region20: #{discriminator_forward.1} parent=11 // pred_fallthru
        _
      // Predicated region
      $region21: #{discriminator_forward.1} parent=11 // pred_check
        %p368 = pneg %p111
      $region22: #{discriminator_forward.1} parent=11 // pred_check_branch
        %370 = sbr.rel (%p368) target = $region24
      $region23: #{discriminator_forward.1} parent=11 // pred_region
        _
      $region24: #{discriminator_forward.1} parent=11 // pred_fallthru
        _
      // Predicated region
      $region25: #{discriminator_forward.1} parent=11 // pred_check
        %p371 = pneg %p132
      $region26: #{discriminator_forward.1} parent=11 // pred_check_branch
        %373 = sbr.rel (%p371) target = $region28
      $region27: #{discriminator_forward.1} parent=11 // pred_region
        _
      $region28: #{discriminator_forward.1} parent=11 // pred_fallthru
        _
      // Predicated region
      $region29: #{discriminator_forward.1} parent=11 // pred_check
        %p374 = pneg %p153
      $region30: #{discriminator_forward.1} parent=11 // pred_check_branch
        %376 = sbr.rel (%p374) target = $region32
      $region31: #{discriminator_forward.1} parent=11 // pred_region
        _
      $region32: #{discriminator_forward.1} parent=11 // pred_fallthru
        _
      // Predicated region
      $region33: #{discriminator_forward.1} parent=11 // pred_check
        %p377 = pneg %p174
      $region34: #{discriminator_forward.1} parent=11 // pred_check_branch
        %379 = sbr.rel (%p377) target = $region36
      $region35: #{discriminator_forward.1} parent=11 // pred_region
        _
      $region36: #{discriminator_forward.1} parent=11 // pred_fallthru
        _
      // Predicated region
      $region37: #{discriminator_forward.1} parent=11 // pred_check
        %p380 = pneg %p195
      $region38: #{discriminator_forward.1} parent=11 // pred_check_branch
        %382 = sbr.rel (%p380) target = $region40
      $region39: #{discriminator_forward.1} parent=11 // pred_region
        _
      $region40: #{discriminator_forward.1} parent=11 // pred_fallthru
        _
      // Predicated region
      $region41: #{discriminator_forward.1} parent=11 // pred_check
        %p383 = pneg %p216
      $region42: #{discriminator_forward.1} parent=11 // pred_check_branch
        %385 = sbr.rel (%p383) target = $region44
      $region43: #{discriminator_forward.1} parent=11 // pred_region
        _
      $region44: #{discriminator_forward.1} parent=11 // pred_fallthru
        _
      // Predicated region
      $region45: #{discriminator_forward.1} parent=11 // pred_check
        %p386 = pneg %p237
      $region46: #{discriminator_forward.1} parent=11 // pred_check_branch
        %388 = sbr.rel (%p386) target = $region48
      $region47: #{discriminator_forward.1} parent=11 // pred_region
        _
      $region48: #{discriminator_forward.1} parent=11 // pred_fallthru
        _
      // Predicated region
      $region49: #{discriminator_forward.1} parent=11 // pred_check
        %p389 = pneg %p258
      $region50: #{discriminator_forward.1} parent=11 // pred_check_branch
        %391 = sbr.rel (%p389) target = $region52
      $region51: #{discriminator_forward.1} parent=11 // pred_region
        _
      $region52: #{discriminator_forward.1} parent=11 // pred_fallthru
        _
      // Predicated region
      $region53: #{discriminator_forward.1} parent=11 // pred_check
        %p392 = pneg %p279
      $region54: #{discriminator_forward.1} parent=11 // pred_check_branch
        %394 = sbr.rel (%p392) target = $region56
      $region55: #{discriminator_forward.1} parent=11 // pred_region
        _
      $region56: #{discriminator_forward.1} parent=11 // pred_fallthru
        _
      // Predicated region
      $region57: #{discriminator_forward.1} parent=11 // pred_check
        %p395 = pneg %p300
      $region58: #{discriminator_forward.1} parent=11 // pred_check_branch
        %397 = sbr.rel (%p395) target = $region60
      $region59: #{discriminator_forward.1} parent=11 // pred_region
        _
      $region60: #{discriminator_forward.1} parent=11 // pred_fallthru
        _
      // Predicated region
      $region61: #{discriminator_forward.1} parent=11 // pred_check
        %p398 = pneg %p321
      $region62: #{discriminator_forward.1} parent=11 // pred_check_branch
        %400 = sbr.rel (%p398) target = $region64
      $region63: #{discriminator_forward.1} parent=11 // pred_region
        _
      $region64: #{discriminator_forward.1} parent=11 // pred_fallthru
        _
    $region12: #{discriminator_forward.1} parent=5 // pred_fallthru
      _
    %p401 = scmp.lt.s32.totalorder %s22, 2
    // Predicated region
    $region65: #{discriminator_forward.1} parent=5 // pred_check
      %p402 = pneg %p401
    $region66: #{discriminator_forward.1} parent=5 // pred_check_branch
      %404 = sbr.rel (%p402) target = $region68
    $region67: #{discriminator_forward.1} parent=5 // pred_region
      // Predicated region
      $region69: #{discriminator_forward.1} parent=67 // pred_check
        %p405 = pneg %p42
      $region70: #{discriminator_forward.1} parent=67 // pred_check_branch
        %407 = sbr.rel (%p405) target = $region72
      $region71: #{discriminator_forward.1} parent=67 // pred_region
        %p408 = scmp.lt.s32.totalorder %s22, 1
        %s409 = scalar_select %p408, %s22, 1
        %s410 = smul.addr %s409, 32
        %s411 = smul.addr %s410, 8
        %s412 = scalar_lea.vmem %s0, %s411
      $region72: #{discriminator_forward.1} parent=67 // pred_fallthru
        _
    $region68: #{discriminator_forward.1} parent=5 // pred_fallthru
      _
    %p413 = scmp.le.s32.totalorder 1, %s22
    %p414 = scmp.lt.s32.totalorder %s22, 3
    %p415 = pnand %p413, %p414
    %p416 = pneg %p415
    // Predicated region
    $region73: #{discriminator_forward.1} parent=5 // pred_check
      _
    $region74: #{discriminator_forward.1} parent=5 // pred_check_branch
      %418 = sbr.rel (%p415) target = $region76
    $region75: #{discriminator_forward.1} parent=5 // pred_region
      %s419 = ssub.s32 %s22, 1
      %p420 = scmp.lt.s32.totalorder %s27, 1
      %s421 = scalar_select %p420, %s27, 1
      %s422 = smul.addr %s421, 32
      %s423 = smul.addr %s422, 8
      %s424 = scalar_lea.vmem %s0, %s423
      %p425 = pneg %p48
      %p426 = pneg %p45
      %p427 = pneg %p69
      %p428 = pneg %p66
      %p429 = pneg %p90
      %p430 = pneg %p87
      %p431 = pneg %p111
      %p432 = pneg %p108
      %p433 = pneg %p132
      %p434 = pneg %p129
      %p435 = pneg %p153
      %p436 = pneg %p150
      %p437 = pneg %p174
      %p438 = pneg %p171
      %p439 = pneg %p195
      %p440 = pneg %p192
      %p441 = pneg %p216
      %p442 = pneg %p213
      %p443 = pneg %p237
      %p444 = pneg %p234
      %p445 = pneg %p258
      %p446 = pneg %p255
      %p447 = pneg %p279
      %p448 = pneg %p276
      %p449 = pneg %p300
      %p450 = pneg %p297
      %p451 = pneg %p321
      %p452 = pneg %p318
      %p453 = pneg %p347
      %p454 = pneg %p344
      %p455 = scmp.lt.s32.totalorder %s27, 1
      %s456 = scalar_select %p455, %s27, 1
      %s457 = scalar_lea.vmem %s14, %s456
      %p458 = scmp.lt.s32.totalorder %s27, 1
      %s459 = scalar_select %p458, %s27, 1
      %s460 = smul.addr %s459, 32
      %s461 = smul.addr %s460, 8
      %s462 = scalar_lea.vmem %s0, %s461
      %p463 = scmp.lt.s32.totalorder %s27, 1
      %s464 = scalar_select %p463, %s27, 1
      %s465 = scalar_lea.vmem %s14, %s464
      %v466 = vld [vmem:[%s462] sm:$0xff]
      %v467 = vld [vmem:[%s462 + $0x8] sm:$0xff]
      %v468 = vld [vmem:[%s462 + $0x10] sm:$0xff]
      %v469 = vld [vmem:[%s462 + $0x18] sm:$0xff]
      %v470 = vld [vmem:[%s462 + $0x20] sm:$0xff]
      %v471 = vld [vmem:[%s462 + $0x28] sm:$0xff]
      %v472 = vld [vmem:[%s462 + $0x30] sm:$0xff]
      %v473 = vld [vmem:[%s462 + $0x38] sm:$0xff]
      %v474 = vld [vmem:[%s462 + $0x40] sm:$0xff]
      %v475 = vld [vmem:[%s462 + $0x48] sm:$0xff]
      %v476 = vld [vmem:[%s462 + $0x50] sm:$0xff]
      %v477 = vld [vmem:[%s462 + $0x58] sm:$0xff]
      %v478 = vld [vmem:[%s462 + $0x60] sm:$0xff]
      %v479 = vld [vmem:[%s462 + $0x68] sm:$0xff]
      %v480 = vld [vmem:[%s462 + $0x70] sm:$0xff]
      %v481 = vld [vmem:[%s462 + $0x78] sm:$0xff]
      %v482 = vld [vmem:[%s462 + $0x80] sm:$0xff]
      %v483 = vld [vmem:[%s462 + $0x88] sm:$0xff]
      %v484 = vld [vmem:[%s462 + $0x90] sm:$0xff]
      %v485 = vld [vmem:[%s462 + $0x98] sm:$0xff]
      %v486 = vld [vmem:[%s462 + $0xa0] sm:$0xff]
      %v487 = vld [vmem:[%s462 + $0xa8] sm:$0xff]
      %v488 = vld [vmem:[%s462 + $0xb0] sm:$0xff]
      %v489 = vld [vmem:[%s462 + $0xb8] sm:$0xff]
      %v490 = vld [vmem:[%s462 + $0xc0] sm:$0xff]
      %v491 = vld [vmem:[%s462 + $0xc8] sm:$0xff]
      %v492 = vld [vmem:[%s462 + $0xd0] sm:$0xff]
      %v493 = vld [vmem:[%s462 + $0xd8] sm:$0xff]
      %v494 = vld [vmem:[%s462 + $0xe0] sm:$0xff]
      %v495 = vld [vmem:[%s462 + $0xe8] sm:$0xff]
      %v496 = vld [vmem:[%s462 + $0xf0] sm:$0xff]
      %v497 = vld [vmem:[%s462 + $0xf8] sm:$0xff]
      %v498 = vld [vmem:[%s1] sm:$0xff]
      %v499 = vld [vmem:[%s1 + $0x8] sm:$0xff]
      %v500 = vld [vmem:[%s1 + $0x10] sm:$0xff]
      %v501 = vld [vmem:[%s1 + $0x18] sm:$0xff]
      %v502 = vld [vmem:[%s2] sm:$0x1]
      %v504 = vperm.slane %v502, 0
      %vm506 = vcmask 261120
      %v508 = vsel %vm506, %v466, 0
      %v511 = vsel %vm506, %v467, 0
      %v514 = vsel %vm506, %v468, 0
      %v517 = vsel %vm506, %v469, 0
      %v520 = vsel %vm506, %v470, 0
      %v523 = vsel %vm506, %v471, 0
      %v526 = vsel %vm506, %v472, 0
      %v529 = vsel %vm506, %v473, 0
      %v532 = vsel %vm506, %v474, 0
      %v535 = vsel %vm506, %v475, 0
      %v538 = vsel %vm506, %v476, 0
      %v541 = vsel %vm506, %v477, 0
      %v544 = vsel %vm506, %v478, 0
      %v547 = vsel %vm506, %v479, 0
      %v550 = vsel %vm506, %v480, 0
      %v553 = vsel %vm506, %v481, 0
      %v556 = vsel %vm506, %v482, 0
      %v559 = vsel %vm506, %v483, 0
      %v562 = vsel %vm506, %v484, 0
      %v565 = vsel %vm506, %v485, 0
      %v568 = vsel %vm506, %v486, 0
      %v571 = vsel %vm506, %v487, 0
      %v574 = vsel %vm506, %v488, 0
      %v577 = vsel %vm506, %v489, 0
      %v580 = vsel %vm506, %v490, 0
      %v583 = vsel %vm506, %v491, 0
      %v586 = vsel %vm506, %v492, 0
      %v589 = vsel %vm506, %v493, 0
      %v592 = vsel %vm506, %v494, 0
      %v595 = vsel %vm506, %v495, 0
      %v598 = vsel %vm506, %v496, 0
      %v601 = vsel %vm506, %v497, 0
      %603 = vmatpush.msra.mxu0 0.0
      %604 = vmatpush.msra.mxu0 0.0
      %605 = vmatpush.msra.mxu0 0.0
      %606 = vmatpush.msra.mxu0 0.0
      %607 = vmatpush.msra.mxu0 0.0
      %608 = vmatpush.msra.mxu0 0.0
      %609 = vmatpush.msra.mxu0 0.0
      %610 = vmatpush.msra.mxu0 0.0
      %611 = vmatpush.msra.mxu0 0.0
      %612 = vmatpush.msra.mxu0 0.0
      %613 = vmatpush.msra.mxu0 0.0
      %614 = vmatpush.msra.mxu0 0.0
      %615 = vmatpush.msra.mxu0 %v501
      %616 = vmatpush.msra.mxu0 %v500
      %617 = vmatpush.msra.mxu0 %v499
      %618 = vmatpush.msra.mxu0 %v498
      %619 = vmatmul.f32.gmra.mxu0 %v508
      %v620 = vpop.f32.mrf.mxu0
      %v621 = vadd.f32 %v504, %v620
      %622 = vmatmul.f32.gmra.mxu0 %v511
      %v623 = vpop.f32.mrf.mxu0
      %v624 = vadd.f32 %v504, %v623
      %625 = vmatmul.f32.gmra.mxu0 %v514
      %v626 = vpop.f32.mrf.mxu0
      %v627 = vadd.f32 %v504, %v626
      %628 = vmatmul.f32.gmra.mxu0 %v517
      %v629 = vpop.f32.mrf.mxu0
      %v630 = vadd.f32 %v504, %v629
      %631 = vmatmul.f32.gmra.mxu0 %v520
      %v632 = vpop.f32.mrf.mxu0
      %v633 = vadd.f32 %v504, %v632
      %634 = vmatmul.f32.gmra.mxu0 %v523
      %v635 = vpop.f32.mrf.mxu0
      %v636 = vadd.f32 %v504, %v635
      %637 = vmatmul.f32.gmra.mxu0 %v526
      %v638 = vpop.f32.mrf.mxu0
      %v639 = vadd.f32 %v504, %v638
      %640 = vmatmul.f32.gmra.mxu0 %v529
      %v641 = vpop.f32.mrf.mxu0
      %v642 = vadd.f32 %v504, %v641
      %643 = vmatmul.f32.gmra.mxu0 %v532
      %v644 = vpop.f32.mrf.mxu0
      %v645 = vadd.f32 %v504, %v644
      %646 = vmatmul.f32.gmra.mxu0 %v535
      %v647 = vpop.f32.mrf.mxu0
      %v648 = vadd.f32 %v504, %v647
      %649 = vmatmul.f32.gmra.mxu0 %v538
      %v650 = vpop.f32.mrf.mxu0
      %v651 = vadd.f32 %v504, %v650
      %652 = vmatmul.f32.gmra.mxu0 %v541
      %v653 = vpop.f32.mrf.mxu0
      %v654 = vadd.f32 %v504, %v653
      %655 = vmatmul.f32.gmra.mxu0 %v544
      %v656 = vpop.f32.mrf.mxu0
      %v657 = vadd.f32 %v504, %v656
      %658 = vmatmul.f32.gmra.mxu0 %v547
      %v659 = vpop.f32.mrf.mxu0
      %v660 = vadd.f32 %v504, %v659
      %661 = vmatmul.f32.gmra.mxu0 %v550
      %v662 = vpop.f32.mrf.mxu0
      %v663 = vadd.f32 %v504, %v662
      %664 = vmatmul.f32.gmra.mxu0 %v553
      %v665 = vpop.f32.mrf.mxu0
      %v666 = vadd.f32 %v504, %v665
      %667 = vmatmul.f32.gmra.mxu0 %v556
      %v668 = vpop.f32.mrf.mxu0
      %v669 = vadd.f32 %v504, %v668
      %670 = vmatmul.f32.gmra.mxu0 %v559
      %v671 = vpop.f32.mrf.mxu0
      %v672 = vadd.f32 %v504, %v671
      %673 = vmatmul.f32.gmra.mxu0 %v562
      %v674 = vpop.f32.mrf.mxu0
      %v675 = vadd.f32 %v504, %v674
      %676 = vmatmul.f32.gmra.mxu0 %v565
      %v677 = vpop.f32.mrf.mxu0
      %v678 = vadd.f32 %v504, %v677
      %679 = vmatmul.f32.gmra.mxu0 %v568
      %v680 = vpop.f32.mrf.mxu0
      %v681 = vadd.f32 %v504, %v680
      %682 = vmatmul.f32.gmra.mxu0 %v571
      %v683 = vpop.f32.mrf.mxu0
      %v684 = vadd.f32 %v504, %v683
      %685 = vmatmul.f32.gmra.mxu0 %v574
      %v686 = vpop.f32.mrf.mxu0
      %v687 = vadd.f32 %v504, %v686
      %688 = vmatmul.f32.gmra.mxu0 %v577
      %v689 = vpop.f32.mrf.mxu0
      %v690 = vadd.f32 %v504, %v689
      %691 = vmatmul.f32.gmra.mxu0 %v580
      %v692 = vpop.f32.mrf.mxu0
      %v693 = vadd.f32 %v504, %v692
      %694 = vmatmul.f32.gmra.mxu0 %v583
      %v695 = vpop.f32.mrf.mxu0
      %v696 = vadd.f32 %v504, %v695
      %697 = vmatmul.f32.gmra.mxu0 %v586
      %v698 = vpop.f32.mrf.mxu0
      %v699 = vadd.f32 %v504, %v698
      %700 = vmatmul.f32.gmra.mxu0 %v589
      %v701 = vpop.f32.mrf.mxu0
      %v702 = vadd.f32 %v504, %v701
      %703 = vmatmul.f32.gmra.mxu0 %v592
      %v704 = vpop.f32.mrf.mxu0
      %v705 = vadd.f32 %v504, %v704
      %706 = vmatmul.f32.gmra.mxu0 %v595
      %v707 = vpop.f32.mrf.mxu0
      %v708 = vadd.f32 %v504, %v707
      %709 = vmatmul.f32.gmra.mxu0 %v598
      %v710 = vpop.f32.mrf.mxu0
      %v711 = vadd.f32 %v504, %v710
      %712 = vmatmul.f32.gmra.mxu0 %v601
      %v713 = vpop.f32.mrf.mxu0
      %v714 = vadd.f32 %v504, %v713
      %715 = vdwg.mxu0
      %v716 = vmul.f32 %v621, 0.2
      %v717 = vmul.f32 %v624, 0.2
      %v718 = vmul.f32 %v627, 0.2
      %v719 = vmul.f32 %v630, 0.2
      %v720 = vmul.f32 %v633, 0.2
      %v721 = vmul.f32 %v636, 0.2
      %v722 = vmul.f32 %v639, 0.2
      %v723 = vmul.f32 %v642, 0.2
      %v724 = vmul.f32 %v645, 0.2
      %v725 = vmul.f32 %v648, 0.2
      %v726 = vmul.f32 %v651, 0.2
      %v727 = vmul.f32 %v654, 0.2
      %v728 = vmul.f32 %v657, 0.2
      %v729 = vmul.f32 %v660, 0.2
      %v730 = vmul.f32 %v663, 0.2
      %v731 = vmul.f32 %v666, 0.2
      %v732 = vmul.f32 %v669, 0.2
      %v733 = vmul.f32 %v672, 0.2
      %v734 = vmul.f32 %v675, 0.2
      %v735 = vmul.f32 %v678, 0.2
      %v736 = vmul.f32 %v681, 0.2
      %v737 = vmul.f32 %v684, 0.2
      %v738 = vmul.f32 %v687, 0.2
      %v739 = vmul.f32 %v690, 0.2
      %v740 = vmul.f32 %v693, 0.2
      %v741 = vmul.f32 %v696, 0.2
      %v742 = vmul.f32 %v699, 0.2
      %v743 = vmul.f32 %v702, 0.2
      %v744 = vmul.f32 %v705, 0.2
      %v745 = vmul.f32 %v708, 0.2
      %v746 = vmul.f32 %v711, 0.2
      %v747 = vmul.f32 %v714, 0.2
      %v748 = vmax.f32 %v621, %v716
      %v749 = vmax.f32 %v624, %v717
      %v750 = vmax.f32 %v627, %v718
      %v751 = vmax.f32 %v630, %v719
      %v752 = vmax.f32 %v633, %v720
      %v753 = vmax.f32 %v636, %v721
      %v754 = vmax.f32 %v639, %v722
      %v755 = vmax.f32 %v642, %v723
      %v756 = vmax.f32 %v645, %v724
      %v757 = vmax.f32 %v648, %v725
      %v758 = vmax.f32 %v651, %v726
      %v759 = vmax.f32 %v654, %v727
      %v760 = vmax.f32 %v657, %v728
      %v761 = vmax.f32 %v660, %v729
      %v762 = vmax.f32 %v663, %v730
      %v763 = vmax.f32 %v666, %v731
      %v764 = vmax.f32 %v669, %v732
      %v765 = vmax.f32 %v672, %v733
      %v766 = vmax.f32 %v675, %v734
      %v767 = vmax.f32 %v678, %v735
      %v768 = vmax.f32 %v681, %v736
      %v769 = vmax.f32 %v684, %v737
      %v770 = vmax.f32 %v687, %v738
      %v771 = vmax.f32 %v690, %v739
      %v772 = vmax.f32 %v693, %v740
      %v773 = vmax.f32 %v696, %v741
      %v774 = vmax.f32 %v699, %v742
      %v775 = vmax.f32 %v702, %v743
      %v776 = vmax.f32 %v705, %v744
      %v777 = vmax.f32 %v708, %v745
      %v778 = vmax.f32 %v711, %v746
      %v779 = vmax.f32 %v714, %v747
      %v780 = vld [vmem:[%s3] sm:$0xff]
      %v781 = vld [vmem:[%s3 + $0x8] sm:$0xff]
      %v782 = vld [vmem:[%s3 + $0x10] sm:$0xff]
      %v783 = vld [vmem:[%s3 + $0x18] sm:$0xff]
      %v784 = vld [vmem:[%s3 + $0x20] sm:$0xff]
      %v785 = vld [vmem:[%s3 + $0x28] sm:$0xff]
      %v786 = vld [vmem:[%s3 + $0x30] sm:$0xff]
      %v787 = vld [vmem:[%s3 + $0x38] sm:$0xff]
      %v788 = vld [vmem:[%s3 + $0x40] sm:$0xff]
      %v789 = vld [vmem:[%s3 + $0x48] sm:$0xff]
      %v790 = vld [vmem:[%s3 + $0x50] sm:$0xff]
      %v791 = vld [vmem:[%s3 + $0x58] sm:$0xff]
      %v792 = vld [vmem:[%s3 + $0x60] sm:$0xff]
      %v793 = vld [vmem:[%s3 + $0x68] sm:$0xff]
      %v794 = vld [vmem:[%s3 + $0x70] sm:$0xff]
      %v795 = vld [vmem:[%s3 + $0x78] sm:$0xff]
      %796 = vmatpush.msra.mxu0 %v763
      %797 = vmatpush.msra.mxu0 %v762
      %798 = vmatpush.msra.mxu0 %v761
      %799 = vmatpush.msra.mxu0 %v760
      %800 = vmatpush.msra.mxu0 %v759
      %801 = vmatpush.msra.mxu0 %v758
      %802 = vmatpush.msra.mxu0 %v757
      %803 = vmatpush.msra.mxu0 %v756
      %804 = vmatpush.msra.mxu0 %v755
      %805 = vmatpush.msra.mxu0 %v754
      %806 = vmatpush.msra.mxu0 %v753
      %807 = vmatpush.msra.mxu0 %v752
      %808 = vmatpush.msra.mxu0 %v751
      %809 = vmatpush.msra.mxu0 %v750
      %810 = vmatpush.msra.mxu0 %v749
      %811 = vmatpush.msra.mxu0 %v748
      %812 = vmatmul.f32.gmra.mxu0 %v780
      %v813 = vpop.f32.mrf.mxu0
      %v814 = vadd.f32 0.0, %v813
      %815 = vmatmul.f32.gmra.mxu0 %v782
      %v816 = vpop.f32.mrf.mxu0
      %v817 = vadd.f32 0.0, %v816
      %818 = vmatmul.f32.gmra.mxu0 %v784
      %v819 = vpop.f32.mrf.mxu0
      %v820 = vadd.f32 0.0, %v819
      %821 = vmatmul.f32.gmra.mxu0 %v786
      %v822 = vpop.f32.mrf.mxu0
      %v823 = vadd.f32 0.0, %v822
      %824 = vmatmul.f32.gmra.mxu0 %v788
      %v825 = vpop.f32.mrf.mxu0
      %v826 = vadd.f32 0.0, %v825
      %827 = vmatmul.f32.gmra.mxu0 %v790
      %v828 = vpop.f32.mrf.mxu0
      %v829 = vadd.f32 0.0, %v828
      %830 = vmatmul.f32.gmra.mxu0 %v792
      %v831 = vpop.f32.mrf.mxu0
      %v832 = vadd.f32 0.0, %v831
      %833 = vmatmul.f32.gmra.mxu0 %v794
      %v834 = vpop.f32.mrf.mxu0
      %v835 = vadd.f32 0.0, %v834
      %836 = vdwg.mxu0
      %837 = vmatpush.msra.mxu0 %v779
      %838 = vmatpush.msra.mxu0 %v778
      %839 = vmatpush.msra.mxu0 %v777
      %840 = vmatpush.msra.mxu0 %v776
      %841 = vmatpush.msra.mxu0 %v775
      %842 = vmatpush.msra.mxu0 %v774
      %843 = vmatpush.msra.mxu0 %v773
      %844 = vmatpush.msra.mxu0 %v772
      %845 = vmatpush.msra.mxu0 %v771
      %846 = vmatpush.msra.mxu0 %v770
      %847 = vmatpush.msra.mxu0 %v769
      %848 = vmatpush.msra.mxu0 %v768
      %849 = vmatpush.msra.mxu0 %v767
      %850 = vmatpush.msra.mxu0 %v766
      %851 = vmatpush.msra.mxu0 %v765
      %852 = vmatpush.msra.mxu0 %v764
      %853 = vmatmul.f32.gmra.mxu0 %v781
      %v854 = vpop.f32.mrf.mxu0
      %v855 = vadd.f32 %v814, %v854
      %856 = vmatmul.f32.gmra.mxu0 %v783
      %v857 = vpop.f32.mrf.mxu0
      %v858 = vadd.f32 %v817, %v857
      %859 = vmatmul.f32.gmra.mxu0 %v785
      %v860 = vpop.f32.mrf.mxu0
      %v861 = vadd.f32 %v820, %v860
      %862 = vmatmul.f32.gmra.mxu0 %v787
      %v863 = vpop.f32.mrf.mxu0
      %v864 = vadd.f32 %v823, %v863
      %865 = vmatmul.f32.gmra.mxu0 %v789
      %v866 = vpop.f32.mrf.mxu0
      %v867 = vadd.f32 %v826, %v866
      %868 = vmatmul.f32.gmra.mxu0 %v791
      %v869 = vpop.f32.mrf.mxu0
      %v870 = vadd.f32 %v829, %v869
      %871 = vmatmul.f32.gmra.mxu0 %v793
      %v872 = vpop.f32.mrf.mxu0
      %v873 = vadd.f32 %v832, %v872
      %874 = vmatmul.f32.gmra.mxu0 %v795
      %v875 = vpop.f32.mrf.mxu0
      %v876 = vadd.f32 %v835, %v875
      %877 = vdwg.mxu0
      %v878 = vld [vmem:[%s4] sm:$0xff]
      %v879 = vld [vmem:[%s4 + $0x8] sm:$0xff]
      %s880 = scalar_lea.vmem %s3, 128
      %v881 = vld [vmem:[%s880] sm:$0xff]
      %v882 = vld [vmem:[%s880 + $0x8] sm:$0xff]
      %v883 = vld [vmem:[%s880 + $0x10] sm:$0xff]
      %v884 = vld [vmem:[%s880 + $0x18] sm:$0xff]
      %v885 = vld [vmem:[%s880 + $0x20] sm:$0xff]
      %v886 = vld [vmem:[%s880 + $0x28] sm:$0xff]
      %v887 = vld [vmem:[%s880 + $0x30] sm:$0xff]
      %v888 = vld [vmem:[%s880 + $0x38] sm:$0xff]
      %v889 = vld [vmem:[%s880 + $0x40] sm:$0xff]
      %v890 = vld [vmem:[%s880 + $0x48] sm:$0xff]
      %v891 = vld [vmem:[%s880 + $0x50] sm:$0xff]
      %v892 = vld [vmem:[%s880 + $0x58] sm:$0xff]
      %v893 = vld [vmem:[%s880 + $0x60] sm:$0xff]
      %v894 = vld [vmem:[%s880 + $0x68] sm:$0xff]
      %v895 = vld [vmem:[%s880 + $0x70] sm:$0xff]
      %v896 = vld [vmem:[%s880 + $0x78] sm:$0xff]
      %897 = vmatpush.msra.mxu0 %v763
      %898 = vmatpush.msra.mxu0 %v762
      %899 = vmatpush.msra.mxu0 %v761
      %900 = vmatpush.msra.mxu0 %v760
      %901 = vmatpush.msra.mxu0 %v759
      %902 = vmatpush.msra.mxu0 %v758
      %903 = vmatpush.msra.mxu0 %v757
      %904 = vmatpush.msra.mxu0 %v756
      %905 = vmatpush.msra.mxu0 %v755
      %906 = vmatpush.msra.mxu0 %v754
      %907 = vmatpush.msra.mxu0 %v753
      %908 = vmatpush.msra.mxu0 %v752
      %909 = vmatpush.msra.mxu0 %v751
      %910 = vmatpush.msra.mxu0 %v750
      %911 = vmatpush.msra.mxu0 %v749
      %912 = vmatpush.msra.mxu0 %v748
      %913 = vmatmul.f32.gmra.mxu0 %v881
      %v914 = vpop.f32.mrf.mxu0
      %v915 = vadd.f32 0.0, %v914
      %916 = vmatmul.f32.gmra.mxu0 %v883
      %v917 = vpop.f32.mrf.mxu0
      %v918 = vadd.f32 0.0, %v917
      %919 = vmatmul.f32.gmra.mxu0 %v885
      %v920 = vpop.f32.mrf.mxu0
      %v921 = vadd.f32 0.0, %v920
      %922 = vmatmul.f32.gmra.mxu0 %v887
      %v923 = vpop.f32.mrf.mxu0
      %v924 = vadd.f32 0.0, %v923
      %925 = vmatmul.f32.gmra.mxu0 %v889
      %v926 = vpop.f32.mrf.mxu0
      %v927 = vadd.f32 0.0, %v926
      %928 = vmatmul.f32.gmra.mxu0 %v891
      %v929 = vpop.f32.mrf.mxu0
      %v930 = vadd.f32 0.0, %v929
      %931 = vmatmul.f32.gmra.mxu0 %v893
      %v932 = vpop.f32.mrf.mxu0
      %v933 = vadd.f32 0.0, %v932
      %934 = vmatmul.f32.gmra.mxu0 %v895
      %v935 = vpop.f32.mrf.mxu0
      %v936 = vadd.f32 0.0, %v935
      %937 = vdwg.mxu0
      %938 = vmatpush.msra.mxu0 %v779
      %939 = vmatpush.msra.mxu0 %v778
      %940 = vmatpush.msra.mxu0 %v777
      %941 = vmatpush.msra.mxu0 %v776
      %942 = vmatpush.msra.mxu0 %v775
      %943 = vmatpush.msra.mxu0 %v774
      %944 = vmatpush.msra.mxu0 %v773
      %945 = vmatpush.msra.mxu0 %v772
      %946 = vmatpush.msra.mxu0 %v771
      %947 = vmatpush.msra.mxu0 %v770
      %948 = vmatpush.msra.mxu0 %v769
      %949 = vmatpush.msra.mxu0 %v768
      %950 = vmatpush.msra.mxu0 %v767
      %951 = vmatpush.msra.mxu0 %v766
      %952 = vmatpush.msra.mxu0 %v765
      %953 = vmatpush.msra.mxu0 %v764
      %954 = vmatmul.f32.gmra.mxu0 %v882
      %v955 = vpop.f32.mrf.mxu0
      %v956 = vadd.f32 %v915, %v955
      %957 = vmatmul.f32.gmra.mxu0 %v884
      %v958 = vpop.f32.mrf.mxu0
      %v959 = vadd.f32 %v918, %v958
      %960 = vmatmul.f32.gmra.mxu0 %v886
      %v961 = vpop.f32.mrf.mxu0
      %v962 = vadd.f32 %v921, %v961
      %963 = vmatmul.f32.gmra.mxu0 %v888
      %v964 = vpop.f32.mrf.mxu0
      %v965 = vadd.f32 %v924, %v964
      %966 = vmatmul.f32.gmra.mxu0 %v890
      %v967 = vpop.f32.mrf.mxu0
      %v968 = vadd.f32 %v927, %v967
      %969 = vmatmul.f32.gmra.mxu0 %v892
      %v970 = vpop.f32.mrf.mxu0
      %v971 = vadd.f32 %v930, %v970
      %972 = vmatmul.f32.gmra.mxu0 %v894
      %v973 = vpop.f32.mrf.mxu0
      %v974 = vadd.f32 %v933, %v973
      %975 = vmatmul.f32.gmra.mxu0 %v896
      %v976 = vpop.f32.mrf.mxu0
      %v977 = vadd.f32 %v936, %v976
      %978 = vdwg.mxu0
      %s979 = scalar_lea.vmem %s4, 16
      %v980 = vld [vmem:[%s979] sm:$0xff]
      %v981 = vld [vmem:[%s979 + $0x8] sm:$0xff]
      %vm982 = vcmask 130048
      %v984 = vsel %vm982, %v956, 0
      %v987 = vsel %vm982, %v959, 0
      %v990 = vsel %vm982, %v962, 0
      %v993 = vsel %vm982, %v965, 0
      %v996 = vsel %vm982, %v968, 0
      %v999 = vsel %vm982, %v971, 0
      %v1002 = vsel %vm982, %v974, 0
      %v1005 = vsel %vm982, %v977, 0
      %1007 = vmatpush.msra.mxu0 0.0
      %1008 = vmatpush.msra.mxu0 0.0
      %1009 = vmatpush.msra.mxu0 0.0
      %1010 = vmatpush.msra.mxu0 0.0
      %1011 = vmatpush.msra.mxu0 0.0
      %1012 = vmatpush.msra.mxu0 0.0
      %1013 = vmatpush.msra.mxu0 0.0
      %1014 = vmatpush.msra.mxu0 0.0
      %1015 = vmatpush.msra.mxu0 0.0
      %1016 = vmatpush.msra.mxu0 0.0
      %1017 = vmatpush.msra.mxu0 0.0
      %1018 = vmatpush.msra.mxu0 0.0
      %1019 = vmatpush.msra.mxu0 0.0
      %1020 = vmatpush.msra.mxu0 0.0
      %1021 = vmatpush.msra.mxu0 %v981
      %1022 = vmatpush.msra.mxu0 %v980
      %1023 = vmatmul.f32.gmra.mxu0 %v984
      %v1024 = vpop.f32.mrf.mxu0
      %v1025 = vadd.f32 0.0, %v1024
      %1026 = vmatmul.f32.gmra.mxu0 %v987
      %v1027 = vpop.f32.mrf.mxu0
      %v1028 = vadd.f32 0.0, %v1027
      %1029 = vmatmul.f32.gmra.mxu0 %v990
      %v1030 = vpop.f32.mrf.mxu0
      %v1031 = vadd.f32 0.0, %v1030
      %1032 = vmatmul.f32.gmra.mxu0 %v993
      %v1033 = vpop.f32.mrf.mxu0
      %v1034 = vadd.f32 0.0, %v1033
      %1035 = vmatmul.f32.gmra.mxu0 %v996
      %v1036 = vpop.f32.mrf.mxu0
      %v1037 = vadd.f32 0.0, %v1036
      %1038 = vmatmul.f32.gmra.mxu0 %v999
      %v1039 = vpop.f32.mrf.mxu0
      %v1040 = vadd.f32 0.0, %v1039
      %1041 = vmatmul.f32.gmra.mxu0 %v1002
      %v1042 = vpop.f32.mrf.mxu0
      %v1043 = vadd.f32 0.0, %v1042
      %1044 = vmatmul.f32.gmra.mxu0 %v1005
      %v1045 = vpop.f32.mrf.mxu0
      %v1046 = vadd.f32 0.0, %v1045
      %1047 = vdwg.mxu0
      %v1049 = vsel %vm982, %v855, 0
      %v1052 = vsel %vm982, %v858, 0
      %v1055 = vsel %vm982, %v861, 0
      %v1058 = vsel %vm982, %v864, 0
      %v1061 = vsel %vm982, %v867, 0
      %v1064 = vsel %vm982, %v870, 0
      %v1067 = vsel %vm982, %v873, 0
      %v1070 = vsel %vm982, %v876, 0
      %1072 = vmatpush.msra.mxu0 0.0
      %1073 = vmatpush.msra.mxu0 0.0
      %1074 = vmatpush.msra.mxu0 0.0
      %1075 = vmatpush.msra.mxu0 0.0
      %1076 = vmatpush.msra.mxu0 0.0
      %1077 = vmatpush.msra.mxu0 0.0
      %1078 = vmatpush.msra.mxu0 0.0
      %1079 = vmatpush.msra.mxu0 0.0
      %1080 = vmatpush.msra.mxu0 0.0
      %1081 = vmatpush.msra.mxu0 0.0
      %1082 = vmatpush.msra.mxu0 0.0
      %1083 = vmatpush.msra.mxu0 0.0
      %1084 = vmatpush.msra.mxu0 0.0
      %1085 = vmatpush.msra.mxu0 0.0
      %1086 = vmatpush.msra.mxu0 %v879
      %1087 = vmatpush.msra.mxu0 %v878
      %1088 = vmatmul.f32.gmra.mxu0 %v1049
      %v1089 = vpop.f32.mrf.mxu0
      %v1090 = vadd.f32 %v1025, %v1089
      %1091 = vmatmul.f32.gmra.mxu0 %v1052
      %v1092 = vpop.f32.mrf.mxu0
      %v1093 = vadd.f32 %v1028, %v1092
      %1094 = vmatmul.f32.gmra.mxu0 %v1055
      %v1095 = vpop.f32.mrf.mxu0
      %v1096 = vadd.f32 %v1031, %v1095
      %1097 = vmatmul.f32.gmra.mxu0 %v1058
      %v1098 = vpop.f32.mrf.mxu0
      %v1099 = vadd.f32 %v1034, %v1098
      %1100 = vmatmul.f32.gmra.mxu0 %v1061
      %v1101 = vpop.f32.mrf.mxu0
      %v1102 = vadd.f32 %v1037, %v1101
      %1103 = vmatmul.f32.gmra.mxu0 %v1064
      %v1104 = vpop.f32.mrf.mxu0
      %v1105 = vadd.f32 %v1040, %v1104
      %1106 = vmatmul.f32.gmra.mxu0 %v1067
      %v1107 = vpop.f32.mrf.mxu0
      %v1108 = vadd.f32 %v1043, %v1107
      %1109 = vmatmul.f32.gmra.mxu0 %v1070
      %v1110 = vpop.f32.mrf.mxu0
      %v1111 = vadd.f32 %v1046, %v1110
      %1112 = vdwg.mxu0
      %s1113 = scalar_lea.vmem %s3, 256
      %v1114 = vld [vmem:[%s1113] sm:$0xff]
      %v1115 = vld [vmem:[%s1113 + $0x8] sm:$0xff]
      %v1116 = vld [vmem:[%s1113 + $0x10] sm:$0xff]
      %v1117 = vld [vmem:[%s1113 + $0x18] sm:$0xff]
      %v1118 = vld [vmem:[%s1113 + $0x20] sm:$0xff]
      %v1119 = vld [vmem:[%s1113 + $0x28] sm:$0xff]
      %v1120 = vld [vmem:[%s1113 + $0x30] sm:$0xff]
      %v1121 = vld [vmem:[%s1113 + $0x38] sm:$0xff]
      %v1122 = vld [vmem:[%s1113 + $0x40] sm:$0xff]
      %v1123 = vld [vmem:[%s1113 + $0x48] sm:$0xff]
      %v1124 = vld [vmem:[%s1113 + $0x50] sm:$0xff]
      %v1125 = vld [vmem:[%s1113 + $0x58] sm:$0xff]
      %v1126 = vld [vmem:[%s1113 + $0x60] sm:$0xff]
      %v1127 = vld [vmem:[%s1113 + $0x68] sm:$0xff]
      %v1128 = vld [vmem:[%s1113 + $0x70] sm:$0xff]
      %v1129 = vld [vmem:[%s1113 + $0x78] sm:$0xff]
      %1130 = vmatpush.msra.mxu0 %v763
      %1131 = vmatpush.msra.mxu0 %v762
      %1132 = vmatpush.msra.mxu0 %v761
      %1133 = vmatpush.msra.mxu0 %v760
      %1134 = vmatpush.msra.mxu0 %v759
      %1135 = vmatpush.msra.mxu0 %v758
      %1136 = vmatpush.msra.mxu0 %v757
      %1137 = vmatpush.msra.mxu0 %v756
      %1138 = vmatpush.msra.mxu0 %v755
      %1139 = vmatpush.msra.mxu0 %v754
      %1140 = vmatpush.msra.mxu0 %v753
      %1141 = vmatpush.msra.mxu0 %v752
      %1142 = vmatpush.msra.mxu0 %v751
      %1143 = vmatpush.msra.mxu0 %v750
      %1144 = vmatpush.msra.mxu0 %v749
      %1145 = vmatpush.msra.mxu0 %v748
      %1146 = vmatmul.f32.gmra.mxu0 %v1114
      %v1147 = vpop.f32.mrf.mxu0
      %v1148 = vadd.f32 0.0, %v1147
      %1149 = vmatmul.f32.gmra.mxu0 %v1116
      %v1150 = vpop.f32.mrf.mxu0
      %v1151 = vadd.f32 0.0, %v1150
      %1152 = vmatmul.f32.gmra.mxu0 %v1118
      %v1153 = vpop.f32.mrf.mxu0
      %v1154 = vadd.f32 0.0, %v1153
      %1155 = vmatmul.f32.gmra.mxu0 %v1120
      %v1156 = vpop.f32.mrf.mxu0
      %v1157 = vadd.f32 0.0, %v1156
      %1158 = vmatmul.f32.gmra.mxu0 %v1122
      %v1159 = vpop.f32.mrf.mxu0
      %v1160 = vadd.f32 0.0, %v1159
      %1161 = vmatmul.f32.gmra.mxu0 %v1124
      %v1162 = vpop.f32.mrf.mxu0
      %v1163 = vadd.f32 0.0, %v1162
      %1164 = vmatmul.f32.gmra.mxu0 %v1126
      %v1165 = vpop.f32.mrf.mxu0
      %v1166 = vadd.f32 0.0, %v1165
      %1167 = vmatmul.f32.gmra.mxu0 %v1128
      %v1168 = vpop.f32.mrf.mxu0
      %v1169 = vadd.f32 0.0, %v1168
      %1170 = vdwg.mxu0
      %1171 = vmatpush.msra.mxu0 %v779
      %1172 = vmatpush.msra.mxu0 %v778
      %1173 = vmatpush.msra.mxu0 %v777
      %1174 = vmatpush.msra.mxu0 %v776
      %1175 = vmatpush.msra.mxu0 %v775
      %1176 = vmatpush.msra.mxu0 %v774
      %1177 = vmatpush.msra.mxu0 %v773
      %1178 = vmatpush.msra.mxu0 %v772
      %1179 = vmatpush.msra.mxu0 %v771
      %1180 = vmatpush.msra.mxu0 %v770
      %1181 = vmatpush.msra.mxu0 %v769
      %1182 = vmatpush.msra.mxu0 %v768
      %1183 = vmatpush.msra.mxu0 %v767
      %1184 = vmatpush.msra.mxu0 %v766
      %1185 = vmatpush.msra.mxu0 %v765
      %1186 = vmatpush.msra.mxu0 %v764
      %1187 = vmatmul.f32.gmra.mxu0 %v1115
      %v1188 = vpop.f32.mrf.mxu0
      %v1189 = vadd.f32 %v1148, %v1188
      %1190 = vmatmul.f32.gmra.mxu0 %v1117
      %v1191 = vpop.f32.mrf.mxu0
      %v1192 = vadd.f32 %v1151, %v1191
      %1193 = vmatmul.f32.gmra.mxu0 %v1119
      %v1194 = vpop.f32.mrf.mxu0
      %v1195 = vadd.f32 %v1154, %v1194
      %1196 = vmatmul.f32.gmra.mxu0 %v1121
      %v1197 = vpop.f32.mrf.mxu0
      %v1198 = vadd.f32 %v1157, %v1197
      %1199 = vmatmul.f32.gmra.mxu0 %v1123
      %v1200 = vpop.f32.mrf.mxu0
      %v1201 = vadd.f32 %v1160, %v1200
      %1202 = vmatmul.f32.gmra.mxu0 %v1125
      %v1203 = vpop.f32.mrf.mxu0
      %v1204 = vadd.f32 %v1163, %v1203
      %1205 = vmatmul.f32.gmra.mxu0 %v1127
      %v1206 = vpop.f32.mrf.mxu0
      %v1207 = vadd.f32 %v1166, %v1206
      %1208 = vmatmul.f32.gmra.mxu0 %v1129
      %v1209 = vpop.f32.mrf.mxu0
      %v1210 = vadd.f32 %v1169, %v1209
      %1211 = vdwg.mxu0
      %s1212 = scalar_lea.vmem %s4, 32
      %v1213 = vld [vmem:[%s1212] sm:$0xff]
      %v1214 = vld [vmem:[%s1212 + $0x8] sm:$0xff]
      %v1216 = vsel %vm982, %v1189, 0
      %v1219 = vsel %vm982, %v1192, 0
      %v1222 = vsel %vm982, %v1195, 0
      %v1225 = vsel %vm982, %v1198, 0
      %v1228 = vsel %vm982, %v1201, 0
      %v1231 = vsel %vm982, %v1204, 0
      %v1234 = vsel %vm982, %v1207, 0
      %v1237 = vsel %vm982, %v1210, 0
      %1239 = vmatpush.msra.mxu0 0.0
      %1240 = vmatpush.msra.mxu0 0.0
      %1241 = vmatpush.msra.mxu0 0.0
      %1242 = vmatpush.msra.mxu0 0.0
      %1243 = vmatpush.msra.mxu0 0.0
      %1244 = vmatpush.msra.mxu0 0.0
      %1245 = vmatpush.msra.mxu0 0.0
      %1246 = vmatpush.msra.mxu0 0.0
      %1247 = vmatpush.msra.mxu0 0.0
      %1248 = vmatpush.msra.mxu0 0.0
      %1249 = vmatpush.msra.mxu0 0.0
      %1250 = vmatpush.msra.mxu0 0.0
      %1251 = vmatpush.msra.mxu0 0.0
      %1252 = vmatpush.msra.mxu0 0.0
      %1253 = vmatpush.msra.mxu0 %v1214
      %1254 = vmatpush.msra.mxu0 %v1213
      %1255 = vmatmul.f32.gmra.mxu0 %v1216
      %v1256 = vpop.f32.mrf.mxu0
      %v1257 = vadd.f32 0.0, %v1256
      %1258 = vmatmul.f32.gmra.mxu0 %v1219
      %v1259 = vpop.f32.mrf.mxu0
      %v1260 = vadd.f32 0.0, %v1259
      %1261 = vmatmul.f32.gmra.mxu0 %v1222
      %v1262 = vpop.f32.mrf.mxu0
      %v1263 = vadd.f32 0.0, %v1262
      %1264 = vmatmul.f32.gmra.mxu0 %v1225
      %v1265 = vpop.f32.mrf.mxu0
      %v1266 = vadd.f32 0.0, %v1265
      %1267 = vmatmul.f32.gmra.mxu0 %v1228
      %v1268 = vpop.f32.mrf.mxu0
      %v1269 = vadd.f32 0.0, %v1268
      %1270 = vmatmul.f32.gmra.mxu0 %v1231
      %v1271 = vpop.f32.mrf.mxu0
      %v1272 = vadd.f32 0.0, %v1271
      %1273 = vmatmul.f32.gmra.mxu0 %v1234
      %v1274 = vpop.f32.mrf.mxu0
      %v1275 = vadd.f32 0.0, %v1274
      %1276 = vmatmul.f32.gmra.mxu0 %v1237
      %v1277 = vpop.f32.mrf.mxu0
      %v1278 = vadd.f32 0.0, %v1277
      %1279 = vdwg.mxu0
      %v1280 = vadd.f32 %v1090, %v1257
      %v1281 = vadd.f32 %v1093, %v1260
      %v1282 = vadd.f32 %v1096, %v1263
      %v1283 = vadd.f32 %v1099, %v1266
      %v1284 = vadd.f32 %v1102, %v1269
      %v1285 = vadd.f32 %v1105, %v1272
      %v1286 = vadd.f32 %v1108, %v1275
      %v1287 = vadd.f32 %v1111, %v1278
      %s1288 = scalar_lea.vmem %s3, 384
      %v1289 = vld [vmem:[%s1288] sm:$0xff]
      %v1290 = vld [vmem:[%s1288 + $0x8] sm:$0xff]
      %v1291 = vld [vmem:[%s1288 + $0x10] sm:$0xff]
      %v1292 = vld [vmem:[%s1288 + $0x18] sm:$0xff]
      %v1293 = vld [vmem:[%s1288 + $0x20] sm:$0xff]
      %v1294 = vld [vmem:[%s1288 + $0x28] sm:$0xff]
      %v1295 = vld [vmem:[%s1288 + $0x30] sm:$0xff]
      %v1296 = vld [vmem:[%s1288 + $0x38] sm:$0xff]
      %v1297 = vld [vmem:[%s1288 + $0x40] sm:$0xff]
      %v1298 = vld [vmem:[%s1288 + $0x48] sm:$0xff]
      %v1299 = vld [vmem:[%s1288 + $0x50] sm:$0xff]
      %v1300 = vld [vmem:[%s1288 + $0x58] sm:$0xff]
      %v1301 = vld [vmem:[%s1288 + $0x60] sm:$0xff]
      %v1302 = vld [vmem:[%s1288 + $0x68] sm:$0xff]
      %v1303 = vld [vmem:[%s1288 + $0x70] sm:$0xff]
      %v1304 = vld [vmem:[%s1288 + $0x78] sm:$0xff]
      %1305 = vmatpush.msra.mxu0 %v763
      %1306 = vmatpush.msra.mxu0 %v762
      %1307 = vmatpush.msra.mxu0 %v761
      %1308 = vmatpush.msra.mxu0 %v760
      %1309 = vmatpush.msra.mxu0 %v759
      %1310 = vmatpush.msra.mxu0 %v758
      %1311 = vmatpush.msra.mxu0 %v757
      %1312 = vmatpush.msra.mxu0 %v756
      %1313 = vmatpush.msra.mxu0 %v755
      %1314 = vmatpush.msra.mxu0 %v754
      %1315 = vmatpush.msra.mxu0 %v753
      %1316 = vmatpush.msra.mxu0 %v752
      %1317 = vmatpush.msra.mxu0 %v751
      %1318 = vmatpush.msra.mxu0 %v750
      %1319 = vmatpush.msra.mxu0 %v749
      %1320 = vmatpush.msra.mxu0 %v748
      %1321 = vmatmul.f32.gmra.mxu0 %v1289
      %v1322 = vpop.f32.mrf.mxu0
      %v1323 = vadd.f32 0.0, %v1322
      %1324 = vmatmul.f32.gmra.mxu0 %v1291
      %v1325 = vpop.f32.mrf.mxu0
      %v1326 = vadd.f32 0.0, %v1325
      %1327 = vmatmul.f32.gmra.mxu0 %v1293
      %v1328 = vpop.f32.mrf.mxu0
      %v1329 = vadd.f32 0.0, %v1328
      %1330 = vmatmul.f32.gmra.mxu0 %v1295
      %v1331 = vpop.f32.mrf.mxu0
      %v1332 = vadd.f32 0.0, %v1331
      %1333 = vmatmul.f32.gmra.mxu0 %v1297
      %v1334 = vpop.f32.mrf.mxu0
      %v1335 = vadd.f32 0.0, %v1334
      %1336 = vmatmul.f32.gmra.mxu0 %v1299
      %v1337 = vpop.f32.mrf.mxu0
      %v1338 = vadd.f32 0.0, %v1337
      %1339 = vmatmul.f32.gmra.mxu0 %v1301
      %v1340 = vpop.f32.mrf.mxu0
      %v1341 = vadd.f32 0.0, %v1340
      %1342 = vmatmul.f32.gmra.mxu0 %v1303
      %v1343 = vpop.f32.mrf.mxu0
      %v1344 = vadd.f32 0.0, %v1343
      %1345 = vdwg.mxu0
      %1346 = vmatpush.msra.mxu0 %v779
      %1347 = vmatpush.msra.mxu0 %v778
      %1348 = vmatpush.msra.mxu0 %v777
      %1349 = vmatpush.msra.mxu0 %v776
      %1350 = vmatpush.msra.mxu0 %v775
      %1351 = vmatpush.msra.mxu0 %v774
      %1352 = vmatpush.msra.mxu0 %v773
      %1353 = vmatpush.msra.mxu0 %v772
      %1354 = vmatpush.msra.mxu0 %v771
      %1355 = vmatpush.msra.mxu0 %v770
      %1356 = vmatpush.msra.mxu0 %v769
      %1357 = vmatpush.msra.mxu0 %v768
      %1358 = vmatpush.msra.mxu0 %v767
      %1359 = vmatpush.msra.mxu0 %v766
      %1360 = vmatpush.msra.mxu0 %v765
      %1361 = vmatpush.msra.mxu0 %v764
      %1362 = vmatmul.f32.gmra.mxu0 %v1290
      %v1363 = vpop.f32.mrf.mxu0
      %v1364 = vadd.f32 %v1323, %v1363
      %1365 = vmatmul.f32.gmra.mxu0 %v1292
      %v1366 = vpop.f32.mrf.mxu0
      %v1367 = vadd.f32 %v1326, %v1366
      %1368 = vmatmul.f32.gmra.mxu0 %v1294
      %v1369 = vpop.f32.mrf.mxu0
      %v1370 = vadd.f32 %v1329, %v1369
      %1371 = vmatmul.f32.gmra.mxu0 %v1296
      %v1372 = vpop.f32.mrf.mxu0
      %v1373 = vadd.f32 %v1332, %v1372
      %1374 = vmatmul.f32.gmra.mxu0 %v1298
      %v1375 = vpop.f32.mrf.mxu0
      %v1376 = vadd.f32 %v1335, %v1375
      %1377 = vmatmul.f32.gmra.mxu0 %v1300
      %v1378 = vpop.f32.mrf.mxu0
      %v1379 = vadd.f32 %v1338, %v1378
      %1380 = vmatmul.f32.gmra.mxu0 %v1302
      %v1381 = vpop.f32.mrf.mxu0
      %v1382 = vadd.f32 %v1341, %v1381
      %1383 = vmatmul.f32.gmra.mxu0 %v1304
      %v1384 = vpop.f32.mrf.mxu0
      %v1385 = vadd.f32 %v1344, %v1384
      %1386 = vdwg.mxu0
      %s1387 = scalar_lea.vmem %s4, 48
      %v1388 = vld [vmem:[%s1387] sm:$0xff]
      %v1389 = vld [vmem:[%s1387 + $0x8] sm:$0xff]
      %v1391 = vsel %vm982, %v1364, 0
      %v1394 = vsel %vm982, %v1367, 0
      %v1397 = vsel %vm982, %v1370, 0
      %v1400 = vsel %vm982, %v1373, 0
      %v1403 = vsel %vm982, %v1376, 0
      %v1406 = vsel %vm982, %v1379, 0
      %v1409 = vsel %vm982, %v1382, 0
      %v1412 = vsel %vm982, %v1385, 0
      %1414 = vmatpush.msra.mxu0 0.0
      %1415 = vmatpush.msra.mxu0 0.0
      %1416 = vmatpush.msra.mxu0 0.0
      %1417 = vmatpush.msra.mxu0 0.0
      %1418 = vmatpush.msra.mxu0 0.0
      %1419 = vmatpush.msra.mxu0 0.0
      %1420 = vmatpush.msra.mxu0 0.0
      %1421 = vmatpush.msra.mxu0 0.0
      %1422 = vmatpush.msra.mxu0 0.0
      %1423 = vmatpush.msra.mxu0 0.0
      %1424 = vmatpush.msra.mxu0 0.0
      %1425 = vmatpush.msra.mxu0 0.0
      %1426 = vmatpush.msra.mxu0 0.0
      %1427 = vmatpush.msra.mxu0 0.0
      %1428 = vmatpush.msra.mxu0 %v1389
      %1429 = vmatpush.msra.mxu0 %v1388
      %1430 = vmatmul.f32.gmra.mxu0 %v1391
      %v1431 = vpop.f32.mrf.mxu0
      %v1432 = vadd.f32 0.0, %v1431
      %1433 = vmatmul.f32.gmra.mxu0 %v1394
      %v1434 = vpop.f32.mrf.mxu0
      %v1435 = vadd.f32 0.0, %v1434
      %1436 = vmatmul.f32.gmra.mxu0 %v1397
      %v1437 = vpop.f32.mrf.mxu0
      %v1438 = vadd.f32 0.0, %v1437
      %1439 = vmatmul.f32.gmra.mxu0 %v1400
      %v1440 = vpop.f32.mrf.mxu0
      %v1441 = vadd.f32 0.0, %v1440
      %1442 = vmatmul.f32.gmra.mxu0 %v1403
      %v1443 = vpop.f32.mrf.mxu0
      %v1444 = vadd.f32 0.0, %v1443
      %1445 = vmatmul.f32.gmra.mxu0 %v1406
      %v1446 = vpop.f32.mrf.mxu0
      %v1447 = vadd.f32 0.0, %v1446
      %1448 = vmatmul.f32.gmra.mxu0 %v1409
      %v1449 = vpop.f32.mrf.mxu0
      %v1450 = vadd.f32 0.0, %v1449
      %1451 = vmatmul.f32.gmra.mxu0 %v1412
      %v1452 = vpop.f32.mrf.mxu0
      %v1453 = vadd.f32 0.0, %v1452
      %1454 = vdwg.mxu0
      %v1455 = vadd.f32 %v1280, %v1432
      %v1456 = vadd.f32 %v1281, %v1435
      %v1457 = vadd.f32 %v1282, %v1438
      %v1458 = vadd.f32 %v1283, %v1441
      %v1459 = vadd.f32 %v1284, %v1444
      %v1460 = vadd.f32 %v1285, %v1447
      %v1461 = vadd.f32 %v1286, %v1450
      %v1462 = vadd.f32 %v1287, %v1453
      %s1463 = scalar_lea.vmem %s3, 512
      %v1464 = vld [vmem:[%s1463] sm:$0xff]
      %v1465 = vld [vmem:[%s1463 + $0x8] sm:$0xff]
      %v1466 = vld [vmem:[%s1463 + $0x10] sm:$0xff]
      %v1467 = vld [vmem:[%s1463 + $0x18] sm:$0xff]
      %v1468 = vld [vmem:[%s1463 + $0x20] sm:$0xff]
      %v1469 = vld [vmem:[%s1463 + $0x28] sm:$0xff]
      %v1470 = vld [vmem:[%s1463 + $0x30] sm:$0xff]
      %v1471 = vld [vmem:[%s1463 + $0x38] sm:$0xff]
      %v1472 = vld [vmem:[%s1463 + $0x40] sm:$0xff]
      %v1473 = vld [vmem:[%s1463 + $0x48] sm:$0xff]
      %v1474 = vld [vmem:[%s1463 + $0x50] sm:$0xff]
      %v1475 = vld [vmem:[%s1463 + $0x58] sm:$0xff]
      %v1476 = vld [vmem:[%s1463 + $0x60] sm:$0xff]
      %v1477 = vld [vmem:[%s1463 + $0x68] sm:$0xff]
      %v1478 = vld [vmem:[%s1463 + $0x70] sm:$0xff]
      %v1479 = vld [vmem:[%s1463 + $0x78] sm:$0xff]
      %1480 = vmatpush.msra.mxu0 %v763
      %1481 = vmatpush.msra.mxu0 %v762
      %1482 = vmatpush.msra.mxu0 %v761
      %1483 = vmatpush.msra.mxu0 %v760
      %1484 = vmatpush.msra.mxu0 %v759
      %1485 = vmatpush.msra.mxu0 %v758
      %1486 = vmatpush.msra.mxu0 %v757
      %1487 = vmatpush.msra.mxu0 %v756
      %1488 = vmatpush.msra.mxu0 %v755
      %1489 = vmatpush.msra.mxu0 %v754
      %1490 = vmatpush.msra.mxu0 %v753
      %1491 = vmatpush.msra.mxu0 %v752
      %1492 = vmatpush.msra.mxu0 %v751
      %1493 = vmatpush.msra.mxu0 %v750
      %1494 = vmatpush.msra.mxu0 %v749
      %1495 = vmatpush.msra.mxu0 %v748
      %1496 = vmatmul.f32.gmra.mxu0 %v1464
      %v1497 = vpop.f32.mrf.mxu0
      %v1498 = vadd.f32 0.0, %v1497
      %1499 = vmatmul.f32.gmra.mxu0 %v1466
      %v1500 = vpop.f32.mrf.mxu0
      %v1501 = vadd.f32 0.0, %v1500
      %1502 = vmatmul.f32.gmra.mxu0 %v1468
      %v1503 = vpop.f32.mrf.mxu0
      %v1504 = vadd.f32 0.0, %v1503
      %1505 = vmatmul.f32.gmra.mxu0 %v1470
      %v1506 = vpop.f32.mrf.mxu0
      %v1507 = vadd.f32 0.0, %v1506
      %1508 = vmatmul.f32.gmra.mxu0 %v1472
      %v1509 = vpop.f32.mrf.mxu0
      %v1510 = vadd.f32 0.0, %v1509
      %1511 = vmatmul.f32.gmra.mxu0 %v1474
      %v1512 = vpop.f32.mrf.mxu0
      %v1513 = vadd.f32 0.0, %v1512
      %1514 = vmatmul.f32.gmra.mxu0 %v1476
      %v1515 = vpop.f32.mrf.mxu0
      %v1516 = vadd.f32 0.0, %v1515
      %1517 = vmatmul.f32.gmra.mxu0 %v1478
      %v1518 = vpop.f32.mrf.mxu0
      %v1519 = vadd.f32 0.0, %v1518
      %1520 = vdwg.mxu0
      %1521 = vmatpush.msra.mxu0 %v779
      %1522 = vmatpush.msra.mxu0 %v778
      %1523 = vmatpush.msra.mxu0 %v777
      %1524 = vmatpush.msra.mxu0 %v776
      %1525 = vmatpush.msra.mxu0 %v775
      %1526 = vmatpush.msra.mxu0 %v774
      %1527 = vmatpush.msra.mxu0 %v773
      %1528 = vmatpush.msra.mxu0 %v772
      %1529 = vmatpush.msra.mxu0 %v771
      %1530 = vmatpush.msra.mxu0 %v770
      %1531 = vmatpush.msra.mxu0 %v769
      %1532 = vmatpush.msra.mxu0 %v768
      %1533 = vmatpush.msra.mxu0 %v767
      %1534 = vmatpush.msra.mxu0 %v766
      %1535 = vmatpush.msra.mxu0 %v765
      %1536 = vmatpush.msra.mxu0 %v764
      %1537 = vmatmul.f32.gmra.mxu0 %v1465
      %v1538 = vpop.f32.mrf.mxu0
      %v1539 = vadd.f32 %v1498, %v1538
      %1540 = vmatmul.f32.gmra.mxu0 %v1467
      %v1541 = vpop.f32.mrf.mxu0
      %v1542 = vadd.f32 %v1501, %v1541
      %1543 = vmatmul.f32.gmra.mxu0 %v1469
      %v1544 = vpop.f32.mrf.mxu0
      %v1545 = vadd.f32 %v1504, %v1544
      %1546 = vmatmul.f32.gmra.mxu0 %v1471
      %v1547 = vpop.f32.mrf.mxu0
      %v1548 = vadd.f32 %v1507, %v1547
      %1549 = vmatmul.f32.gmra.mxu0 %v1473
      %v1550 = vpop.f32.mrf.mxu0
      %v1551 = vadd.f32 %v1510, %v1550
      %1552 = vmatmul.f32.gmra.mxu0 %v1475
      %v1553 = vpop.f32.mrf.mxu0
      %v1554 = vadd.f32 %v1513, %v1553
      %1555 = vmatmul.f32.gmra.mxu0 %v1477
      %v1556 = vpop.f32.mrf.mxu0
      %v1557 = vadd.f32 %v1516, %v1556
      %1558 = vmatmul.f32.gmra.mxu0 %v1479
      %v1559 = vpop.f32.mrf.mxu0
      %v1560 = vadd.f32 %v1519, %v1559
      %1561 = vdwg.mxu0
      %s1562 = scalar_lea.vmem %s4, 64
      %v1563 = vld [vmem:[%s1562] sm:$0xff]
      %v1564 = vld [vmem:[%s1562 + $0x8] sm:$0xff]
      %v1566 = vsel %vm982, %v1539, 0
      %v1569 = vsel %vm982, %v1542, 0
      %v1572 = vsel %vm982, %v1545, 0
      %v1575 = vsel %vm982, %v1548, 0
      %v1578 = vsel %vm982, %v1551, 0
      %v1581 = vsel %vm982, %v1554, 0
      %v1584 = vsel %vm982, %v1557, 0
      %v1587 = vsel %vm982, %v1560, 0
      %1589 = vmatpush.msra.mxu0 0.0
      %1590 = vmatpush.msra.mxu0 0.0
      %1591 = vmatpush.msra.mxu0 0.0
      %1592 = vmatpush.msra.mxu0 0.0
      %1593 = vmatpush.msra.mxu0 0.0
      %1594 = vmatpush.msra.mxu0 0.0
      %1595 = vmatpush.msra.mxu0 0.0
      %1596 = vmatpush.msra.mxu0 0.0
      %1597 = vmatpush.msra.mxu0 0.0
      %1598 = vmatpush.msra.mxu0 0.0
      %1599 = vmatpush.msra.mxu0 0.0
      %1600 = vmatpush.msra.mxu0 0.0
      %1601 = vmatpush.msra.mxu0 0.0
      %1602 = vmatpush.msra.mxu0 0.0
      %1603 = vmatpush.msra.mxu0 %v1564
      %1604 = vmatpush.msra.mxu0 %v1563
      %1605 = vmatmul.f32.gmra.mxu0 %v1566
      %v1606 = vpop.f32.mrf.mxu0
      %v1607 = vadd.f32 0.0, %v1606
      %1608 = vmatmul.f32.gmra.mxu0 %v1569
      %v1609 = vpop.f32.mrf.mxu0
      %v1610 = vadd.f32 0.0, %v1609
      %1611 = vmatmul.f32.gmra.mxu0 %v1572
      %v1612 = vpop.f32.mrf.mxu0
      %v1613 = vadd.f32 0.0, %v1612
      %1614 = vmatmul.f32.gmra.mxu0 %v1575
      %v1615 = vpop.f32.mrf.mxu0
      %v1616 = vadd.f32 0.0, %v1615
      %1617 = vmatmul.f32.gmra.mxu0 %v1578
      %v1618 = vpop.f32.mrf.mxu0
      %v1619 = vadd.f32 0.0, %v1618
      %1620 = vmatmul.f32.gmra.mxu0 %v1581
      %v1621 = vpop.f32.mrf.mxu0
      %v1622 = vadd.f32 0.0, %v1621
      %1623 = vmatmul.f32.gmra.mxu0 %v1584
      %v1624 = vpop.f32.mrf.mxu0
      %v1625 = vadd.f32 0.0, %v1624
      %1626 = vmatmul.f32.gmra.mxu0 %v1587
      %v1627 = vpop.f32.mrf.mxu0
      %v1628 = vadd.f32 0.0, %v1627
      %1629 = vdwg.mxu0
      %v1630 = vadd.f32 %v1455, %v1607
      %v1631 = vadd.f32 %v1456, %v1610
      %v1632 = vadd.f32 %v1457, %v1613
      %v1633 = vadd.f32 %v1458, %v1616
      %v1634 = vadd.f32 %v1459, %v1619
      %v1635 = vadd.f32 %v1460, %v1622
      %v1636 = vadd.f32 %v1461, %v1625
      %v1637 = vadd.f32 %v1462, %v1628
      %s1638 = scalar_lea.vmem %s3, 640
      %v1639 = vld [vmem:[%s1638] sm:$0xff]
      %v1640 = vld [vmem:[%s1638 + $0x8] sm:$0xff]
      %v1641 = vld [vmem:[%s1638 + $0x10] sm:$0xff]
      %v1642 = vld [vmem:[%s1638 + $0x18] sm:$0xff]
      %v1643 = vld [vmem:[%s1638 + $0x20] sm:$0xff]
      %v1644 = vld [vmem:[%s1638 + $0x28] sm:$0xff]
      %v1645 = vld [vmem:[%s1638 + $0x30] sm:$0xff]
      %v1646 = vld [vmem:[%s1638 + $0x38] sm:$0xff]
      %v1647 = vld [vmem:[%s1638 + $0x40] sm:$0xff]
      %v1648 = vld [vmem:[%s1638 + $0x48] sm:$0xff]
      %v1649 = vld [vmem:[%s1638 + $0x50] sm:$0xff]
      %v1650 = vld [vmem:[%s1638 + $0x58] sm:$0xff]
      %v1651 = vld [vmem:[%s1638 + $0x60] sm:$0xff]
      %v1652 = vld [vmem:[%s1638 + $0x68] sm:$0xff]
      %v1653 = vld [vmem:[%s1638 + $0x70] sm:$0xff]
      %v1654 = vld [vmem:[%s1638 + $0x78] sm:$0xff]
      %1655 = vmatpush.msra.mxu0 %v763
      %1656 = vmatpush.msra.mxu0 %v762
      %1657 = vmatpush.msra.mxu0 %v761
      %1658 = vmatpush.msra.mxu0 %v760
      %1659 = vmatpush.msra.mxu0 %v759
      %1660 = vmatpush.msra.mxu0 %v758
      %1661 = vmatpush.msra.mxu0 %v757
      %1662 = vmatpush.msra.mxu0 %v756
      %1663 = vmatpush.msra.mxu0 %v755
      %1664 = vmatpush.msra.mxu0 %v754
      %1665 = vmatpush.msra.mxu0 %v753
      %1666 = vmatpush.msra.mxu0 %v752
      %1667 = vmatpush.msra.mxu0 %v751
      %1668 = vmatpush.msra.mxu0 %v750
      %1669 = vmatpush.msra.mxu0 %v749
      %1670 = vmatpush.msra.mxu0 %v748
      %1671 = vmatmul.f32.gmra.mxu0 %v1639
      %v1672 = vpop.f32.mrf.mxu0
      %v1673 = vadd.f32 0.0, %v1672
      %1674 = vmatmul.f32.gmra.mxu0 %v1641
      %v1675 = vpop.f32.mrf.mxu0
      %v1676 = vadd.f32 0.0, %v1675
      %1677 = vmatmul.f32.gmra.mxu0 %v1643
      %v1678 = vpop.f32.mrf.mxu0
      %v1679 = vadd.f32 0.0, %v1678
      %1680 = vmatmul.f32.gmra.mxu0 %v1645
      %v1681 = vpop.f32.mrf.mxu0
      %v1682 = vadd.f32 0.0, %v1681
      %1683 = vmatmul.f32.gmra.mxu0 %v1647
      %v1684 = vpop.f32.mrf.mxu0
      %v1685 = vadd.f32 0.0, %v1684
      %1686 = vmatmul.f32.gmra.mxu0 %v1649
      %v1687 = vpop.f32.mrf.mxu0
      %v1688 = vadd.f32 0.0, %v1687
      %1689 = vmatmul.f32.gmra.mxu0 %v1651
      %v1690 = vpop.f32.mrf.mxu0
      %v1691 = vadd.f32 0.0, %v1690
      %1692 = vmatmul.f32.gmra.mxu0 %v1653
      %v1693 = vpop.f32.mrf.mxu0
      %v1694 = vadd.f32 0.0, %v1693
      %1695 = vdwg.mxu0
      %1696 = vmatpush.msra.mxu0 %v779
      %1697 = vmatpush.msra.mxu0 %v778
      %1698 = vmatpush.msra.mxu0 %v777
      %1699 = vmatpush.msra.mxu0 %v776
      %1700 = vmatpush.msra.mxu0 %v775
      %1701 = vmatpush.msra.mxu0 %v774
      %1702 = vmatpush.msra.mxu0 %v773
      %1703 = vmatpush.msra.mxu0 %v772
      %1704 = vmatpush.msra.mxu0 %v771
      %1705 = vmatpush.msra.mxu0 %v770
      %1706 = vmatpush.msra.mxu0 %v769
      %1707 = vmatpush.msra.mxu0 %v768
      %1708 = vmatpush.msra.mxu0 %v767
      %1709 = vmatpush.msra.mxu0 %v766
      %1710 = vmatpush.msra.mxu0 %v765
      %1711 = vmatpush.msra.mxu0 %v764
      %1712 = vmatmul.f32.gmra.mxu0 %v1640
      %v1713 = vpop.f32.mrf.mxu0
      %v1714 = vadd.f32 %v1673, %v1713
      %1715 = vmatmul.f32.gmra.mxu0 %v1642
      %v1716 = vpop.f32.mrf.mxu0
      %v1717 = vadd.f32 %v1676, %v1716
      %1718 = vmatmul.f32.gmra.mxu0 %v1644
      %v1719 = vpop.f32.mrf.mxu0
      %v1720 = vadd.f32 %v1679, %v1719
      %1721 = vmatmul.f32.gmra.mxu0 %v1646
      %v1722 = vpop.f32.mrf.mxu0
      %v1723 = vadd.f32 %v1682, %v1722
      %1724 = vmatmul.f32.gmra.mxu0 %v1648
      %v1725 = vpop.f32.mrf.mxu0
      %v1726 = vadd.f32 %v1685, %v1725
      %1727 = vmatmul.f32.gmra.mxu0 %v1650
      %v1728 = vpop.f32.mrf.mxu0
      %v1729 = vadd.f32 %v1688, %v1728
      %1730 = vmatmul.f32.gmra.mxu0 %v1652
      %v1731 = vpop.f32.mrf.mxu0
      %v1732 = vadd.f32 %v1691, %v1731
      %1733 = vmatmul.f32.gmra.mxu0 %v1654
      %v1734 = vpop.f32.mrf.mxu0
      %v1735 = vadd.f32 %v1694, %v1734
      %1736 = vdwg.mxu0
      %s1737 = scalar_lea.vmem %s4, 80
      %v1738 = vld [vmem:[%s1737] sm:$0xff]
      %v1739 = vld [vmem:[%s1737 + $0x8] sm:$0xff]
      %v1741 = vsel %vm982, %v1714, 0
      %v1744 = vsel %vm982, %v1717, 0
      %v1747 = vsel %vm982, %v1720, 0
      %v1750 = vsel %vm982, %v1723, 0
      %v1753 = vsel %vm982, %v1726, 0
      %v1756 = vsel %vm982, %v1729, 0
      %v1759 = vsel %vm982, %v1732, 0
      %v1762 = vsel %vm982, %v1735, 0
      %1764 = vmatpush.msra.mxu0 0.0
      %1765 = vmatpush.msra.mxu0 0.0
      %1766 = vmatpush.msra.mxu0 0.0
      %1767 = vmatpush.msra.mxu0 0.0
      %1768 = vmatpush.msra.mxu0 0.0
      %1769 = vmatpush.msra.mxu0 0.0
      %1770 = vmatpush.msra.mxu0 0.0
      %1771 = vmatpush.msra.mxu0 0.0
      %1772 = vmatpush.msra.mxu0 0.0
      %1773 = vmatpush.msra.mxu0 0.0
      %1774 = vmatpush.msra.mxu0 0.0
      %1775 = vmatpush.msra.mxu0 0.0
      %1776 = vmatpush.msra.mxu0 0.0
      %1777 = vmatpush.msra.mxu0 0.0
      %1778 = vmatpush.msra.mxu0 %v1739
      %1779 = vmatpush.msra.mxu0 %v1738
      %1780 = vmatmul.f32.gmra.mxu0 %v1741
      %v1781 = vpop.f32.mrf.mxu0
      %v1782 = vadd.f32 0.0, %v1781
      %1783 = vmatmul.f32.gmra.mxu0 %v1744
      %v1784 = vpop.f32.mrf.mxu0
      %v1785 = vadd.f32 0.0, %v1784
      %1786 = vmatmul.f32.gmra.mxu0 %v1747
      %v1787 = vpop.f32.mrf.mxu0
      %v1788 = vadd.f32 0.0, %v1787
      %1789 = vmatmul.f32.gmra.mxu0 %v1750
      %v1790 = vpop.f32.mrf.mxu0
      %v1791 = vadd.f32 0.0, %v1790
      %1792 = vmatmul.f32.gmra.mxu0 %v1753
      %v1793 = vpop.f32.mrf.mxu0
      %v1794 = vadd.f32 0.0, %v1793
      %1795 = vmatmul.f32.gmra.mxu0 %v1756
      %v1796 = vpop.f32.mrf.mxu0
      %v1797 = vadd.f32 0.0, %v1796
      %1798 = vmatmul.f32.gmra.mxu0 %v1759
      %v1799 = vpop.f32.mrf.mxu0
      %v1800 = vadd.f32 0.0, %v1799
      %1801 = vmatmul.f32.gmra.mxu0 %v1762
      %v1802 = vpop.f32.mrf.mxu0
      %v1803 = vadd.f32 0.0, %v1802
      %1804 = vdwg.mxu0
      %v1805 = vadd.f32 %v1630, %v1782
      %v1806 = vadd.f32 %v1631, %v1785
      %v1807 = vadd.f32 %v1632, %v1788
      %v1808 = vadd.f32 %v1633, %v1791
      %v1809 = vadd.f32 %v1634, %v1794
      %v1810 = vadd.f32 %v1635, %v1797
      %v1811 = vadd.f32 %v1636, %v1800
      %v1812 = vadd.f32 %v1637, %v1803
      %s1813 = scalar_lea.vmem %s3, 768
      %v1814 = vld [vmem:[%s1813] sm:$0xff]
      %v1815 = vld [vmem:[%s1813 + $0x8] sm:$0xff]
      %v1816 = vld [vmem:[%s1813 + $0x10] sm:$0xff]
      %v1817 = vld [vmem:[%s1813 + $0x18] sm:$0xff]
      %v1818 = vld [vmem:[%s1813 + $0x20] sm:$0xff]
      %v1819 = vld [vmem:[%s1813 + $0x28] sm:$0xff]
      %v1820 = vld [vmem:[%s1813 + $0x30] sm:$0xff]
      %v1821 = vld [vmem:[%s1813 + $0x38] sm:$0xff]
      %v1822 = vld [vmem:[%s1813 + $0x40] sm:$0xff]
      %v1823 = vld [vmem:[%s1813 + $0x48] sm:$0xff]
      %v1824 = vld [vmem:[%s1813 + $0x50] sm:$0xff]
      %v1825 = vld [vmem:[%s1813 + $0x58] sm:$0xff]
      %v1826 = vld [vmem:[%s1813 + $0x60] sm:$0xff]
      %v1827 = vld [vmem:[%s1813 + $0x68] sm:$0xff]
      %v1828 = vld [vmem:[%s1813 + $0x70] sm:$0xff]
      %v1829 = vld [vmem:[%s1813 + $0x78] sm:$0xff]
      %1830 = vmatpush.msra.mxu0 %v763
      %1831 = vmatpush.msra.mxu0 %v762
      %1832 = vmatpush.msra.mxu0 %v761
      %1833 = vmatpush.msra.mxu0 %v760
      %1834 = vmatpush.msra.mxu0 %v759
      %1835 = vmatpush.msra.mxu0 %v758
      %1836 = vmatpush.msra.mxu0 %v757
      %1837 = vmatpush.msra.mxu0 %v756
      %1838 = vmatpush.msra.mxu0 %v755
      %1839 = vmatpush.msra.mxu0 %v754
      %1840 = vmatpush.msra.mxu0 %v753
      %1841 = vmatpush.msra.mxu0 %v752
      %1842 = vmatpush.msra.mxu0 %v751
      %1843 = vmatpush.msra.mxu0 %v750
      %1844 = vmatpush.msra.mxu0 %v749
      %1845 = vmatpush.msra.mxu0 %v748
      %1846 = vmatmul.f32.gmra.mxu0 %v1814
      %v1847 = vpop.f32.mrf.mxu0
      %v1848 = vadd.f32 0.0, %v1847
      %1849 = vmatmul.f32.gmra.mxu0 %v1816
      %v1850 = vpop.f32.mrf.mxu0
      %v1851 = vadd.f32 0.0, %v1850
      %1852 = vmatmul.f32.gmra.mxu0 %v1818
      %v1853 = vpop.f32.mrf.mxu0
      %v1854 = vadd.f32 0.0, %v1853
      %1855 = vmatmul.f32.gmra.mxu0 %v1820
      %v1856 = vpop.f32.mrf.mxu0
      %v1857 = vadd.f32 0.0, %v1856
      %1858 = vmatmul.f32.gmra.mxu0 %v1822
      %v1859 = vpop.f32.mrf.mxu0
      %v1860 = vadd.f32 0.0, %v1859
      %1861 = vmatmul.f32.gmra.mxu0 %v1824
      %v1862 = vpop.f32.mrf.mxu0
      %v1863 = vadd.f32 0.0, %v1862
      %1864 = vmatmul.f32.gmra.mxu0 %v1826
      %v1865 = vpop.f32.mrf.mxu0
      %v1866 = vadd.f32 0.0, %v1865
      %1867 = vmatmul.f32.gmra.mxu0 %v1828
      %v1868 = vpop.f32.mrf.mxu0
      %v1869 = vadd.f32 0.0, %v1868
      %1870 = vdwg.mxu0
      %1871 = vmatpush.msra.mxu0 %v779
      %1872 = vmatpush.msra.mxu0 %v778
      %1873 = vmatpush.msra.mxu0 %v777
      %1874 = vmatpush.msra.mxu0 %v776
      %1875 = vmatpush.msra.mxu0 %v775
      %1876 = vmatpush.msra.mxu0 %v774
      %1877 = vmatpush.msra.mxu0 %v773
      %1878 = vmatpush.msra.mxu0 %v772
      %1879 = vmatpush.msra.mxu0 %v771
      %1880 = vmatpush.msra.mxu0 %v770
      %1881 = vmatpush.msra.mxu0 %v769
      %1882 = vmatpush.msra.mxu0 %v768
      %1883 = vmatpush.msra.mxu0 %v767
      %1884 = vmatpush.msra.mxu0 %v766
      %1885 = vmatpush.msra.mxu0 %v765
      %1886 = vmatpush.msra.mxu0 %v764
      %1887 = vmatmul.f32.gmra.mxu0 %v1815
      %v1888 = vpop.f32.mrf.mxu0
      %v1889 = vadd.f32 %v1848, %v1888
      %1890 = vmatmul.f32.gmra.mxu0 %v1817
      %v1891 = vpop.f32.mrf.mxu0
      %v1892 = vadd.f32 %v1851, %v1891
      %1893 = vmatmul.f32.gmra.mxu0 %v1819
      %v1894 = vpop.f32.mrf.mxu0
      %v1895 = vadd.f32 %v1854, %v1894
      %1896 = vmatmul.f32.gmra.mxu0 %v1821
      %v1897 = vpop.f32.mrf.mxu0
      %v1898 = vadd.f32 %v1857, %v1897
      %1899 = vmatmul.f32.gmra.mxu0 %v1823
      %v1900 = vpop.f32.mrf.mxu0
      %v1901 = vadd.f32 %v1860, %v1900
      %1902 = vmatmul.f32.gmra.mxu0 %v1825
      %v1903 = vpop.f32.mrf.mxu0
      %v1904 = vadd.f32 %v1863, %v1903
      %1905 = vmatmul.f32.gmra.mxu0 %v1827
      %v1906 = vpop.f32.mrf.mxu0
      %v1907 = vadd.f32 %v1866, %v1906
      %1908 = vmatmul.f32.gmra.mxu0 %v1829
      %v1909 = vpop.f32.mrf.mxu0
      %v1910 = vadd.f32 %v1869, %v1909
      %1911 = vdwg.mxu0
      %s1912 = scalar_lea.vmem %s4, 96
      %v1913 = vld [vmem:[%s1912] sm:$0xff]
      %v1914 = vld [vmem:[%s1912 + $0x8] sm:$0xff]
      %v1916 = vsel %vm982, %v1889, 0
      %v1919 = vsel %vm982, %v1892, 0
      %v1922 = vsel %vm982, %v1895, 0
      %v1925 = vsel %vm982, %v1898, 0
      %v1928 = vsel %vm982, %v1901, 0
      %v1931 = vsel %vm982, %v1904, 0
      %v1934 = vsel %vm982, %v1907, 0
      %v1937 = vsel %vm982, %v1910, 0
      %1939 = vmatpush.msra.mxu0 0.0
      %1940 = vmatpush.msra.mxu0 0.0
      %1941 = vmatpush.msra.mxu0 0.0
      %1942 = vmatpush.msra.mxu0 0.0
      %1943 = vmatpush.msra.mxu0 0.0
      %1944 = vmatpush.msra.mxu0 0.0
      %1945 = vmatpush.msra.mxu0 0.0
      %1946 = vmatpush.msra.mxu0 0.0
      %1947 = vmatpush.msra.mxu0 0.0
      %1948 = vmatpush.msra.mxu0 0.0
      %1949 = vmatpush.msra.mxu0 0.0
      %1950 = vmatpush.msra.mxu0 0.0
      %1951 = vmatpush.msra.mxu0 0.0
      %1952 = vmatpush.msra.mxu0 0.0
      %1953 = vmatpush.msra.mxu0 %v1914
      %1954 = vmatpush.msra.mxu0 %v1913
      %1955 = vmatmul.f32.gmra.mxu0 %v1916
      %v1956 = vpop.f32.mrf.mxu0
      %v1957 = vadd.f32 0.0, %v1956
      %1958 = vmatmul.f32.gmra.mxu0 %v1919
      %v1959 = vpop.f32.mrf.mxu0
      %v1960 = vadd.f32 0.0, %v1959
      %1961 = vmatmul.f32.gmra.mxu0 %v1922
      %v1962 = vpop.f32.mrf.mxu0
      %v1963 = vadd.f32 0.0, %v1962
      %1964 = vmatmul.f32.gmra.mxu0 %v1925
      %v1965 = vpop.f32.mrf.mxu0
      %v1966 = vadd.f32 0.0, %v1965
      %1967 = vmatmul.f32.gmra.mxu0 %v1928
      %v1968 = vpop.f32.mrf.mxu0
      %v1969 = vadd.f32 0.0, %v1968
      %1970 = vmatmul.f32.gmra.mxu0 %v1931
      %v1971 = vpop.f32.mrf.mxu0
      %v1972 = vadd.f32 0.0, %v1971
      %1973 = vmatmul.f32.gmra.mxu0 %v1934
      %v1974 = vpop.f32.mrf.mxu0
      %v1975 = vadd.f32 0.0, %v1974
      %1976 = vmatmul.f32.gmra.mxu0 %v1937
      %v1977 = vpop.f32.mrf.mxu0
      %v1978 = vadd.f32 0.0, %v1977
      %1979 = vdwg.mxu0
      %v1980 = vadd.f32 %v1805, %v1957
      %v1981 = vadd.f32 %v1806, %v1960
      %v1982 = vadd.f32 %v1807, %v1963
      %v1983 = vadd.f32 %v1808, %v1966
      %v1984 = vadd.f32 %v1809, %v1969
      %v1985 = vadd.f32 %v1810, %v1972
      %v1986 = vadd.f32 %v1811, %v1975
      %v1987 = vadd.f32 %v1812, %v1978
      %s1988 = scalar_lea.vmem %s3, 896
      %v1989 = vld [vmem:[%s1988] sm:$0xff]
      %v1990 = vld [vmem:[%s1988 + $0x8] sm:$0xff]
      %v1991 = vld [vmem:[%s1988 + $0x10] sm:$0xff]
      %v1992 = vld [vmem:[%s1988 + $0x18] sm:$0xff]
      %v1993 = vld [vmem:[%s1988 + $0x20] sm:$0xff]
      %v1994 = vld [vmem:[%s1988 + $0x28] sm:$0xff]
      %v1995 = vld [vmem:[%s1988 + $0x30] sm:$0xff]
      %v1996 = vld [vmem:[%s1988 + $0x38] sm:$0xff]
      %v1997 = vld [vmem:[%s1988 + $0x40] sm:$0xff]
      %v1998 = vld [vmem:[%s1988 + $0x48] sm:$0xff]
      %v1999 = vld [vmem:[%s1988 + $0x50] sm:$0xff]
      %v2000 = vld [vmem:[%s1988 + $0x58] sm:$0xff]
      %v2001 = vld [vmem:[%s1988 + $0x60] sm:$0xff]
      %v2002 = vld [vmem:[%s1988 + $0x68] sm:$0xff]
      %v2003 = vld [vmem:[%s1988 + $0x70] sm:$0xff]
      %v2004 = vld [vmem:[%s1988 + $0x78] sm:$0xff]
      %2005 = vmatpush.msra.mxu0 %v763
      %2006 = vmatpush.msra.mxu0 %v762
      %2007 = vmatpush.msra.mxu0 %v761
      %2008 = vmatpush.msra.mxu0 %v760
      %2009 = vmatpush.msra.mxu0 %v759
      %2010 = vmatpush.msra.mxu0 %v758
      %2011 = vmatpush.msra.mxu0 %v757
      %2012 = vmatpush.msra.mxu0 %v756
      %2013 = vmatpush.msra.mxu0 %v755
      %2014 = vmatpush.msra.mxu0 %v754
      %2015 = vmatpush.msra.mxu0 %v753
      %2016 = vmatpush.msra.mxu0 %v752
      %2017 = vmatpush.msra.mxu0 %v751
      %2018 = vmatpush.msra.mxu0 %v750
      %2019 = vmatpush.msra.mxu0 %v749
      %2020 = vmatpush.msra.mxu0 %v748
      %2021 = vmatmul.f32.gmra.mxu0 %v1989
      %v2022 = vpop.f32.mrf.mxu0
      %v2023 = vadd.f32 0.0, %v2022
      %2024 = vmatmul.f32.gmra.mxu0 %v1991
      %v2025 = vpop.f32.mrf.mxu0
      %v2026 = vadd.f32 0.0, %v2025
      %2027 = vmatmul.f32.gmra.mxu0 %v1993
      %v2028 = vpop.f32.mrf.mxu0
      %v2029 = vadd.f32 0.0, %v2028
      %2030 = vmatmul.f32.gmra.mxu0 %v1995
      %v2031 = vpop.f32.mrf.mxu0
      %v2032 = vadd.f32 0.0, %v2031
      %2033 = vmatmul.f32.gmra.mxu0 %v1997
      %v2034 = vpop.f32.mrf.mxu0
      %v2035 = vadd.f32 0.0, %v2034
      %2036 = vmatmul.f32.gmra.mxu0 %v1999
      %v2037 = vpop.f32.mrf.mxu0
      %v2038 = vadd.f32 0.0, %v2037
      %2039 = vmatmul.f32.gmra.mxu0 %v2001
      %v2040 = vpop.f32.mrf.mxu0
      %v2041 = vadd.f32 0.0, %v2040
      %2042 = vmatmul.f32.gmra.mxu0 %v2003
      %v2043 = vpop.f32.mrf.mxu0
      %v2044 = vadd.f32 0.0, %v2043
      %2045 = vdwg.mxu0
      %2046 = vmatpush.msra.mxu0 %v779
      %2047 = vmatpush.msra.mxu0 %v778
      %2048 = vmatpush.msra.mxu0 %v777
      %2049 = vmatpush.msra.mxu0 %v776
      %2050 = vmatpush.msra.mxu0 %v775
      %2051 = vmatpush.msra.mxu0 %v774
      %2052 = vmatpush.msra.mxu0 %v773
      %2053 = vmatpush.msra.mxu0 %v772
      %2054 = vmatpush.msra.mxu0 %v771
      %2055 = vmatpush.msra.mxu0 %v770
      %2056 = vmatpush.msra.mxu0 %v769
      %2057 = vmatpush.msra.mxu0 %v768
      %2058 = vmatpush.msra.mxu0 %v767
      %2059 = vmatpush.msra.mxu0 %v766
      %2060 = vmatpush.msra.mxu0 %v765
      %2061 = vmatpush.msra.mxu0 %v764
      %2062 = vmatmul.f32.gmra.mxu0 %v1990
      %v2063 = vpop.f32.mrf.mxu0
      %v2064 = vadd.f32 %v2023, %v2063
      %2065 = vmatmul.f32.gmra.mxu0 %v1992
      %v2066 = vpop.f32.mrf.mxu0
      %v2067 = vadd.f32 %v2026, %v2066
      %2068 = vmatmul.f32.gmra.mxu0 %v1994
      %v2069 = vpop.f32.mrf.mxu0
      %v2070 = vadd.f32 %v2029, %v2069
      %2071 = vmatmul.f32.gmra.mxu0 %v1996
      %v2072 = vpop.f32.mrf.mxu0
      %v2073 = vadd.f32 %v2032, %v2072
      %2074 = vmatmul.f32.gmra.mxu0 %v1998
      %v2075 = vpop.f32.mrf.mxu0
      %v2076 = vadd.f32 %v2035, %v2075
      %2077 = vmatmul.f32.gmra.mxu0 %v2000
      %v2078 = vpop.f32.mrf.mxu0
      %v2079 = vadd.f32 %v2038, %v2078
      %2080 = vmatmul.f32.gmra.mxu0 %v2002
      %v2081 = vpop.f32.mrf.mxu0
      %v2082 = vadd.f32 %v2041, %v2081
      %2083 = vmatmul.f32.gmra.mxu0 %v2004
      %v2084 = vpop.f32.mrf.mxu0
      %v2085 = vadd.f32 %v2044, %v2084
      %2086 = vdwg.mxu0
      %s2087 = scalar_lea.vmem %s4, 112
      %v2088 = vld [vmem:[%s2087] sm:$0xff]
      %v2089 = vld [vmem:[%s2087 + $0x8] sm:$0xff]
      %v2091 = vsel %vm982, %v2064, 0
      %v2094 = vsel %vm982, %v2067, 0
      %v2097 = vsel %vm982, %v2070, 0
      %v2100 = vsel %vm982, %v2073, 0
      %v2103 = vsel %vm982, %v2076, 0
      %v2106 = vsel %vm982, %v2079, 0
      %v2109 = vsel %vm982, %v2082, 0
      %v2112 = vsel %vm982, %v2085, 0
      %2114 = vmatpush.msra.mxu0 0.0
      %2115 = vmatpush.msra.mxu0 0.0
      %2116 = vmatpush.msra.mxu0 0.0
      %2117 = vmatpush.msra.mxu0 0.0
      %2118 = vmatpush.msra.mxu0 0.0
      %2119 = vmatpush.msra.mxu0 0.0
      %2120 = vmatpush.msra.mxu0 0.0
      %2121 = vmatpush.msra.mxu0 0.0
      %2122 = vmatpush.msra.mxu0 0.0
      %2123 = vmatpush.msra.mxu0 0.0
      %2124 = vmatpush.msra.mxu0 0.0
      %2125 = vmatpush.msra.mxu0 0.0
      %2126 = vmatpush.msra.mxu0 0.0
      %2127 = vmatpush.msra.mxu0 0.0
      %2128 = vmatpush.msra.mxu0 %v2089
      %2129 = vmatpush.msra.mxu0 %v2088
      %2130 = vmatmul.f32.gmra.mxu0 %v2091
      %v2131 = vpop.f32.mrf.mxu0
      %v2132 = vadd.f32 0.0, %v2131
      %2133 = vmatmul.f32.gmra.mxu0 %v2094
      %v2134 = vpop.f32.mrf.mxu0
      %v2135 = vadd.f32 0.0, %v2134
      %2136 = vmatmul.f32.gmra.mxu0 %v2097
      %v2137 = vpop.f32.mrf.mxu0
      %v2138 = vadd.f32 0.0, %v2137
      %2139 = vmatmul.f32.gmra.mxu0 %v2100
      %v2140 = vpop.f32.mrf.mxu0
      %v2141 = vadd.f32 0.0, %v2140
      %2142 = vmatmul.f32.gmra.mxu0 %v2103
      %v2143 = vpop.f32.mrf.mxu0
      %v2144 = vadd.f32 0.0, %v2143
      %2145 = vmatmul.f32.gmra.mxu0 %v2106
      %v2146 = vpop.f32.mrf.mxu0
      %v2147 = vadd.f32 0.0, %v2146
      %2148 = vmatmul.f32.gmra.mxu0 %v2109
      %v2149 = vpop.f32.mrf.mxu0
      %v2150 = vadd.f32 0.0, %v2149
      %2151 = vmatmul.f32.gmra.mxu0 %v2112
      %v2152 = vpop.f32.mrf.mxu0
      %v2153 = vadd.f32 0.0, %v2152
      %2154 = vdwg.mxu0
      %v2155 = vadd.f32 %v1980, %v2132
      %v2156 = vadd.f32 %v1981, %v2135
      %v2157 = vadd.f32 %v1982, %v2138
      %v2158 = vadd.f32 %v1983, %v2141
      %v2159 = vadd.f32 %v1984, %v2144
      %v2160 = vadd.f32 %v1985, %v2147
      %v2161 = vadd.f32 %v1986, %v2150
      %v2162 = vadd.f32 %v1987, %v2153
      %s2163 = scalar_lea.vmem %s3, 1024
      %v2164 = vld [vmem:[%s2163] sm:$0xff]
      %v2165 = vld [vmem:[%s2163 + $0x8] sm:$0xff]
      %v2166 = vld [vmem:[%s2163 + $0x10] sm:$0xff]
      %v2167 = vld [vmem:[%s2163 + $0x18] sm:$0xff]
      %v2168 = vld [vmem:[%s2163 + $0x20] sm:$0xff]
      %v2169 = vld [vmem:[%s2163 + $0x28] sm:$0xff]
      %v2170 = vld [vmem:[%s2163 + $0x30] sm:$0xff]
      %v2171 = vld [vmem:[%s2163 + $0x38] sm:$0xff]
      %v2172 = vld [vmem:[%s2163 + $0x40] sm:$0xff]
      %v2173 = vld [vmem:[%s2163 + $0x48] sm:$0xff]
      %v2174 = vld [vmem:[%s2163 + $0x50] sm:$0xff]
      %v2175 = vld [vmem:[%s2163 + $0x58] sm:$0xff]
      %v2176 = vld [vmem:[%s2163 + $0x60] sm:$0xff]
      %v2177 = vld [vmem:[%s2163 + $0x68] sm:$0xff]
      %v2178 = vld [vmem:[%s2163 + $0x70] sm:$0xff]
      %v2179 = vld [vmem:[%s2163 + $0x78] sm:$0xff]
      %2180 = vmatpush.msra.mxu0 %v763
      %2181 = vmatpush.msra.mxu0 %v762
      %2182 = vmatpush.msra.mxu0 %v761
      %2183 = vmatpush.msra.mxu0 %v760
      %2184 = vmatpush.msra.mxu0 %v759
      %2185 = vmatpush.msra.mxu0 %v758
      %2186 = vmatpush.msra.mxu0 %v757
      %2187 = vmatpush.msra.mxu0 %v756
      %2188 = vmatpush.msra.mxu0 %v755
      %2189 = vmatpush.msra.mxu0 %v754
      %2190 = vmatpush.msra.mxu0 %v753
      %2191 = vmatpush.msra.mxu0 %v752
      %2192 = vmatpush.msra.mxu0 %v751
      %2193 = vmatpush.msra.mxu0 %v750
      %2194 = vmatpush.msra.mxu0 %v749
      %2195 = vmatpush.msra.mxu0 %v748
      %2196 = vmatmul.f32.gmra.mxu0 %v2164
      %v2197 = vpop.f32.mrf.mxu0
      %v2198 = vadd.f32 0.0, %v2197
      %2199 = vmatmul.f32.gmra.mxu0 %v2166
      %v2200 = vpop.f32.mrf.mxu0
      %v2201 = vadd.f32 0.0, %v2200
      %2202 = vmatmul.f32.gmra.mxu0 %v2168
      %v2203 = vpop.f32.mrf.mxu0
      %v2204 = vadd.f32 0.0, %v2203
      %2205 = vmatmul.f32.gmra.mxu0 %v2170
      %v2206 = vpop.f32.mrf.mxu0
      %v2207 = vadd.f32 0.0, %v2206
      %2208 = vmatmul.f32.gmra.mxu0 %v2172
      %v2209 = vpop.f32.mrf.mxu0
      %v2210 = vadd.f32 0.0, %v2209
      %2211 = vmatmul.f32.gmra.mxu0 %v2174
      %v2212 = vpop.f32.mrf.mxu0
      %v2213 = vadd.f32 0.0, %v2212
      %2214 = vmatmul.f32.gmra.mxu0 %v2176
      %v2215 = vpop.f32.mrf.mxu0
      %v2216 = vadd.f32 0.0, %v2215
      %2217 = vmatmul.f32.gmra.mxu0 %v2178
      %v2218 = vpop.f32.mrf.mxu0
      %v2219 = vadd.f32 0.0, %v2218
      %2220 = vdwg.mxu0
      %2221 = vmatpush.msra.mxu0 %v779
      %2222 = vmatpush.msra.mxu0 %v778
      %2223 = vmatpush.msra.mxu0 %v777
      %2224 = vmatpush.msra.mxu0 %v776
      %2225 = vmatpush.msra.mxu0 %v775
      %2226 = vmatpush.msra.mxu0 %v774
      %2227 = vmatpush.msra.mxu0 %v773
      %2228 = vmatpush.msra.mxu0 %v772
      %2229 = vmatpush.msra.mxu0 %v771
      %2230 = vmatpush.msra.mxu0 %v770
      %2231 = vmatpush.msra.mxu0 %v769
      %2232 = vmatpush.msra.mxu0 %v768
      %2233 = vmatpush.msra.mxu0 %v767
      %2234 = vmatpush.msra.mxu0 %v766
      %2235 = vmatpush.msra.mxu0 %v765
      %2236 = vmatpush.msra.mxu0 %v764
      %2237 = vmatmul.f32.gmra.mxu0 %v2165
      %v2238 = vpop.f32.mrf.mxu0
      %v2239 = vadd.f32 %v2198, %v2238
      %2240 = vmatmul.f32.gmra.mxu0 %v2167
      %v2241 = vpop.f32.mrf.mxu0
      %v2242 = vadd.f32 %v2201, %v2241
      %2243 = vmatmul.f32.gmra.mxu0 %v2169
      %v2244 = vpop.f32.mrf.mxu0
      %v2245 = vadd.f32 %v2204, %v2244
      %2246 = vmatmul.f32.gmra.mxu0 %v2171
      %v2247 = vpop.f32.mrf.mxu0
      %v2248 = vadd.f32 %v2207, %v2247
      %2249 = vmatmul.f32.gmra.mxu0 %v2173
      %v2250 = vpop.f32.mrf.mxu0
      %v2251 = vadd.f32 %v2210, %v2250
      %2252 = vmatmul.f32.gmra.mxu0 %v2175
      %v2253 = vpop.f32.mrf.mxu0
      %v2254 = vadd.f32 %v2213, %v2253
      %2255 = vmatmul.f32.gmra.mxu0 %v2177
      %v2256 = vpop.f32.mrf.mxu0
      %v2257 = vadd.f32 %v2216, %v2256
      %2258 = vmatmul.f32.gmra.mxu0 %v2179
      %v2259 = vpop.f32.mrf.mxu0
      %v2260 = vadd.f32 %v2219, %v2259
      %2261 = vdwg.mxu0
      %s2262 = scalar_lea.vmem %s4, 128
      %v2263 = vld [vmem:[%s2262] sm:$0xff]
      %v2264 = vld [vmem:[%s2262 + $0x8] sm:$0xff]
      %v2266 = vsel %vm982, %v2239, 0
      %v2269 = vsel %vm982, %v2242, 0
      %v2272 = vsel %vm982, %v2245, 0
      %v2275 = vsel %vm982, %v2248, 0
      %v2278 = vsel %vm982, %v2251, 0
      %v2281 = vsel %vm982, %v2254, 0
      %v2284 = vsel %vm982, %v2257, 0
      %v2287 = vsel %vm982, %v2260, 0
      %2289 = vmatpush.msra.mxu0 0.0
      %2290 = vmatpush.msra.mxu0 0.0
      %2291 = vmatpush.msra.mxu0 0.0
      %2292 = vmatpush.msra.mxu0 0.0
      %2293 = vmatpush.msra.mxu0 0.0
      %2294 = vmatpush.msra.mxu0 0.0
      %2295 = vmatpush.msra.mxu0 0.0
      %2296 = vmatpush.msra.mxu0 0.0
      %2297 = vmatpush.msra.mxu0 0.0
      %2298 = vmatpush.msra.mxu0 0.0
      %2299 = vmatpush.msra.mxu0 0.0
      %2300 = vmatpush.msra.mxu0 0.0
      %2301 = vmatpush.msra.mxu0 0.0
      %2302 = vmatpush.msra.mxu0 0.0
      %2303 = vmatpush.msra.mxu0 %v2264
      %2304 = vmatpush.msra.mxu0 %v2263
      %2305 = vmatmul.f32.gmra.mxu0 %v2266
      %v2306 = vpop.f32.mrf.mxu0
      %v2307 = vadd.f32 0.0, %v2306
      %2308 = vmatmul.f32.gmra.mxu0 %v2269
      %v2309 = vpop.f32.mrf.mxu0
      %v2310 = vadd.f32 0.0, %v2309
      %2311 = vmatmul.f32.gmra.mxu0 %v2272
      %v2312 = vpop.f32.mrf.mxu0
      %v2313 = vadd.f32 0.0, %v2312
      %2314 = vmatmul.f32.gmra.mxu0 %v2275
      %v2315 = vpop.f32.mrf.mxu0
      %v2316 = vadd.f32 0.0, %v2315
      %2317 = vmatmul.f32.gmra.mxu0 %v2278
      %v2318 = vpop.f32.mrf.mxu0
      %v2319 = vadd.f32 0.0, %v2318
      %2320 = vmatmul.f32.gmra.mxu0 %v2281
      %v2321 = vpop.f32.mrf.mxu0
      %v2322 = vadd.f32 0.0, %v2321
      %2323 = vmatmul.f32.gmra.mxu0 %v2284
      %v2324 = vpop.f32.mrf.mxu0
      %v2325 = vadd.f32 0.0, %v2324
      %2326 = vmatmul.f32.gmra.mxu0 %v2287
      %v2327 = vpop.f32.mrf.mxu0
      %v2328 = vadd.f32 0.0, %v2327
      %2329 = vdwg.mxu0
      %v2330 = vadd.f32 %v2155, %v2307
      %v2331 = vadd.f32 %v2156, %v2310
      %v2332 = vadd.f32 %v2157, %v2313
      %v2333 = vadd.f32 %v2158, %v2316
      %v2334 = vadd.f32 %v2159, %v2319
      %v2335 = vadd.f32 %v2160, %v2322
      %v2336 = vadd.f32 %v2161, %v2325
      %v2337 = vadd.f32 %v2162, %v2328
      %v2338 = vld [vmem:[%s5] sm:$0x1]
      %v2339 = vperm.slane %v2338, 0
      %v2340 = vadd.f32 %v2330, %v2339
      %v2341 = vadd.f32 %v2331, %v2339
      %v2342 = vadd.f32 %v2332, %v2339
      %v2343 = vadd.f32 %v2333, %v2339
      %v2344 = vadd.f32 %v2334, %v2339
      %v2345 = vadd.f32 %v2335, %v2339
      %v2346 = vadd.f32 %v2336, %v2339
      %v2347 = vadd.f32 %v2337, %v2339
      %v2348 = vmul.f32 %v2340, 0.2
      %v2349 = vmul.f32 %v2341, 0.2
      %v2350 = vmul.f32 %v2342, 0.2
      %v2351 = vmul.f32 %v2343, 0.2
      %v2352 = vmul.f32 %v2344, 0.2
      %v2353 = vmul.f32 %v2345, 0.2
      %v2354 = vmul.f32 %v2346, 0.2
      %v2355 = vmul.f32 %v2347, 0.2
      %v2356 = vmax.f32 %v2340, %v2348
      %v2357 = vmax.f32 %v2341, %v2349
      %v2358 = vmax.f32 %v2342, %v2350
      %v2359 = vmax.f32 %v2343, %v2351
      %v2360 = vmax.f32 %v2344, %v2352
      %v2361 = vmax.f32 %v2345, %v2353
      %v2362 = vmax.f32 %v2346, %v2354
      %v2363 = vmax.f32 %v2347, %v2355
      %v2364 = vld [vmem:[%s5 + $0x1] sm:$0x1]
      %v2365 = vperm.slane %v2364, 0
      %v2366 = vmul.f32 %v2356, %v2365
      %v2367 = vmul.f32 %v2357, %v2365
      %v2368 = vmul.f32 %v2358, %v2365
      %v2369 = vmul.f32 %v2359, %v2365
      %v2370 = vmul.f32 %v2360, %v2365
      %v2371 = vmul.f32 %v2361, %v2365
      %v2372 = vmul.f32 %v2362, %v2365
      %v2373 = vmul.f32 %v2363, %v2365
      %v2374 = vld [vmem:[%s5 + $0x2] sm:$0x1]
      %v2375 = vperm.slane %v2374, 0
      %v2376 = vadd.f32 %v2366, %v2375
      %v2377 = vadd.f32 %v2367, %v2375
      %v2378 = vadd.f32 %v2368, %v2375
      %v2379 = vadd.f32 %v2369, %v2375
      %v2380 = vadd.f32 %v2370, %v2375
      %v2381 = vadd.f32 %v2371, %v2375
      %v2382 = vadd.f32 %v2372, %v2375
      %v2383 = vadd.f32 %v2373, %v2375
      %v2384 = vld [vmem:[%s6] sm:$0xff]
      %v2385 = vld [vmem:[%s6 + $0x8] sm:$0xff]
      %vm2386 = vcmask 523264
      %v2388 = vsel %vm2386, %v2384, 0
      %v2391 = vsel %vm2386, %v2385, 0
      %2393 = vmatpush.msra.mxu0 0.0
      %2394 = vmatpush.msra.mxu0 0.0
      %2395 = vmatpush.msra.mxu0 0.0
      %2396 = vmatpush.msra.mxu0 0.0
      %2397 = vmatpush.msra.mxu0 0.0
      %2398 = vmatpush.msra.mxu0 0.0
      %2399 = vmatpush.msra.mxu0 0.0
      %2400 = vmatpush.msra.mxu0 0.0
      %2401 = vmatpush.msra.mxu0 %v2383
      %2402 = vmatpush.msra.mxu0 %v2382
      %2403 = vmatpush.msra.mxu0 %v2381
      %2404 = vmatpush.msra.mxu0 %v2380
      %2405 = vmatpush.msra.mxu0 %v2379
      %2406 = vmatpush.msra.mxu0 %v2378
      %2407 = vmatpush.msra.mxu0 %v2377
      %2408 = vmatpush.msra.mxu0 %v2376
      %2409 = vmatmul.f32.gmra.mxu0 %v2388
      %v2410 = vpop.f32.mrf.mxu0
      %v2411 = vadd.f32 0.0, %v2410
      %2412 = vmatmul.f32.gmra.mxu0 %v2391
      %v2413 = vpop.f32.mrf.mxu0
      %v2414 = vadd.f32 0.0, %v2413
      %2415 = vdwg.mxu0
      %v2416 = vld [vmem:[%s7] sm:$0xff]
      %v2417 = vld [vmem:[%s7 + $0x8] sm:$0xff]
      %v2418 = vld [vmem:[%s7 + $0x10] sm:$0xff]
      %v2419 = vld [vmem:[%s7 + $0x18] sm:$0xff]
      %s2420 = scalar_lea.vmem %s6, 16
      %v2421 = vld [vmem:[%s2420] sm:$0xff]
      %v2422 = vld [vmem:[%s2420 + $0x8] sm:$0xff]
      %v2424 = vsel %vm2386, %v2421, 0
      %v2427 = vsel %vm2386, %v2422, 0
      %2429 = vmatpush.msra.mxu0 0.0
      %2430 = vmatpush.msra.mxu0 0.0
      %2431 = vmatpush.msra.mxu0 0.0
      %2432 = vmatpush.msra.mxu0 0.0
      %2433 = vmatpush.msra.mxu0 0.0
      %2434 = vmatpush.msra.mxu0 0.0
      %2435 = vmatpush.msra.mxu0 0.0
      %2436 = vmatpush.msra.mxu0 0.0
      %2437 = vmatpush.msra.mxu0 %v2383
      %2438 = vmatpush.msra.mxu0 %v2382
      %2439 = vmatpush.msra.mxu0 %v2381
      %2440 = vmatpush.msra.mxu0 %v2380
      %2441 = vmatpush.msra.mxu0 %v2379
      %2442 = vmatpush.msra.mxu0 %v2378
      %2443 = vmatpush.msra.mxu0 %v2377
      %2444 = vmatpush.msra.mxu0 %v2376
      %2445 = vmatmul.f32.gmra.mxu0 %v2424
      %v2446 = vpop.f32.mrf.mxu0
      %v2447 = vadd.f32 0.0, %v2446
      %2448 = vmatmul.f32.gmra.mxu0 %v2427
      %v2449 = vpop.f32.mrf.mxu0
      %v2450 = vadd.f32 0.0, %v2449
      %2451 = vdwg.mxu0
      %s2452 = scalar_lea.vmem %s7, 32
      %v2453 = vld [vmem:[%s2452] sm:$0xff]
      %v2454 = vld [vmem:[%s2452 + $0x8] sm:$0xff]
      %v2455 = vld [vmem:[%s2452 + $0x10] sm:$0xff]
      %v2456 = vld [vmem:[%s2452 + $0x18] sm:$0xff]
      %v2458 = vsel %vm506, %v2447, 0
      %v2461 = vsel %vm506, %v2450, 0
      %2463 = vmatpush.msra.mxu0 0.0
      %2464 = vmatpush.msra.mxu0 0.0
      %2465 = vmatpush.msra.mxu0 0.0
      %2466 = vmatpush.msra.mxu0 0.0
      %2467 = vmatpush.msra.mxu0 0.0
      %2468 = vmatpush.msra.mxu0 0.0
      %2469 = vmatpush.msra.mxu0 0.0
      %2470 = vmatpush.msra.mxu0 0.0
      %2471 = vmatpush.msra.mxu0 0.0
      %2472 = vmatpush.msra.mxu0 0.0
      %2473 = vmatpush.msra.mxu0 0.0
      %2474 = vmatpush.msra.mxu0 0.0
      %2475 = vmatpush.msra.mxu0 %v2456
      %2476 = vmatpush.msra.mxu0 %v2455
      %2477 = vmatpush.msra.mxu0 %v2454
      %2478 = vmatpush.msra.mxu0 %v2453
      %2479 = vmatmul.f32.gmra.mxu0 %v2458
      %v2480 = vpop.f32.mrf.mxu0
      %v2481 = vadd.f32 0.0, %v2480
      %2482 = vmatmul.f32.gmra.mxu0 %v2461
      %v2483 = vpop.f32.mrf.mxu0
      %v2484 = vadd.f32 0.0, %v2483
      %2485 = vdwg.mxu0
      %v2487 = vsel %vm506, %v2411, 0
      %v2490 = vsel %vm506, %v2414, 0
      %2492 = vmatpush.msra.mxu0 0.0
      %2493 = vmatpush.msra.mxu0 0.0
      %2494 = vmatpush.msra.mxu0 0.0
      %2495 = vmatpush.msra.mxu0 0.0
      %2496 = vmatpush.msra.mxu0 0.0
      %2497 = vmatpush.msra.mxu0 0.0
      %2498 = vmatpush.msra.mxu0 0.0
      %2499 = vmatpush.msra.mxu0 0.0
      %2500 = vmatpush.msra.mxu0 0.0
      %2501 = vmatpush.msra.mxu0 0.0
      %2502 = vmatpush.msra.mxu0 0.0
      %2503 = vmatpush.msra.mxu0 0.0
      %2504 = vmatpush.msra.mxu0 %v2419
      %2505 = vmatpush.msra.mxu0 %v2418
      %2506 = vmatpush.msra.mxu0 %v2417
      %2507 = vmatpush.msra.mxu0 %v2416
      %2508 = vmatmul.f32.gmra.mxu0 %v2487
      %v2509 = vpop.f32.mrf.mxu0
      %v2510 = vadd.f32 %v2481, %v2509
      %2511 = vmatmul.f32.gmra.mxu0 %v2490
      %v2512 = vpop.f32.mrf.mxu0
      %v2513 = vadd.f32 %v2484, %v2512
      %2514 = vdwg.mxu0
      %s2515 = scalar_lea.vmem %s6, 32
      %v2516 = vld [vmem:[%s2515] sm:$0xff]
      %v2517 = vld [vmem:[%s2515 + $0x8] sm:$0xff]
      %v2519 = vsel %vm2386, %v2516, 0
      %v2522 = vsel %vm2386, %v2517, 0
      %2524 = vmatpush.msra.mxu0 0.0
      %2525 = vmatpush.msra.mxu0 0.0
      %2526 = vmatpush.msra.mxu0 0.0
      %2527 = vmatpush.msra.mxu0 0.0
      %2528 = vmatpush.msra.mxu0 0.0
      %2529 = vmatpush.msra.mxu0 0.0
      %2530 = vmatpush.msra.mxu0 0.0
      %2531 = vmatpush.msra.mxu0 0.0
      %2532 = vmatpush.msra.mxu0 %v2383
      %2533 = vmatpush.msra.mxu0 %v2382
      %2534 = vmatpush.msra.mxu0 %v2381
      %2535 = vmatpush.msra.mxu0 %v2380
      %2536 = vmatpush.msra.mxu0 %v2379
      %2537 = vmatpush.msra.mxu0 %v2378
      %2538 = vmatpush.msra.mxu0 %v2377
      %2539 = vmatpush.msra.mxu0 %v2376
      %2540 = vmatmul.f32.gmra.mxu0 %v2519
      %v2541 = vpop.f32.mrf.mxu0
      %v2542 = vadd.f32 0.0, %v2541
      %2543 = vmatmul.f32.gmra.mxu0 %v2522
      %v2544 = vpop.f32.mrf.mxu0
      %v2545 = vadd.f32 0.0, %v2544
      %2546 = vdwg.mxu0
      %s2547 = scalar_lea.vmem %s7, 64
      %v2548 = vld [vmem:[%s2547] sm:$0xff]
      %v2549 = vld [vmem:[%s2547 + $0x8] sm:$0xff]
      %v2550 = vld [vmem:[%s2547 + $0x10] sm:$0xff]
      %v2551 = vld [vmem:[%s2547 + $0x18] sm:$0xff]
      %v2553 = vsel %vm506, %v2542, 0
      %v2556 = vsel %vm506, %v2545, 0
      %2558 = vmatpush.msra.mxu0 0.0
      %2559 = vmatpush.msra.mxu0 0.0
      %2560 = vmatpush.msra.mxu0 0.0
      %2561 = vmatpush.msra.mxu0 0.0
      %2562 = vmatpush.msra.mxu0 0.0
      %2563 = vmatpush.msra.mxu0 0.0
      %2564 = vmatpush.msra.mxu0 0.0
      %2565 = vmatpush.msra.mxu0 0.0
      %2566 = vmatpush.msra.mxu0 0.0
      %2567 = vmatpush.msra.mxu0 0.0
      %2568 = vmatpush.msra.mxu0 0.0
      %2569 = vmatpush.msra.mxu0 0.0
      %2570 = vmatpush.msra.mxu0 %v2551
      %2571 = vmatpush.msra.mxu0 %v2550
      %2572 = vmatpush.msra.mxu0 %v2549
      %2573 = vmatpush.msra.mxu0 %v2548
      %2574 = vmatmul.f32.gmra.mxu0 %v2553
      %v2575 = vpop.f32.mrf.mxu0
      %v2576 = vadd.f32 0.0, %v2575
      %2577 = vmatmul.f32.gmra.mxu0 %v2556
      %v2578 = vpop.f32.mrf.mxu0
      %v2579 = vadd.f32 0.0, %v2578
      %2580 = vdwg.mxu0
      %v2581 = vadd.f32 %v2510, %v2576
      %v2582 = vadd.f32 %v2513, %v2579
      %s2583 = scalar_lea.vmem %s6, 48
      %v2584 = vld [vmem:[%s2583] sm:$0xff]
      %v2585 = vld [vmem:[%s2583 + $0x8] sm:$0xff]
      %v2587 = vsel %vm2386, %v2584, 0
      %v2590 = vsel %vm2386, %v2585, 0
      %2592 = vmatpush.msra.mxu0 0.0
      %2593 = vmatpush.msra.mxu0 0.0
      %2594 = vmatpush.msra.mxu0 0.0
      %2595 = vmatpush.msra.mxu0 0.0
      %2596 = vmatpush.msra.mxu0 0.0
      %2597 = vmatpush.msra.mxu0 0.0
      %2598 = vmatpush.msra.mxu0 0.0
      %2599 = vmatpush.msra.mxu0 0.0
      %2600 = vmatpush.msra.mxu0 %v2383
      %2601 = vmatpush.msra.mxu0 %v2382
      %2602 = vmatpush.msra.mxu0 %v2381
      %2603 = vmatpush.msra.mxu0 %v2380
      %2604 = vmatpush.msra.mxu0 %v2379
      %2605 = vmatpush.msra.mxu0 %v2378
      %2606 = vmatpush.msra.mxu0 %v2377
      %2607 = vmatpush.msra.mxu0 %v2376
      %2608 = vmatmul.f32.gmra.mxu0 %v2587
      %v2609 = vpop.f32.mrf.mxu0
      %v2610 = vadd.f32 0.0, %v2609
      %2611 = vmatmul.f32.gmra.mxu0 %v2590
      %v2612 = vpop.f32.mrf.mxu0
      %v2613 = vadd.f32 0.0, %v2612
      %2614 = vdwg.mxu0
      %s2615 = scalar_lea.vmem %s7, 96
      %v2616 = vld [vmem:[%s2615] sm:$0xff]
      %v2617 = vld [vmem:[%s2615 + $0x8] sm:$0xff]
      %v2618 = vld [vmem:[%s2615 + $0x10] sm:$0xff]
      %v2619 = vld [vmem:[%s2615 + $0x18] sm:$0xff]
      %v2621 = vsel %vm506, %v2610, 0
      %v2624 = vsel %vm506, %v2613, 0
      %2626 = vmatpush.msra.mxu0 0.0
      %2627 = vmatpush.msra.mxu0 0.0
      %2628 = vmatpush.msra.mxu0 0.0
      %2629 = vmatpush.msra.mxu0 0.0
      %2630 = vmatpush.msra.mxu0 0.0
      %2631 = vmatpush.msra.mxu0 0.0
      %2632 = vmatpush.msra.mxu0 0.0
      %2633 = vmatpush.msra.mxu0 0.0
      %2634 = vmatpush.msra.mxu0 0.0
      %2635 = vmatpush.msra.mxu0 0.0
      %2636 = vmatpush.msra.mxu0 0.0
      %2637 = vmatpush.msra.mxu0 0.0
      %2638 = vmatpush.msra.mxu0 %v2619
      %2639 = vmatpush.msra.mxu0 %v2618
      %2640 = vmatpush.msra.mxu0 %v2617
      %2641 = vmatpush.msra.mxu0 %v2616
      %2642 = vmatmul.f32.gmra.mxu0 %v2621
      %v2643 = vpop.f32.mrf.mxu0
      %v2644 = vadd.f32 0.0, %v2643
      %2645 = vmatmul.f32.gmra.mxu0 %v2624
      %v2646 = vpop.f32.mrf.mxu0
      %v2647 = vadd.f32 0.0, %v2646
      %2648 = vdwg.mxu0
      %v2649 = vadd.f32 %v2581, %v2644
      %v2650 = vadd.f32 %v2582, %v2647
      %s2651 = scalar_lea.vmem %s6, 64
      %v2652 = vld [vmem:[%s2651] sm:$0xff]
      %v2653 = vld [vmem:[%s2651 + $0x8] sm:$0xff]
      %v2655 = vsel %vm2386, %v2652, 0
      %v2658 = vsel %vm2386, %v2653, 0
      %2660 = vmatpush.msra.mxu0 0.0
      %2661 = vmatpush.msra.mxu0 0.0
      %2662 = vmatpush.msra.mxu0 0.0
      %2663 = vmatpush.msra.mxu0 0.0
      %2664 = vmatpush.msra.mxu0 0.0
      %2665 = vmatpush.msra.mxu0 0.0
      %2666 = vmatpush.msra.mxu0 0.0
      %2667 = vmatpush.msra.mxu0 0.0
      %2668 = vmatpush.msra.mxu0 %v2383
      %2669 = vmatpush.msra.mxu0 %v2382
      %2670 = vmatpush.msra.mxu0 %v2381
      %2671 = vmatpush.msra.mxu0 %v2380
      %2672 = vmatpush.msra.mxu0 %v2379
      %2673 = vmatpush.msra.mxu0 %v2378
      %2674 = vmatpush.msra.mxu0 %v2377
      %2675 = vmatpush.msra.mxu0 %v2376
      %2676 = vmatmul.f32.gmra.mxu0 %v2655
      %v2677 = vpop.f32.mrf.mxu0
      %v2678 = vadd.f32 0.0, %v2677
      %2679 = vmatmul.f32.gmra.mxu0 %v2658
      %v2680 = vpop.f32.mrf.mxu0
      %v2681 = vadd.f32 0.0, %v2680
      %2682 = vdwg.mxu0
      %s2683 = scalar_lea.vmem %s7, 128
      %v2684 = vld [vmem:[%s2683] sm:$0xff]
      %v2685 = vld [vmem:[%s2683 + $0x8] sm:$0xff]
      %v2686 = vld [vmem:[%s2683 + $0x10] sm:$0xff]
      %v2687 = vld [vmem:[%s2683 + $0x18] sm:$0xff]
      %v2689 = vsel %vm506, %v2678, 0
      %v2692 = vsel %vm506, %v2681, 0
      %2694 = vmatpush.msra.mxu0 0.0
      %2695 = vmatpush.msra.mxu0 0.0
      %2696 = vmatpush.msra.mxu0 0.0
      %2697 = vmatpush.msra.mxu0 0.0
      %2698 = vmatpush.msra.mxu0 0.0
      %2699 = vmatpush.msra.mxu0 0.0
      %2700 = vmatpush.msra.mxu0 0.0
      %2701 = vmatpush.msra.mxu0 0.0
      %2702 = vmatpush.msra.mxu0 0.0
      %2703 = vmatpush.msra.mxu0 0.0
      %2704 = vmatpush.msra.mxu0 0.0
      %2705 = vmatpush.msra.mxu0 0.0
      %2706 = vmatpush.msra.mxu0 %v2687
      %2707 = vmatpush.msra.mxu0 %v2686
      %2708 = vmatpush.msra.mxu0 %v2685
      %2709 = vmatpush.msra.mxu0 %v2684
      %2710 = vmatmul.f32.gmra.mxu0 %v2689
      %v2711 = vpop.f32.mrf.mxu0
      %v2712 = vadd.f32 0.0, %v2711
      %2713 = vmatmul.f32.gmra.mxu0 %v2692
      %v2714 = vpop.f32.mrf.mxu0
      %v2715 = vadd.f32 0.0, %v2714
      %2716 = vdwg.mxu0
      %v2717 = vadd.f32 %v2649, %v2712
      %v2718 = vadd.f32 %v2650, %v2715
      %s2719 = scalar_lea.vmem %s6, 80
      %v2720 = vld [vmem:[%s2719] sm:$0xff]
      %v2721 = vld [vmem:[%s2719 + $0x8] sm:$0xff]
      %v2723 = vsel %vm2386, %v2720, 0
      %v2726 = vsel %vm2386, %v2721, 0
      %2728 = vmatpush.msra.mxu0 0.0
      %2729 = vmatpush.msra.mxu0 0.0
      %2730 = vmatpush.msra.mxu0 0.0
      %2731 = vmatpush.msra.mxu0 0.0
      %2732 = vmatpush.msra.mxu0 0.0
      %2733 = vmatpush.msra.mxu0 0.0
      %2734 = vmatpush.msra.mxu0 0.0
      %2735 = vmatpush.msra.mxu0 0.0
      %2736 = vmatpush.msra.mxu0 %v2383
      %2737 = vmatpush.msra.mxu0 %v2382
      %2738 = vmatpush.msra.mxu0 %v2381
      %2739 = vmatpush.msra.mxu0 %v2380
      %2740 = vmatpush.msra.mxu0 %v2379
      %2741 = vmatpush.msra.mxu0 %v2378
      %2742 = vmatpush.msra.mxu0 %v2377
      %2743 = vmatpush.msra.mxu0 %v2376
      %2744 = vmatmul.f32.gmra.mxu0 %v2723
      %v2745 = vpop.f32.mrf.mxu0
      %v2746 = vadd.f32 0.0, %v2745
      %2747 = vmatmul.f32.gmra.mxu0 %v2726
      %v2748 = vpop.f32.mrf.mxu0
      %v2749 = vadd.f32 0.0, %v2748
      %2750 = vdwg.mxu0
      %s2751 = scalar_lea.vmem %s7, 160
      %v2752 = vld [vmem:[%s2751] sm:$0xff]
      %v2753 = vld [vmem:[%s2751 + $0x8] sm:$0xff]
      %v2754 = vld [vmem:[%s2751 + $0x10] sm:$0xff]
      %v2755 = vld [vmem:[%s2751 + $0x18] sm:$0xff]
      %v2757 = vsel %vm506, %v2746, 0
      %v2760 = vsel %vm506, %v2749, 0
      %2762 = vmatpush.msra.mxu0 0.0
      %2763 = vmatpush.msra.mxu0 0.0
      %2764 = vmatpush.msra.mxu0 0.0
      %2765 = vmatpush.msra.mxu0 0.0
      %2766 = vmatpush.msra.mxu0 0.0
      %2767 = vmatpush.msra.mxu0 0.0
      %2768 = vmatpush.msra.mxu0 0.0
      %2769 = vmatpush.msra.mxu0 0.0
      %2770 = vmatpush.msra.mxu0 0.0
      %2771 = vmatpush.msra.mxu0 0.0
      %2772 = vmatpush.msra.mxu0 0.0
      %2773 = vmatpush.msra.mxu0 0.0
      %2774 = vmatpush.msra.mxu0 %v2755
      %2775 = vmatpush.msra.mxu0 %v2754
      %2776 = vmatpush.msra.mxu0 %v2753
      %2777 = vmatpush.msra.mxu0 %v2752
      %2778 = vmatmul.f32.gmra.mxu0 %v2757
      %v2779 = vpop.f32.mrf.mxu0
      %v2780 = vadd.f32 0.0, %v2779
      %2781 = vmatmul.f32.gmra.mxu0 %v2760
      %v2782 = vpop.f32.mrf.mxu0
      %v2783 = vadd.f32 0.0, %v2782
      %2784 = vdwg.mxu0
      %v2785 = vadd.f32 %v2717, %v2780
      %v2786 = vadd.f32 %v2718, %v2783
      %s2787 = scalar_lea.vmem %s6, 96
      %v2788 = vld [vmem:[%s2787] sm:$0xff]
      %v2789 = vld [vmem:[%s2787 + $0x8] sm:$0xff]
      %v2791 = vsel %vm2386, %v2788, 0
      %v2794 = vsel %vm2386, %v2789, 0
      %2796 = vmatpush.msra.mxu0 0.0
      %2797 = vmatpush.msra.mxu0 0.0
      %2798 = vmatpush.msra.mxu0 0.0
      %2799 = vmatpush.msra.mxu0 0.0
      %2800 = vmatpush.msra.mxu0 0.0
      %2801 = vmatpush.msra.mxu0 0.0
      %2802 = vmatpush.msra.mxu0 0.0
      %2803 = vmatpush.msra.mxu0 0.0
      %2804 = vmatpush.msra.mxu0 %v2383
      %2805 = vmatpush.msra.mxu0 %v2382
      %2806 = vmatpush.msra.mxu0 %v2381
      %2807 = vmatpush.msra.mxu0 %v2380
      %2808 = vmatpush.msra.mxu0 %v2379
      %2809 = vmatpush.msra.mxu0 %v2378
      %2810 = vmatpush.msra.mxu0 %v2377
      %2811 = vmatpush.msra.mxu0 %v2376
      %2812 = vmatmul.f32.gmra.mxu0 %v2791
      %v2813 = vpop.f32.mrf.mxu0
      %v2814 = vadd.f32 0.0, %v2813
      %2815 = vmatmul.f32.gmra.mxu0 %v2794
      %v2816 = vpop.f32.mrf.mxu0
      %v2817 = vadd.f32 0.0, %v2816
      %2818 = vdwg.mxu0
      %s2819 = scalar_lea.vmem %s7, 192
      %v2820 = vld [vmem:[%s2819] sm:$0xff]
      %v2821 = vld [vmem:[%s2819 + $0x8] sm:$0xff]
      %v2822 = vld [vmem:[%s2819 + $0x10] sm:$0xff]
      %v2823 = vld [vmem:[%s2819 + $0x18] sm:$0xff]
      %v2825 = vsel %vm506, %v2814, 0
      %v2828 = vsel %vm506, %v2817, 0
      %2830 = vmatpush.msra.mxu0 0.0
      %2831 = vmatpush.msra.mxu0 0.0
      %2832 = vmatpush.msra.mxu0 0.0
      %2833 = vmatpush.msra.mxu0 0.0
      %2834 = vmatpush.msra.mxu0 0.0
      %2835 = vmatpush.msra.mxu0 0.0
      %2836 = vmatpush.msra.mxu0 0.0
      %2837 = vmatpush.msra.mxu0 0.0
      %2838 = vmatpush.msra.mxu0 0.0
      %2839 = vmatpush.msra.mxu0 0.0
      %2840 = vmatpush.msra.mxu0 0.0
      %2841 = vmatpush.msra.mxu0 0.0
      %2842 = vmatpush.msra.mxu0 %v2823
      %2843 = vmatpush.msra.mxu0 %v2822
      %2844 = vmatpush.msra.mxu0 %v2821
      %2845 = vmatpush.msra.mxu0 %v2820
      %2846 = vmatmul.f32.gmra.mxu0 %v2825
      %v2847 = vpop.f32.mrf.mxu0
      %v2848 = vadd.f32 0.0, %v2847
      %2849 = vmatmul.f32.gmra.mxu0 %v2828
      %v2850 = vpop.f32.mrf.mxu0
      %v2851 = vadd.f32 0.0, %v2850
      %2852 = vdwg.mxu0
      %v2853 = vadd.f32 %v2785, %v2848
      %v2854 = vadd.f32 %v2786, %v2851
      %s2855 = scalar_lea.vmem %s6, 112
      %v2856 = vld [vmem:[%s2855] sm:$0xff]
      %v2857 = vld [vmem:[%s2855 + $0x8] sm:$0xff]
      %v2859 = vsel %vm2386, %v2856, 0
      %v2862 = vsel %vm2386, %v2857, 0
      %2864 = vmatpush.msra.mxu0 0.0
      %2865 = vmatpush.msra.mxu0 0.0
      %2866 = vmatpush.msra.mxu0 0.0
      %2867 = vmatpush.msra.mxu0 0.0
      %2868 = vmatpush.msra.mxu0 0.0
      %2869 = vmatpush.msra.mxu0 0.0
      %2870 = vmatpush.msra.mxu0 0.0
      %2871 = vmatpush.msra.mxu0 0.0
      %2872 = vmatpush.msra.mxu0 %v2383
      %2873 = vmatpush.msra.mxu0 %v2382
      %2874 = vmatpush.msra.mxu0 %v2381
      %2875 = vmatpush.msra.mxu0 %v2380
      %2876 = vmatpush.msra.mxu0 %v2379
      %2877 = vmatpush.msra.mxu0 %v2378
      %2878 = vmatpush.msra.mxu0 %v2377
      %2879 = vmatpush.msra.mxu0 %v2376
      %2880 = vmatmul.f32.gmra.mxu0 %v2859
      %v2881 = vpop.f32.mrf.mxu0
      %v2882 = vadd.f32 0.0, %v2881
      %2883 = vmatmul.f32.gmra.mxu0 %v2862
      %v2884 = vpop.f32.mrf.mxu0
      %v2885 = vadd.f32 0.0, %v2884
      %2886 = vdwg.mxu0
      %s2887 = scalar_lea.vmem %s7, 224
      %v2888 = vld [vmem:[%s2887] sm:$0xff]
      %v2889 = vld [vmem:[%s2887 + $0x8] sm:$0xff]
      %v2890 = vld [vmem:[%s2887 + $0x10] sm:$0xff]
      %v2891 = vld [vmem:[%s2887 + $0x18] sm:$0xff]
      %v2893 = vsel %vm506, %v2882, 0
      %v2896 = vsel %vm506, %v2885, 0
      %2898 = vmatpush.msra.mxu0 0.0
      %2899 = vmatpush.msra.mxu0 0.0
      %2900 = vmatpush.msra.mxu0 0.0
      %2901 = vmatpush.msra.mxu0 0.0
      %2902 = vmatpush.msra.mxu0 0.0
      %2903 = vmatpush.msra.mxu0 0.0
      %2904 = vmatpush.msra.mxu0 0.0
      %2905 = vmatpush.msra.mxu0 0.0
      %2906 = vmatpush.msra.mxu0 0.0
      %2907 = vmatpush.msra.mxu0 0.0
      %2908 = vmatpush.msra.mxu0 0.0
      %2909 = vmatpush.msra.mxu0 0.0
      %2910 = vmatpush.msra.mxu0 %v2891
      %2911 = vmatpush.msra.mxu0 %v2890
      %2912 = vmatpush.msra.mxu0 %v2889
      %2913 = vmatpush.msra.mxu0 %v2888
      %2914 = vmatmul.f32.gmra.mxu0 %v2893
      %v2915 = vpop.f32.mrf.mxu0
      %v2916 = vadd.f32 0.0, %v2915
      %2917 = vmatmul.f32.gmra.mxu0 %v2896
      %v2918 = vpop.f32.mrf.mxu0
      %v2919 = vadd.f32 0.0, %v2918
      %2920 = vdwg.mxu0
      %v2921 = vadd.f32 %v2853, %v2916
      %v2922 = vadd.f32 %v2854, %v2919
      %s2923 = scalar_lea.vmem %s6, 128
      %v2924 = vld [vmem:[%s2923] sm:$0xff]
      %v2925 = vld [vmem:[%s2923 + $0x8] sm:$0xff]
      %v2927 = vsel %vm2386, %v2924, 0
      %v2930 = vsel %vm2386, %v2925, 0
      %2932 = vmatpush.msra.mxu0 0.0
      %2933 = vmatpush.msra.mxu0 0.0
      %2934 = vmatpush.msra.mxu0 0.0
      %2935 = vmatpush.msra.mxu0 0.0
      %2936 = vmatpush.msra.mxu0 0.0
      %2937 = vmatpush.msra.mxu0 0.0
      %2938 = vmatpush.msra.mxu0 0.0
      %2939 = vmatpush.msra.mxu0 0.0
      %2940 = vmatpush.msra.mxu0 %v2383
      %2941 = vmatpush.msra.mxu0 %v2382
      %2942 = vmatpush.msra.mxu0 %v2381
      %2943 = vmatpush.msra.mxu0 %v2380
      %2944 = vmatpush.msra.mxu0 %v2379
      %2945 = vmatpush.msra.mxu0 %v2378
      %2946 = vmatpush.msra.mxu0 %v2377
      %2947 = vmatpush.msra.mxu0 %v2376
      %2948 = vmatmul.f32.gmra.mxu0 %v2927
      %v2949 = vpop.f32.mrf.mxu0
      %v2950 = vadd.f32 0.0, %v2949
      %2951 = vmatmul.f32.gmra.mxu0 %v2930
      %v2952 = vpop.f32.mrf.mxu0
      %v2953 = vadd.f32 0.0, %v2952
      %2954 = vdwg.mxu0
      %s2955 = scalar_lea.vmem %s7, 256
      %v2956 = vld [vmem:[%s2955] sm:$0xff]
      %v2957 = vld [vmem:[%s2955 + $0x8] sm:$0xff]
      %v2958 = vld [vmem:[%s2955 + $0x10] sm:$0xff]
      %v2959 = vld [vmem:[%s2955 + $0x18] sm:$0xff]
      %v2961 = vsel %vm506, %v2950, 0
      %v2964 = vsel %vm506, %v2953, 0
      %2966 = vmatpush.msra.mxu0 0.0
      %2967 = vmatpush.msra.mxu0 0.0
      %2968 = vmatpush.msra.mxu0 0.0
      %2969 = vmatpush.msra.mxu0 0.0
      %2970 = vmatpush.msra.mxu0 0.0
      %2971 = vmatpush.msra.mxu0 0.0
      %2972 = vmatpush.msra.mxu0 0.0
      %2973 = vmatpush.msra.mxu0 0.0
      %2974 = vmatpush.msra.mxu0 0.0
      %2975 = vmatpush.msra.mxu0 0.0
      %2976 = vmatpush.msra.mxu0 0.0
      %2977 = vmatpush.msra.mxu0 0.0
      %2978 = vmatpush.msra.mxu0 %v2959
      %2979 = vmatpush.msra.mxu0 %v2958
      %2980 = vmatpush.msra.mxu0 %v2957
      %2981 = vmatpush.msra.mxu0 %v2956
      %2982 = vmatmul.f32.gmra.mxu0 %v2961
      %v2983 = vpop.f32.mrf.mxu0
      %v2984 = vadd.f32 0.0, %v2983
      %2985 = vmatmul.f32.gmra.mxu0 %v2964
      %v2986 = vpop.f32.mrf.mxu0
      %v2987 = vadd.f32 0.0, %v2986
      %2988 = vdwg.mxu0
      %v2989 = vadd.f32 %v2921, %v2984
      %v2990 = vadd.f32 %v2922, %v2987
      %v2991 = vld [vmem:[%s8] sm:$0x1]
      %v2992 = vperm.slane %v2991, 0
      %v2993 = vadd.f32 %v2989, %v2992
      %v2994 = vadd.f32 %v2990, %v2992
      %v2995 = vmul.f32 %v2993, 0.2
      %v2996 = vmul.f32 %v2994, 0.2
      %v2997 = vmax.f32 %v2993, %v2995
      %v2998 = vmax.f32 %v2994, %v2996
      %v2999 = vld [vmem:[%s8 + $0x1] sm:$0x1]
      %v3000 = vperm.slane %v2999, 0
      %v3001 = vmul.f32 %v2997, %v3000
      %v3002 = vmul.f32 %v2998, %v3000
      %v3003 = vld [vmem:[%s8 + $0x2] sm:$0x1]
      %v3004 = vperm.slane %v3003, 0
      %v3005 = vadd.f32 %v3001, %v3004
      %v3006 = vadd.f32 %v3002, %v3004
      %v3007 = vld [vmem:[%s9] sm:$0xf]
      %v3009 = vsel %vm982, %v3007, 0
      %3011 = vmatpush.msra.mxu0 0.0
      %3012 = vmatpush.msra.mxu0 0.0
      %3013 = vmatpush.msra.mxu0 0.0
      %3014 = vmatpush.msra.mxu0 0.0
      %3015 = vmatpush.msra.mxu0 0.0
      %3016 = vmatpush.msra.mxu0 0.0
      %3017 = vmatpush.msra.mxu0 0.0
      %3018 = vmatpush.msra.mxu0 0.0
      %3019 = vmatpush.msra.mxu0 0.0
      %3020 = vmatpush.msra.mxu0 0.0
      %3021 = vmatpush.msra.mxu0 0.0
      %3022 = vmatpush.msra.mxu0 0.0
      %3023 = vmatpush.msra.mxu0 0.0
      %3024 = vmatpush.msra.mxu0 0.0
      %3025 = vmatpush.msra.mxu0 %v3006
      %3026 = vmatpush.msra.mxu0 %v3005
      %3027 = vmatmul.f32.gmra.mxu0 %v3009
      %v3028 = vpop.f32.mrf.mxu0
      %v3029 = vadd.f32 0.0, %v3028
      %3030 = vdwg.mxu0
      %v3031 = vld [vmem:[%s10] sm:$0xff]
      %v3032 = vld [vmem:[%s10 + $0x8] sm:$0xff]
      %v3033 = vld [vmem:[%s10 + $0x10] sm:$0xff]
      %v3034 = vld [vmem:[%s10 + $0x18] sm:$0xff]
      %v3035 = vld [vmem:[%s10 + $0x20] sm:$0xff]
      %v3036 = vld [vmem:[%s10 + $0x28] sm:$0xff]
      %v3037 = vld [vmem:[%s10 + $0x30] sm:$0xff]
      %v3038 = vld [vmem:[%s10 + $0x38] sm:$0xff]
      %s3039 = scalar_lea.vmem %s9, 4
      %v3040 = vld [vmem:[%s3039] sm:$0xf]
      %v3042 = vsel %vm982, %v3040, 0
      %3044 = vmatpush.msra.mxu0 0.0
      %3045 = vmatpush.msra.mxu0 0.0
      %3046 = vmatpush.msra.mxu0 0.0
      %3047 = vmatpush.msra.mxu0 0.0
      %3048 = vmatpush.msra.mxu0 0.0
      %3049 = vmatpush.msra.mxu0 0.0
      %3050 = vmatpush.msra.mxu0 0.0
      %3051 = vmatpush.msra.mxu0 0.0
      %3052 = vmatpush.msra.mxu0 0.0
      %3053 = vmatpush.msra.mxu0 0.0
      %3054 = vmatpush.msra.mxu0 0.0
      %3055 = vmatpush.msra.mxu0 0.0
      %3056 = vmatpush.msra.mxu0 0.0
      %3057 = vmatpush.msra.mxu0 0.0
      %3058 = vmatpush.msra.mxu0 %v3006
      %3059 = vmatpush.msra.mxu0 %v3005
      %3060 = vmatmul.f32.gmra.mxu0 %v3042
      %v3061 = vpop.f32.mrf.mxu0
      %v3062 = vadd.f32 0.0, %v3061
      %3063 = vdwg.mxu0
      %s3064 = scalar_lea.vmem %s10, 64
      %v3065 = vld [vmem:[%s3064] sm:$0xff]
      %v3066 = vld [vmem:[%s3064 + $0x8] sm:$0xff]
      %v3067 = vld [vmem:[%s3064 + $0x10] sm:$0xff]
      %v3068 = vld [vmem:[%s3064 + $0x18] sm:$0xff]
      %v3069 = vld [vmem:[%s3064 + $0x20] sm:$0xff]
      %v3070 = vld [vmem:[%s3064 + $0x28] sm:$0xff]
      %v3071 = vld [vmem:[%s3064 + $0x30] sm:$0xff]
      %v3072 = vld [vmem:[%s3064 + $0x38] sm:$0xff]
      %v3074 = vsel %vm2386, %v3062, 0
      %3076 = vmatpush.msra.mxu0 0.0
      %3077 = vmatpush.msra.mxu0 0.0
      %3078 = vmatpush.msra.mxu0 0.0
      %3079 = vmatpush.msra.mxu0 0.0
      %3080 = vmatpush.msra.mxu0 0.0
      %3081 = vmatpush.msra.mxu0 0.0
      %3082 = vmatpush.msra.mxu0 0.0
      %3083 = vmatpush.msra.mxu0 0.0
      %3084 = vmatpush.msra.mxu0 %v3072
      %3085 = vmatpush.msra.mxu0 %v3071
      %3086 = vmatpush.msra.mxu0 %v3070
      %3087 = vmatpush.msra.mxu0 %v3069
      %3088 = vmatpush.msra.mxu0 %v3068
      %3089 = vmatpush.msra.mxu0 %v3067
      %3090 = vmatpush.msra.mxu0 %v3066
      %3091 = vmatpush.msra.mxu0 %v3065
      %3092 = vmatmul.f32.gmra.mxu0 %v3074
      %v3093 = vpop.f32.mrf.mxu0
      %v3094 = vadd.f32 0.0, %v3093
      %3095 = vdwg.mxu0
      %v3097 = vsel %vm2386, %v3029, 0
      %3099 = vmatpush.msra.mxu0 0.0
      %3100 = vmatpush.msra.mxu0 0.0
      %3101 = vmatpush.msra.mxu0 0.0
      %3102 = vmatpush.msra.mxu0 0.0
      %3103 = vmatpush.msra.mxu0 0.0
      %3104 = vmatpush.msra.mxu0 0.0
      %3105 = vmatpush.msra.mxu0 0.0
      %3106 = vmatpush.msra.mxu0 0.0
      %3107 = vmatpush.msra.mxu0 %v3038
      %3108 = vmatpush.msra.mxu0 %v3037
      %3109 = vmatpush.msra.mxu0 %v3036
      %3110 = vmatpush.msra.mxu0 %v3035
      %3111 = vmatpush.msra.mxu0 %v3034
      %3112 = vmatpush.msra.mxu0 %v3033
      %3113 = vmatpush.msra.mxu0 %v3032
      %3114 = vmatpush.msra.mxu0 %v3031
      %3115 = vmatmul.f32.gmra.mxu0 %v3097
      %v3116 = vpop.f32.mrf.mxu0
      %v3117 = vadd.f32 %v3094, %v3116
      %3118 = vdwg.mxu0
      %s3119 = scalar_lea.vmem %s9, 8
      %v3120 = vld [vmem:[%s3119] sm:$0xf]
      %v3122 = vsel %vm982, %v3120, 0
      %3124 = vmatpush.msra.mxu0 0.0
      %3125 = vmatpush.msra.mxu0 0.0
      %3126 = vmatpush.msra.mxu0 0.0
      %3127 = vmatpush.msra.mxu0 0.0
      %3128 = vmatpush.msra.mxu0 0.0
      %3129 = vmatpush.msra.mxu0 0.0
      %3130 = vmatpush.msra.mxu0 0.0
      %3131 = vmatpush.msra.mxu0 0.0
      %3132 = vmatpush.msra.mxu0 0.0
      %3133 = vmatpush.msra.mxu0 0.0
      %3134 = vmatpush.msra.mxu0 0.0
      %3135 = vmatpush.msra.mxu0 0.0
      %3136 = vmatpush.msra.mxu0 0.0
      %3137 = vmatpush.msra.mxu0 0.0
      %3138 = vmatpush.msra.mxu0 %v3006
      %3139 = vmatpush.msra.mxu0 %v3005
      %3140 = vmatmul.f32.gmra.mxu0 %v3122
      %v3141 = vpop.f32.mrf.mxu0
      %v3142 = vadd.f32 0.0, %v3141
      %3143 = vdwg.mxu0
      %s3144 = scalar_lea.vmem %s10, 128
      %v3145 = vld [vmem:[%s3144] sm:$0xff]
      %v3146 = vld [vmem:[%s3144 + $0x8] sm:$0xff]
      %v3147 = vld [vmem:[%s3144 + $0x10] sm:$0xff]
      %v3148 = vld [vmem:[%s3144 + $0x18] sm:$0xff]
      %v3149 = vld [vmem:[%s3144 + $0x20] sm:$0xff]
      %v3150 = vld [vmem:[%s3144 + $0x28] sm:$0xff]
      %v3151 = vld [vmem:[%s3144 + $0x30] sm:$0xff]
      %v3152 = vld [vmem:[%s3144 + $0x38] sm:$0xff]
      %v3154 = vsel %vm2386, %v3142, 0
      %3156 = vmatpush.msra.mxu0 0.0
      %3157 = vmatpush.msra.mxu0 0.0
      %3158 = vmatpush.msra.mxu0 0.0
      %3159 = vmatpush.msra.mxu0 0.0
      %3160 = vmatpush.msra.mxu0 0.0
      %3161 = vmatpush.msra.mxu0 0.0
      %3162 = vmatpush.msra.mxu0 0.0
      %3163 = vmatpush.msra.mxu0 0.0
      %3164 = vmatpush.msra.mxu0 %v3152
      %3165 = vmatpush.msra.mxu0 %v3151
      %3166 = vmatpush.msra.mxu0 %v3150
      %3167 = vmatpush.msra.mxu0 %v3149
      %3168 = vmatpush.msra.mxu0 %v3148
      %3169 = vmatpush.msra.mxu0 %v3147
      %3170 = vmatpush.msra.mxu0 %v3146
      %3171 = vmatpush.msra.mxu0 %v3145
      %3172 = vmatmul.f32.gmra.mxu0 %v3154
      %v3173 = vpop.f32.mrf.mxu0
      %v3174 = vadd.f32 0.0, %v3173
      %3175 = vdwg.mxu0
      %v3176 = vadd.f32 %v3117, %v3174
      %s3177 = scalar_lea.vmem %s9, 12
      %v3178 = vld [vmem:[%s3177] sm:$0xf]
      %v3180 = vsel %vm982, %v3178, 0
      %3182 = vmatpush.msra.mxu0 0.0
      %3183 = vmatpush.msra.mxu0 0.0
      %3184 = vmatpush.msra.mxu0 0.0
      %3185 = vmatpush.msra.mxu0 0.0
      %3186 = vmatpush.msra.mxu0 0.0
      %3187 = vmatpush.msra.mxu0 0.0
      %3188 = vmatpush.msra.mxu0 0.0
      %3189 = vmatpush.msra.mxu0 0.0
      %3190 = vmatpush.msra.mxu0 0.0
      %3191 = vmatpush.msra.mxu0 0.0
      %3192 = vmatpush.msra.mxu0 0.0
      %3193 = vmatpush.msra.mxu0 0.0
      %3194 = vmatpush.msra.mxu0 0.0
      %3195 = vmatpush.msra.mxu0 0.0
      %3196 = vmatpush.msra.mxu0 %v3006
      %3197 = vmatpush.msra.mxu0 %v3005
      %3198 = vmatmul.f32.gmra.mxu0 %v3180
      %v3199 = vpop.f32.mrf.mxu0
      %v3200 = vadd.f32 0.0, %v3199
      %3201 = vdwg.mxu0
      %s3202 = scalar_lea.vmem %s10, 192
      %v3203 = vld [vmem:[%s3202] sm:$0xff]
      %v3204 = vld [vmem:[%s3202 + $0x8] sm:$0xff]
      %v3205 = vld [vmem:[%s3202 + $0x10] sm:$0xff]
      %v3206 = vld [vmem:[%s3202 + $0x18] sm:$0xff]
      %v3207 = vld [vmem:[%s3202 + $0x20] sm:$0xff]
      %v3208 = vld [vmem:[%s3202 + $0x28] sm:$0xff]
      %v3209 = vld [vmem:[%s3202 + $0x30] sm:$0xff]
      %v3210 = vld [vmem:[%s3202 + $0x38] sm:$0xff]
      %v3212 = vsel %vm2386, %v3200, 0
      %3214 = vmatpush.msra.mxu0 0.0
      %3215 = vmatpush.msra.mxu0 0.0
      %3216 = vmatpush.msra.mxu0 0.0
      %3217 = vmatpush.msra.mxu0 0.0
      %3218 = vmatpush.msra.mxu0 0.0
      %3219 = vmatpush.msra.mxu0 0.0
      %3220 = vmatpush.msra.mxu0 0.0
      %3221 = vmatpush.msra.mxu0 0.0
      %3222 = vmatpush.msra.mxu0 %v3210
      %3223 = vmatpush.msra.mxu0 %v3209
      %3224 = vmatpush.msra.mxu0 %v3208
      %3225 = vmatpush.msra.mxu0 %v3207
      %3226 = vmatpush.msra.mxu0 %v3206
      %3227 = vmatpush.msra.mxu0 %v3205
      %3228 = vmatpush.msra.mxu0 %v3204
      %3229 = vmatpush.msra.mxu0 %v3203
      %3230 = vmatmul.f32.gmra.mxu0 %v3212
      %v3231 = vpop.f32.mrf.mxu0
      %v3232 = vadd.f32 0.0, %v3231
      %3233 = vdwg.mxu0
      %v3234 = vadd.f32 %v3176, %v3232
      %s3235 = scalar_lea.vmem %s9, 16
      %v3236 = vld [vmem:[%s3235] sm:$0xf]
      %v3238 = vsel %vm982, %v3236, 0
      %3240 = vmatpush.msra.mxu0 0.0
      %3241 = vmatpush.msra.mxu0 0.0
      %3242 = vmatpush.msra.mxu0 0.0
      %3243 = vmatpush.msra.mxu0 0.0
      %3244 = vmatpush.msra.mxu0 0.0
      %3245 = vmatpush.msra.mxu0 0.0
      %3246 = vmatpush.msra.mxu0 0.0
      %3247 = vmatpush.msra.mxu0 0.0
      %3248 = vmatpush.msra.mxu0 0.0
      %3249 = vmatpush.msra.mxu0 0.0
      %3250 = vmatpush.msra.mxu0 0.0
      %3251 = vmatpush.msra.mxu0 0.0
      %3252 = vmatpush.msra.mxu0 0.0
      %3253 = vmatpush.msra.mxu0 0.0
      %3254 = vmatpush.msra.mxu0 %v3006
      %3255 = vmatpush.msra.mxu0 %v3005
      %3256 = vmatmul.f32.gmra.mxu0 %v3238
      %v3257 = vpop.f32.mrf.mxu0
      %v3258 = vadd.f32 0.0, %v3257
      %3259 = vdwg.mxu0
      %s3260 = scalar_lea.vmem %s10, 256
      %v3261 = vld [vmem:[%s3260] sm:$0xff]
      %v3262 = vld [vmem:[%s3260 + $0x8] sm:$0xff]
      %v3263 = vld [vmem:[%s3260 + $0x10] sm:$0xff]
      %v3264 = vld [vmem:[%s3260 + $0x18] sm:$0xff]
      %v3265 = vld [vmem:[%s3260 + $0x20] sm:$0xff]
      %v3266 = vld [vmem:[%s3260 + $0x28] sm:$0xff]
      %v3267 = vld [vmem:[%s3260 + $0x30] sm:$0xff]
      %v3268 = vld [vmem:[%s3260 + $0x38] sm:$0xff]
      %v3270 = vsel %vm2386, %v3258, 0
      %3272 = vmatpush.msra.mxu0 0.0
      %3273 = vmatpush.msra.mxu0 0.0
      %3274 = vmatpush.msra.mxu0 0.0
      %3275 = vmatpush.msra.mxu0 0.0
      %3276 = vmatpush.msra.mxu0 0.0
      %3277 = vmatpush.msra.mxu0 0.0
      %3278 = vmatpush.msra.mxu0 0.0
      %3279 = vmatpush.msra.mxu0 0.0
      %3280 = vmatpush.msra.mxu0 %v3268
      %3281 = vmatpush.msra.mxu0 %v3267
      %3282 = vmatpush.msra.mxu0 %v3266
      %3283 = vmatpush.msra.mxu0 %v3265
      %3284 = vmatpush.msra.mxu0 %v3264
      %3285 = vmatpush.msra.mxu0 %v3263
      %3286 = vmatpush.msra.mxu0 %v3262
      %3287 = vmatpush.msra.mxu0 %v3261
      %3288 = vmatmul.f32.gmra.mxu0 %v3270
      %v3289 = vpop.f32.mrf.mxu0
      %v3290 = vadd.f32 0.0, %v3289
      %3291 = vdwg.mxu0
      %v3292 = vadd.f32 %v3234, %v3290
      %s3293 = scalar_lea.vmem %s9, 20
      %v3294 = vld [vmem:[%s3293] sm:$0xf]
      %v3296 = vsel %vm982, %v3294, 0
      %3298 = vmatpush.msra.mxu0 0.0
      %3299 = vmatpush.msra.mxu0 0.0
      %3300 = vmatpush.msra.mxu0 0.0
      %3301 = vmatpush.msra.mxu0 0.0
      %3302 = vmatpush.msra.mxu0 0.0
      %3303 = vmatpush.msra.mxu0 0.0
      %3304 = vmatpush.msra.mxu0 0.0
      %3305 = vmatpush.msra.mxu0 0.0
      %3306 = vmatpush.msra.mxu0 0.0
      %3307 = vmatpush.msra.mxu0 0.0
      %3308 = vmatpush.msra.mxu0 0.0
      %3309 = vmatpush.msra.mxu0 0.0
      %3310 = vmatpush.msra.mxu0 0.0
      %3311 = vmatpush.msra.mxu0 0.0
      %3312 = vmatpush.msra.mxu0 %v3006
      %3313 = vmatpush.msra.mxu0 %v3005
      %3314 = vmatmul.f32.gmra.mxu0 %v3296
      %v3315 = vpop.f32.mrf.mxu0
      %v3316 = vadd.f32 0.0, %v3315
      %3317 = vdwg.mxu0
      %s3318 = scalar_lea.vmem %s10, 320
      %v3319 = vld [vmem:[%s3318] sm:$0xff]
      %v3320 = vld [vmem:[%s3318 + $0x8] sm:$0xff]
      %v3321 = vld [vmem:[%s3318 + $0x10] sm:$0xff]
      %v3322 = vld [vmem:[%s3318 + $0x18] sm:$0xff]
      %v3323 = vld [vmem:[%s3318 + $0x20] sm:$0xff]
      %v3324 = vld [vmem:[%s3318 + $0x28] sm:$0xff]
      %v3325 = vld [vmem:[%s3318 + $0x30] sm:$0xff]
      %v3326 = vld [vmem:[%s3318 + $0x38] sm:$0xff]
      %v3328 = vsel %vm2386, %v3316, 0
      %3330 = vmatpush.msra.mxu0 0.0
      %3331 = vmatpush.msra.mxu0 0.0
      %3332 = vmatpush.msra.mxu0 0.0
      %3333 = vmatpush.msra.mxu0 0.0
      %3334 = vmatpush.msra.mxu0 0.0
      %3335 = vmatpush.msra.mxu0 0.0
      %3336 = vmatpush.msra.mxu0 0.0
      %3337 = vmatpush.msra.mxu0 0.0
      %3338 = vmatpush.msra.mxu0 %v3326
      %3339 = vmatpush.msra.mxu0 %v3325
      %3340 = vmatpush.msra.mxu0 %v3324
      %3341 = vmatpush.msra.mxu0 %v3323
      %3342 = vmatpush.msra.mxu0 %v3322
      %3343 = vmatpush.msra.mxu0 %v3321
      %3344 = vmatpush.msra.mxu0 %v3320
      %3345 = vmatpush.msra.mxu0 %v3319
      %3346 = vmatmul.f32.gmra.mxu0 %v3328
      %v3347 = vpop.f32.mrf.mxu0
      %v3348 = vadd.f32 0.0, %v3347
      %3349 = vdwg.mxu0
      %v3350 = vadd.f32 %v3292, %v3348
      %s3351 = scalar_lea.vmem %s9, 24
      %v3352 = vld [vmem:[%s3351] sm:$0xf]
      %v3354 = vsel %vm982, %v3352, 0
      %3356 = vmatpush.msra.mxu0 0.0
      %3357 = vmatpush.msra.mxu0 0.0
      %3358 = vmatpush.msra.mxu0 0.0
      %3359 = vmatpush.msra.mxu0 0.0
      %3360 = vmatpush.msra.mxu0 0.0
      %3361 = vmatpush.msra.mxu0 0.0
      %3362 = vmatpush.msra.mxu0 0.0
      %3363 = vmatpush.msra.mxu0 0.0
      %3364 = vmatpush.msra.mxu0 0.0
      %3365 = vmatpush.msra.mxu0 0.0
      %3366 = vmatpush.msra.mxu0 0.0
      %3367 = vmatpush.msra.mxu0 0.0
      %3368 = vmatpush.msra.mxu0 0.0
      %3369 = vmatpush.msra.mxu0 0.0
      %3370 = vmatpush.msra.mxu0 %v3006
      %3371 = vmatpush.msra.mxu0 %v3005
      %3372 = vmatmul.f32.gmra.mxu0 %v3354
      %v3373 = vpop.f32.mrf.mxu0
      %v3374 = vadd.f32 0.0, %v3373
      %3375 = vdwg.mxu0
      %s3376 = scalar_lea.vmem %s10, 384
      %v3377 = vld [vmem:[%s3376] sm:$0xff]
      %v3378 = vld [vmem:[%s3376 + $0x8] sm:$0xff]
      %v3379 = vld [vmem:[%s3376 + $0x10] sm:$0xff]
      %v3380 = vld [vmem:[%s3376 + $0x18] sm:$0xff]
      %v3381 = vld [vmem:[%s3376 + $0x20] sm:$0xff]
      %v3382 = vld [vmem:[%s3376 + $0x28] sm:$0xff]
      %v3383 = vld [vmem:[%s3376 + $0x30] sm:$0xff]
      %v3384 = vld [vmem:[%s3376 + $0x38] sm:$0xff]
      %v3386 = vsel %vm2386, %v3374, 0
      %3388 = vmatpush.msra.mxu0 0.0
      %3389 = vmatpush.msra.mxu0 0.0
      %3390 = vmatpush.msra.mxu0 0.0
      %3391 = vmatpush.msra.mxu0 0.0
      %3392 = vmatpush.msra.mxu0 0.0
      %3393 = vmatpush.msra.mxu0 0.0
      %3394 = vmatpush.msra.mxu0 0.0
      %3395 = vmatpush.msra.mxu0 0.0
      %3396 = vmatpush.msra.mxu0 %v3384
      %3397 = vmatpush.msra.mxu0 %v3383
      %3398 = vmatpush.msra.mxu0 %v3382
      %3399 = vmatpush.msra.mxu0 %v3381
      %3400 = vmatpush.msra.mxu0 %v3380
      %3401 = vmatpush.msra.mxu0 %v3379
      %3402 = vmatpush.msra.mxu0 %v3378
      %3403 = vmatpush.msra.mxu0 %v3377
      %3404 = vmatmul.f32.gmra.mxu0 %v3386
      %v3405 = vpop.f32.mrf.mxu0
      %v3406 = vadd.f32 0.0, %v3405
      %3407 = vdwg.mxu0
      %v3408 = vadd.f32 %v3350, %v3406
      %s3409 = scalar_lea.vmem %s9, 28
      %v3410 = vld [vmem:[%s3409] sm:$0xf]
      %v3412 = vsel %vm982, %v3410, 0
      %3414 = vmatpush.msra.mxu0 0.0
      %3415 = vmatpush.msra.mxu0 0.0
      %3416 = vmatpush.msra.mxu0 0.0
      %3417 = vmatpush.msra.mxu0 0.0
      %3418 = vmatpush.msra.mxu0 0.0
      %3419 = vmatpush.msra.mxu0 0.0
      %3420 = vmatpush.msra.mxu0 0.0
      %3421 = vmatpush.msra.mxu0 0.0
      %3422 = vmatpush.msra.mxu0 0.0
      %3423 = vmatpush.msra.mxu0 0.0
      %3424 = vmatpush.msra.mxu0 0.0
      %3425 = vmatpush.msra.mxu0 0.0
      %3426 = vmatpush.msra.mxu0 0.0
      %3427 = vmatpush.msra.mxu0 0.0
      %3428 = vmatpush.msra.mxu0 %v3006
      %3429 = vmatpush.msra.mxu0 %v3005
      %3430 = vmatmul.f32.gmra.mxu0 %v3412
      %v3431 = vpop.f32.mrf.mxu0
      %v3432 = vadd.f32 0.0, %v3431
      %3433 = vdwg.mxu0
      %s3434 = scalar_lea.vmem %s10, 448
      %v3435 = vld [vmem:[%s3434] sm:$0xff]
      %v3436 = vld [vmem:[%s3434 + $0x8] sm:$0xff]
      %v3437 = vld [vmem:[%s3434 + $0x10] sm:$0xff]
      %v3438 = vld [vmem:[%s3434 + $0x18] sm:$0xff]
      %v3439 = vld [vmem:[%s3434 + $0x20] sm:$0xff]
      %v3440 = vld [vmem:[%s3434 + $0x28] sm:$0xff]
      %v3441 = vld [vmem:[%s3434 + $0x30] sm:$0xff]
      %v3442 = vld [vmem:[%s3434 + $0x38] sm:$0xff]
      %v3444 = vsel %vm2386, %v3432, 0
      %3446 = vmatpush.msra.mxu0 0.0
      %3447 = vmatpush.msra.mxu0 0.0
      %3448 = vmatpush.msra.mxu0 0.0
      %3449 = vmatpush.msra.mxu0 0.0
      %3450 = vmatpush.msra.mxu0 0.0
      %3451 = vmatpush.msra.mxu0 0.0
      %3452 = vmatpush.msra.mxu0 0.0
      %3453 = vmatpush.msra.mxu0 0.0
      %3454 = vmatpush.msra.mxu0 %v3442
      %3455 = vmatpush.msra.mxu0 %v3441
      %3456 = vmatpush.msra.mxu0 %v3440
      %3457 = vmatpush.msra.mxu0 %v3439
      %3458 = vmatpush.msra.mxu0 %v3438
      %3459 = vmatpush.msra.mxu0 %v3437
      %3460 = vmatpush.msra.mxu0 %v3436
      %3461 = vmatpush.msra.mxu0 %v3435
      %3462 = vmatmul.f32.gmra.mxu0 %v3444
      %v3463 = vpop.f32.mrf.mxu0
      %v3464 = vadd.f32 0.0, %v3463
      %3465 = vdwg.mxu0
      %v3466 = vadd.f32 %v3408, %v3464
      %s3467 = scalar_lea.vmem %s9, 32
      %v3468 = vld [vmem:[%s3467] sm:$0xf]
      %v3470 = vsel %vm982, %v3468, 0
      %3472 = vmatpush.msra.mxu0 0.0
      %3473 = vmatpush.msra.mxu0 0.0
      %3474 = vmatpush.msra.mxu0 0.0
      %3475 = vmatpush.msra.mxu0 0.0
      %3476 = vmatpush.msra.mxu0 0.0
      %3477 = vmatpush.msra.mxu0 0.0
      %3478 = vmatpush.msra.mxu0 0.0
      %3479 = vmatpush.msra.mxu0 0.0
      %3480 = vmatpush.msra.mxu0 0.0
      %3481 = vmatpush.msra.mxu0 0.0
      %3482 = vmatpush.msra.mxu0 0.0
      %3483 = vmatpush.msra.mxu0 0.0
      %3484 = vmatpush.msra.mxu0 0.0
      %3485 = vmatpush.msra.mxu0 0.0
      %3486 = vmatpush.msra.mxu0 %v3006
      %3487 = vmatpush.msra.mxu0 %v3005
      %3488 = vmatmul.f32.gmra.mxu0 %v3470
      %v3489 = vpop.f32.mrf.mxu0
      %v3490 = vadd.f32 0.0, %v3489
      %3491 = vdwg.mxu0
      %s3492 = scalar_lea.vmem %s10, 512
      %v3493 = vld [vmem:[%s3492] sm:$0xff]
      %v3494 = vld [vmem:[%s3492 + $0x8] sm:$0xff]
      %v3495 = vld [vmem:[%s3492 + $0x10] sm:$0xff]
      %v3496 = vld [vmem:[%s3492 + $0x18] sm:$0xff]
      %v3497 = vld [vmem:[%s3492 + $0x20] sm:$0xff]
      %v3498 = vld [vmem:[%s3492 + $0x28] sm:$0xff]
      %v3499 = vld [vmem:[%s3492 + $0x30] sm:$0xff]
      %v3500 = vld [vmem:[%s3492 + $0x38] sm:$0xff]
      %v3502 = vsel %vm2386, %v3490, 0
      %3504 = vmatpush.msra.mxu0 0.0
      %3505 = vmatpush.msra.mxu0 0.0
      %3506 = vmatpush.msra.mxu0 0.0
      %3507 = vmatpush.msra.mxu0 0.0
      %3508 = vmatpush.msra.mxu0 0.0
      %3509 = vmatpush.msra.mxu0 0.0
      %3510 = vmatpush.msra.mxu0 0.0
      %3511 = vmatpush.msra.mxu0 0.0
      %3512 = vmatpush.msra.mxu0 %v3500
      %3513 = vmatpush.msra.mxu0 %v3499
      %3514 = vmatpush.msra.mxu0 %v3498
      %3515 = vmatpush.msra.mxu0 %v3497
      %3516 = vmatpush.msra.mxu0 %v3496
      %3517 = vmatpush.msra.mxu0 %v3495
      %3518 = vmatpush.msra.mxu0 %v3494
      %3519 = vmatpush.msra.mxu0 %v3493
      %3520 = vmatmul.f32.gmra.mxu0 %v3502
      %v3521 = vpop.f32.mrf.mxu0
      %v3522 = vadd.f32 0.0, %v3521
      %3523 = vdwg.mxu0
      %v3524 = vadd.f32 %v3466, %v3522
      %v3525 = vld [vmem:[%s11] sm:$0x1]
      %v3526 = vperm.slane %v3525, 0
      %v3527 = vadd.f32 %v3524, %v3526
      %v3528 = vmul.f32 %v3527, 0.2
      %v3529 = vmax.f32 %v3527, %v3528
      %v3530 = vld [vmem:[%s11 + $0x1] sm:$0x1]
      %v3531 = vperm.slane %v3530, 0
      %v3532 = vmul.f32 %v3529, %v3531
      %v3533 = vld [vmem:[%s11 + $0x2] sm:$0x1]
      %v3534 = vperm.slane %v3533, 0
      %v3535 = vadd.f32 %v3532, %v3534
      %v3536 = vld [vmem:[%s12] sm:$0xf]
      %v3537 = vmul.f32 %v3535, %v3536
      %vm3538 = vcmask 1043456
      %v3539 = vsel %vm3538, %v3537, 0.0
      %3540 = vadd.xlane.f32.xlu0 %v3539
      %v3541 = vpop.xlane.xlu0 %3540
      %v3542 = vsel %vm3538, %v3541, 0.0
      %v3543 = vrot.slane %v3542, 4
      %v3544 = vadd.f32 %v3542, %v3543
      %v3545 = vrot.slane %v3544, 2
      %v3546 = vadd.f32 %v3544, %v3545
      %v3547 = vrot.slane %v3546, 1
      %v3548 = vadd.f32 %v3546, %v3547
      %v3549 = vld [vmem:[#allocation2] sm:$0x1]
      %v3550 = vadd.f32 %v3548, %v3549
      %v3551 = vsub.f32 0.0, %v3550
      %v3552 = vmul.f32 %v3551, 1.442695
      %v3553 = vpow.pop %v3552
      %v3554 = vadd.f32 %v3553, 1.0
      %v3555 = vrcp.pop %v3554
      %v3556 = vmul.f32 %v3554, %v3555
      %v3557 = vsub.f32 1.0, %v3556
      %v3558 = vmul.f32 %v3555, %v3557
      %v3559 = vadd.f32 %v3555, %v3558
      %vm3560 = vweird.f32 %v3554
      %vm3561 = vweird.f32 %v3555
      %vm3562 = vmor %vm3560, %vm3561
      %v3563 = vsel %vm3562, %v3555, %v3559
      %v3564 = vand.u32 2147483647, %v3554
      %vm3565 = vcmp.eq.f32.partialorder %v3564, 8.507059e+37
      %v3566 = vand.u32 %v3554, 2147483648
      %v3567 = vor.u32 1.1754944e-38, %v3566
      %v3568 = vsel %vm3565, %v3567, %v3563
      %v3569 = vmul.f32 1.0, %v3568
      %vm3570 = vcmask 0
      %3571 = vst.msk [vmem:[%s465] sm:$0x1] %vm3570, %v3569
      %p3572 = scmp.lt.s32.totalorder %s27, 1
      %s3573 = scalar_select %p3572, %s27, 1
      %s3574 = scalar_lea.vmem %s14, %s3573
      // Predicated region
      $region77: #{discriminator_forward.1} parent=75 // pred_check
        %p3575 = pneg %p344
      $region78: #{discriminator_forward.1} parent=75 // pred_check_branch
        %3577 = sbr.rel (%p3575) target = $region80
      $region79: #{discriminator_forward.1} parent=75 // pred_region
        _
      $region80: #{discriminator_forward.1} parent=75 // pred_fallthru
        _
    $region76: #{discriminator_forward.1} parent=5 // pred_fallthru
      _
    %p3578 = scmp.le.s32.totalorder 2, %s22
    // Predicated region
    $region81: #{discriminator_forward.1} parent=5 // pred_check
      %p3579 = pneg %p3578
    $region82: #{discriminator_forward.1} parent=5 // pred_check_branch
      %3581 = sbr.rel (%p3579) target = $region84
    $region83: #{discriminator_forward.1} parent=5 // pred_region
      %s3582 = ssub.s32 %s22, 2
      // Predicated region
      $region85: #{discriminator_forward.1} parent=83 // pred_check
        %p3583 = pneg %p350
      $region86: #{discriminator_forward.1} parent=83 // pred_check_branch
        %3585 = sbr.rel (%p3583) target = $region88
      $region87: #{discriminator_forward.1} parent=83 // pred_region
        %p3586 = scmp.lt.s32.totalorder %s28, 1
        %s3587 = scalar_select %p3586, %s28, 1
        %s3588 = scalar_lea.vmem %s14, %s3587
      $region88: #{discriminator_forward.1} parent=83 // pred_fallthru
        _
    $region84: #{discriminator_forward.1} parent=5 // pred_fallthru
      _
  $region6: #{discriminator_forward.1} parent=0 // loop_footer
    %s26 = sadd.s32 1, %s22
  $region7: #{discriminator_forward.1} parent=0 // loop_footer_branch
    %21 = sbr.rel target = $region3
  $region8: #{discriminator_forward.1} parent=0 // loop_exit
    _

</llo_original>
